<compile_context>
chip_gen: v6e
topology: v6e:2x2x1
jax: 0.10.0
libtpu: 0.0.40
codegen_flags: <defaults>
</compile_context>

<pallas_src>
import functools

import jax
import jax.numpy as jnp
from jax.experimental import pallas as pl
from jax.experimental.pallas import tpu as pltpu


def _recurrent_hedge_kernel(s_ref, w1ts_ref, w1td_ref, b1_ref, w2t_ref, b2_ref,
                            out_ref, a_ref, *, steps):
    # s_ref:    (steps+1, s_dim, B_tile)   feature-major prices
    # w1ts_ref: (steps, H, s_dim)          W1^T, S-columns
    # w1td_ref: (steps, H, out_dim)        W1^T, delta-columns
    # b1_ref:   (steps, H, 1)
    # w2t_ref:  (steps, out_dim, H)
    # b2_ref:   (steps, out_dim, 1)
    # out_ref:  (steps, out_dim, B_tile)   VMEM resident, flushed once per tile
    # a_ref:    (steps, H, B_tile)         VMEM scratch: hoisted S-contribution

    out_dim, b_tile = out_ref.shape[1], out_ref.shape[2]

    # Hoist the S part of layer 1 out of the serial recurrence: independent
    # MXU dots, no dependence on delta, can be issued back-to-back.
    for k in range(steps):
        a_ref[k] = (
            jnp.dot(w1ts_ref[k], s_ref[k], preferred_element_type=jnp.float32)
            + b1_ref[k])                                   # (H, B_tile)

    # Serial recurrence; delta lives in vregs (loop-carried value).
    delta = jnp.zeros((out_dim, b_tile), jnp.float32)
    for k in range(steps):
        h = a_ref[k] + jnp.dot(w1td_ref[k], delta,
                               preferred_element_type=jnp.float32)  # (H, B_tile)
        h = jnp.maximum(h, 0.0)                                      # ReLU
        delta = (jnp.dot(w2t_ref[k], h, preferred_element_type=jnp.float32)
                 + b2_ref[k])                                        # (out_dim, B_tile)
        out_ref[k] = delta                                           # lane-dense store


def recurrent_hedge_forward(S, W1, b1, W2, b2, *, batch_tile=None):
    """S: (B, steps+1, s_dim) f32 -> deltas: (B, steps, out_dim) f32.

    W1: (steps, in_dim, hidden), b1: (steps, hidden)
    W2: (steps, hidden, out_dim), b2: (steps, out_dim)
    with in_dim = s_dim + out_dim (x = concat([S_k, delta_prev])).
    """
    B, steps_p1, s_dim = S.shape
    steps, in_dim, hidden = W1.shape
    out_dim = W2.shape[-1]
    assert steps_p1 == steps + 1
    assert in_dim == s_dim + out_dim, "model expects x = concat([S_k, delta_prev])"

    # Batch tiling: tiles must be lane-aligned (multiple of 128) unless the
    # whole batch fits in one tile.  One big tile is best on single-TC chips;
    # VMEM use per tile is only a few MiB even at steps=30, hidden=64, B=1024.
    if batch_tile is None:
        if B > 1024 and B % 1024 == 0:
            batch_tile = 1024
        else:
            batch_tile = B
    assert B % batch_tile == 0
    assert batch_tile == B or batch_tile % 128 == 0, "batch tiles must be lane-aligned"
    num_tiles = B // batch_tile

    # Feature-major layouts (batch in the lane dimension).
    S_fm = jnp.transpose(S, (1, 2, 0))                      # (steps+1, s_dim, B)
    W1t_s = jnp.transpose(W1[:, :s_dim, :], (0, 2, 1))      # (steps, H, s_dim)
    W1t_d = jnp.transpose(W1[:, s_dim:, :], (0, 2, 1))      # (steps, H, out_dim)
    W2t = jnp.transpose(W2, (0, 2, 1))                      # (steps, out_dim, H)
    b1r = b1.reshape(steps, hidden, 1)
    b2r = b2.reshape(steps, out_dim, 1)

    kernel = functools.partial(_recurrent_hedge_kernel, steps=steps)

    out_fm = pl.pallas_call(
        kernel,
        out_shape=jax.ShapeDtypeStruct((steps, out_dim, B), jnp.float32),
        grid_spec=pltpu.PrefetchScalarGridSpec(
            num_scalar_prefetch=0,
            grid=(num_tiles,),
            in_specs=[
                pl.BlockSpec((steps_p1, s_dim, batch_tile), lambda b: (0, 0, b)),  # S
                pl.BlockSpec((steps, hidden, s_dim), lambda b: (0, 0, 0)),         # W1^T (S cols)
                pl.BlockSpec((steps, hidden, out_dim), lambda b: (0, 0, 0)),       # W1^T (delta cols)
                pl.BlockSpec((steps, hidden, 1), lambda b: (0, 0, 0)),             # b1
                pl.BlockSpec((steps, out_dim, hidden), lambda b: (0, 0, 0)),       # W2^T
                pl.BlockSpec((steps, out_dim, 1), lambda b: (0, 0, 0)),            # b2
            ],
            out_specs=pl.BlockSpec((steps, out_dim, batch_tile), lambda b: (0, 0, b)),
            scratch_shapes=[pltpu.VMEM((steps, hidden, batch_tile), jnp.float32)],  # A[k]
        ),
        compiler_params=pltpu.CompilerParams(
            dimension_semantics=("parallel",)),             # batch tiles independent
    )(S_fm, W1t_s, W1t_d, b1r, W2t, b2r)

    return jnp.transpose(out_fm, (2, 0, 1))                 # (B, steps, out_dim)


def _reference_forward(S, W1, b1, W2, b2):
    """Pure-JAX reference mirroring the PyTorch module exactly."""
    B = S.shape[0]
    steps = W1.shape[0]
    out_dim = W2.shape[-1]
    delta = jnp.zeros((B, out_dim), jnp.float32)
    deltas = []
    for k in range(steps):
        x = jnp.concatenate([S[:, k, :], delta], axis=1)
        h = jnp.maximum(x @ W1[k] + b1[k], 0.0)
        delta = h @ W2[k] + b2[k]
        deltas.append(delta)
    return jnp.stack(deltas, axis=1)


if __name__ == "__main__":
    # Small shapes consistent with the module: s_dim = out_dim = 5, in_dim = 10.
    B, steps, hidden = 16, 8, 32
    s_dim = out_dim = 5
    in_dim = s_dim + out_dim

    key = jax.random.PRNGKey(0)
    k_s, k_w1, k_b1, k_w2, k_b2 = jax.random.split(key, 5)

    # Deterministic synthetic parameters (per-step stacked Linear weights, (in, out)).
    S = jax.random.normal(k_s, (B, steps + 1, s_dim), jnp.float32)
    W1 = jax.random.normal(k_w1, (steps, in_dim, hidden), jnp.float32) / jnp.sqrt(in_dim)
    b1 = jax.random.normal(k_b1, (steps, hidden), jnp.float32) * 0.1
    W2 = jax.random.normal(k_w2, (steps, hidden, out_dim), jnp.float32) / jnp.sqrt(hidden)
    b2 = jax.random.normal(k_b2, (steps, out_dim), jnp.float32) * 0.1

    deltas = recurrent_hedge_forward(S, W1, b1, W2, b2)
    deltas = jax.block_until_ready(deltas)

    expected = _reference_forward(S, W1, b1, W2, b2)
    assert deltas.shape == (B, steps, out_dim), deltas.shape
    assert jnp.allclose(deltas, expected, atol=1e-5, rtol=1e-5), "mismatch vs reference"

    print("KERNEL_OK")
</pallas_src>

<mosaic_0001>
module attributes {stable_mosaic.version = 11 : i64} {
  func.func @_recurrent_hedge_kernel(%arg0: i32, %arg1: memref<9x5x16xf32, #tpu.memory_space<vmem>>, %arg2: memref<8x32x5xf32, #tpu.memory_space<vmem>>, %arg3: memref<8x32x5xf32, #tpu.memory_space<vmem>>, %arg4: memref<8x32x1xf32, #tpu.memory_space<vmem>>, %arg5: memref<8x5x32xf32, #tpu.memory_space<vmem>>, %arg6: memref<8x5x1xf32, #tpu.memory_space<vmem>>, %arg7: memref<8x5x16xf32, #tpu.memory_space<vmem>>, %arg8: memref<8x32x16xf32, #tpu.memory_space<vmem>>) attributes {dimension_semantics = [#tpu.dimension_semantics<parallel>], iteration_bounds = array<i64: 1>, scalar_prefetch = 0 : i64, scratch_operands = 1 : i64, tpu.core_type = #tpu.core_type<tc>, window_params = [{transform_indices = @transform_0, window_bounds = array<i64: 9, 5, 16>}, {pipeline_mode = #tpu.pipeline_mode<synchronous>, transform_indices = @transform_1, window_bounds = array<i64: 8, 32, 5>}, {pipeline_mode = #tpu.pipeline_mode<synchronous>, transform_indices = @transform_2, window_bounds = array<i64: 8, 32, 5>}, {pipeline_mode = #tpu.pipeline_mode<synchronous>, transform_indices = @transform_3, window_bounds = array<i64: 8, 32, 1>}, {pipeline_mode = #tpu.pipeline_mode<synchronous>, transform_indices = @transform_4, window_bounds = array<i64: 8, 5, 32>}, {pipeline_mode = #tpu.pipeline_mode<synchronous>, transform_indices = @transform_5, window_bounds = array<i64: 8, 5, 1>}, {transform_indices = @transform_6, window_bounds = array<i64: 8, 5, 16>}]} {
    %c0 = arith.constant 0 : index
    %c0_0 = arith.constant 0 : index
    %c0_1 = arith.constant 0 : index
    %0 = vector.load %arg2[%c0, %c0_0, %c0_1] : memref<8x32x5xf32, #tpu.memory_space<vmem>>, vector<1x32x5xf32>
    %1 = vector.shape_cast %0 : vector<1x32x5xf32> to vector<32x5xf32>
    %c0_2 = arith.constant 0 : index
    %c0_3 = arith.constant 0 : index
    %c0_4 = arith.constant 0 : index
    %2 = vector.load %arg1[%c0_2, %c0_3, %c0_4] : memref<9x5x16xf32, #tpu.memory_space<vmem>>, vector<1x5x16xf32>
    %3 = vector.shape_cast %2 : vector<1x5x16xf32> to vector<5x16xf32>
    %cst = arith.constant dense<0.000000e+00> : vector<32x16xf32>
    %4 = tpu.matmul %1, %3, %cst {dimension_numbers = #tpu.dot_dimension_numbers<[1], [0], [0], [1], [0, 0, 1, 1], [], []>} : vector<32x5xf32>, vector<5x16xf32>, vector<32x16xf32> -> vector<32x16xf32>
    %c0_5 = arith.constant 0 : index
    %c0_6 = arith.constant 0 : index
    %c0_7 = arith.constant 0 : index
    %5 = vector.load %arg4[%c0_5, %c0_6, %c0_7] : memref<8x32x1xf32, #tpu.memory_space<vmem>>, vector<1x32x1xf32>
    %6 = vector.shape_cast %5 : vector<1x32x1xf32> to vector<32x1xf32>
    %7 = vector.broadcast %6 : vector<32x1xf32> to vector<32x16xf32>
    %8 = arith.addf %4, %7 : vector<32x16xf32>
    %c0_8 = arith.constant 0 : index
    %c0_9 = arith.constant 0 : index
    %c0_10 = arith.constant 0 : index
    %9 = vector.load %arg8[%c0_8, %c0_9, %c0_10] : memref<8x32x16xf32, #tpu.memory_space<vmem>>, vector<1x32x16xf32>
    %10 = vector.shape_cast %9 : vector<1x32x16xf32> to vector<32x16xf32>
    %11 = vector.shape_cast %8 : vector<32x16xf32> to vector<1x32x16xf32>
    tpu.vector_store %arg8[%c0_8, %c0_9, %c0_10], %11 {strides = array<i32>} : memref<8x32x16xf32, #tpu.memory_space<vmem>>, vector<1x32x16xf32>,
    %c1 = arith.constant 1 : index
    %c0_11 = arith.constant 0 : index
    %c0_12 = arith.constant 0 : index
    %12 = vector.load %arg2[%c1, %c0_11, %c0_12] : memref<8x32x5xf32, #tpu.memory_space<vmem>>, vector<1x32x5xf32>
    %13 = vector.shape_cast %12 : vector<1x32x5xf32> to vector<32x5xf32>
    %c1_13 = arith.constant 1 : index
    %c0_14 = arith.constant 0 : index
    %c0_15 = arith.constant 0 : index
    %14 = vector.load %arg1[%c1_13, %c0_14, %c0_15] : memref<9x5x16xf32, #tpu.memory_space<vmem>>, vector<1x5x16xf32>
    %15 = vector.shape_cast %14 : vector<1x5x16xf32> to vector<5x16xf32>
    %cst_16 = arith.constant dense<0.000000e+00> : vector<32x16xf32>
    %16 = tpu.matmul %13, %15, %cst_16 {dimension_numbers = #tpu.dot_dimension_numbers<[1], [0], [0], [1], [0, 0, 1, 1], [], []>} : vector<32x5xf32>, vector<5x16xf32>, vector<32x16xf32> -> vector<32x16xf32>
    %c1_17 = arith.constant 1 : index
    %c0_18 = arith.constant 0 : index
    %c0_19 = arith.constant 0 : index
    %17 = vector.load %arg4[%c1_17, %c0_18, %c0_19] : memref<8x32x1xf32, #tpu.memory_space<vmem>>, vector<1x32x1xf32>
    %18 = vector.shape_cast %17 : vector<1x32x1xf32> to vector<32x1xf32>
    %19 = vector.broadcast %18 : vector<32x1xf32> to vector<32x16xf32>
    %20 = arith.addf %16, %19 : vector<32x16xf32>
    %c1_20 = arith.constant 1 : index
    %c0_21 = arith.constant 0 : index
    %c0_22 = arith.constant 0 : index
    %21 = vector.load %arg8[%c1_20, %c0_21, %c0_22] : memref<8x32x16xf32, #tpu.memory_space<vmem>>, vector<1x32x16xf32>
    %22 = vector.shape_cast %21 : vector<1x32x16xf32> to vector<32x16xf32>
    %23 = vector.shape_cast %20 : vector<32x16xf32> to vector<1x32x16xf32>
    tpu.vector_store %arg8[%c1_20, %c0_21, %c0_22], %23 {strides = array<i32>} : memref<8x32x16xf32, #tpu.memory_space<vmem>>, vector<1x32x16xf32>,
    %c2 = arith.constant 2 : index
    %c0_23 = arith.constant 0 : index
    %c0_24 = arith.constant 0 : index
    %24 = vector.load %arg2[%c2, %c0_23, %c0_24] : memref<8x32x5xf32, #tpu.memory_space<vmem>>, vector<1x32x5xf32>
    %25 = vector.shape_cast %24 : vector<1x32x5xf32> to vector<32x5xf32>
    %c2_25 = arith.constant 2 : index
    %c0_26 = arith.constant 0 : index
    %c0_27 = arith.constant 0 : index
    %26 = vector.load %arg1[%c2_25, %c0_26, %c0_27] : memref<9x5x16xf32, #tpu.memory_space<vmem>>, vector<1x5x16xf32>
    %27 = vector.shape_cast %26 : vector<1x5x16xf32> to vector<5x16xf32>
    %cst_28 = arith.constant dense<0.000000e+00> : vector<32x16xf32>
    %28 = tpu.matmul %25, %27, %cst_28 {dimension_numbers = #tpu.dot_dimension_numbers<[1], [0], [0], [1], [0, 0, 1, 1], [], []>} : vector<32x5xf32>, vector<5x16xf32>, vector<32x16xf32> -> vector<32x16xf32>
    %c2_29 = arith.constant 2 : index
    %c0_30 = arith.constant 0 : index
    %c0_31 = arith.constant 0 : index
    %29 = vector.load %arg4[%c2_29, %c0_30, %c0_31] : memref<8x32x1xf32, #tpu.memory_space<vmem>>, vector<1x32x1xf32>
    %30 = vector.shape_cast %29 : vector<1x32x1xf32> to vector<32x1xf32>
    %31 = vector.broadcast %30 : vector<32x1xf32> to vector<32x16xf32>
    %32 = arith.addf %28, %31 : vector<32x16xf32>
    %c2_32 = arith.constant 2 : index
    %c0_33 = arith.constant 0 : index
    %c0_34 = arith.constant 0 : index
    %33 = vector.load %arg8[%c2_32, %c0_33, %c0_34] : memref<8x32x16xf32, #tpu.memory_space<vmem>>, vector<1x32x16xf32>
    %34 = vector.shape_cast %33 : vector<1x32x16xf32> to vector<32x16xf32>
    %35 = vector.shape_cast %32 : vector<32x16xf32> to vector<1x32x16xf32>
    tpu.vector_store %arg8[%c2_32, %c0_33, %c0_34], %35 {strides = array<i32>} : memref<8x32x16xf32, #tpu.memory_space<vmem>>, vector<1x32x16xf32>,
    %c3 = arith.constant 3 : index
    %c0_35 = arith.constant 0 : index
    %c0_36 = arith.constant 0 : index
    %36 = vector.load %arg2[%c3, %c0_35, %c0_36] : memref<8x32x5xf32, #tpu.memory_space<vmem>>, vector<1x32x5xf32>
    %37 = vector.shape_cast %36 : vector<1x32x5xf32> to vector<32x5xf32>
    %c3_37 = arith.constant 3 : index
    %c0_38 = arith.constant 0 : index
    %c0_39 = arith.constant 0 : index
    %38 = vector.load %arg1[%c3_37, %c0_38, %c0_39] : memref<9x5x16xf32, #tpu.memory_space<vmem>>, vector<1x5x16xf32>
    %39 = vector.shape_cast %38 : vector<1x5x16xf32> to vector<5x16xf32>
    %cst_40 = arith.constant dense<0.000000e+00> : vector<32x16xf32>
    %40 = tpu.matmul %37, %39, %cst_40 {dimension_numbers = #tpu.dot_dimension_numbers<[1], [0], [0], [1], [0, 0, 1, 1], [], []>} : vector<32x5xf32>, vector<5x16xf32>, vector<32x16xf32> -> vector<32x16xf32>
    %c3_41 = arith.constant 3 : index
    %c0_42 = arith.constant 0 : index
    %c0_43 = arith.constant 0 : index
    %41 = vector.load %arg4[%c3_41, %c0_42, %c0_43] : memref<8x32x1xf32, #tpu.memory_space<vmem>>, vector<1x32x1xf32>
    %42 = vector.shape_cast %41 : vector<1x32x1xf32> to vector<32x1xf32>
    %43 = vector.broadcast %42 : vector<32x1xf32> to vector<32x16xf32>
    %44 = arith.addf %40, %43 : vector<32x16xf32>
    %c3_44 = arith.constant 3 : index
    %c0_45 = arith.constant 0 : index
    %c0_46 = arith.constant 0 : index
    %45 = vector.load %arg8[%c3_44, %c0_45, %c0_46] : memref<8x32x16xf32, #tpu.memory_space<vmem>>, vector<1x32x16xf32>
    %46 = vector.shape_cast %45 : vector<1x32x16xf32> to vector<32x16xf32>
    %47 = vector.shape_cast %44 : vector<32x16xf32> to vector<1x32x16xf32>
    tpu.vector_store %arg8[%c3_44, %c0_45, %c0_46], %47 {strides = array<i32>} : memref<8x32x16xf32, #tpu.memory_space<vmem>>, vector<1x32x16xf32>,
    %c4 = arith.constant 4 : index
    %c0_47 = arith.constant 0 : index
    %c0_48 = arith.constant 0 : index
    %48 = vector.load %arg2[%c4, %c0_47, %c0_48] : memref<8x32x5xf32, #tpu.memory_space<vmem>>, vector<1x32x5xf32>
    %49 = vector.shape_cast %48 : vector<1x32x5xf32> to vector<32x5xf32>
    %c4_49 = arith.constant 4 : index
    %c0_50 = arith.constant 0 : index
    %c0_51 = arith.constant 0 : index
    %50 = vector.load %arg1[%c4_49, %c0_50, %c0_51] : memref<9x5x16xf32, #tpu.memory_space<vmem>>, vector<1x5x16xf32>
    %51 = vector.shape_cast %50 : vector<1x5x16xf32> to vector<5x16xf32>
    %cst_52 = arith.constant dense<0.000000e+00> : vector<32x16xf32>
    %52 = tpu.matmul %49, %51, %cst_52 {dimension_numbers = #tpu.dot_dimension_numbers<[1], [0], [0], [1], [0, 0, 1, 1], [], []>} : vector<32x5xf32>, vector<5x16xf32>, vector<32x16xf32> -> vector<32x16xf32>
    %c4_53 = arith.constant 4 : index
    %c0_54 = arith.constant 0 : index
    %c0_55 = arith.constant 0 : index
    %53 = vector.load %arg4[%c4_53, %c0_54, %c0_55] : memref<8x32x1xf32, #tpu.memory_space<vmem>>, vector<1x32x1xf32>
    %54 = vector.shape_cast %53 : vector<1x32x1xf32> to vector<32x1xf32>
    %55 = vector.broadcast %54 : vector<32x1xf32> to vector<32x16xf32>
    %56 = arith.addf %52, %55 : vector<32x16xf32>
    %c4_56 = arith.constant 4 : index
    %c0_57 = arith.constant 0 : index
    %c0_58 = arith.constant 0 : index
    %57 = vector.load %arg8[%c4_56, %c0_57, %c0_58] : memref<8x32x16xf32, #tpu.memory_space<vmem>>, vector<1x32x16xf32>
    %58 = vector.shape_cast %57 : vector<1x32x16xf32> to vector<32x16xf32>
    %59 = vector.shape_cast %56 : vector<32x16xf32> to vector<1x32x16xf32>
    tpu.vector_store %arg8[%c4_56, %c0_57, %c0_58], %59 {strides = array<i32>} : memref<8x32x16xf32, #tpu.memory_space<vmem>>, vector<1x32x16xf32>,
    %c5 = arith.constant 5 : index
    %c0_59 = arith.constant 0 : index
    %c0_60 = arith.constant 0 : index
    %60 = vector.load %arg2[%c5, %c0_59, %c0_60] : memref<8x32x5xf32, #tpu.memory_space<vmem>>, vector<1x32x5xf32>
    %61 = vector.shape_cast %60 : vector<1x32x5xf32> to vector<32x5xf32>
    %c5_61 = arith.constant 5 : index
    %c0_62 = arith.constant 0 : index
    %c0_63 = arith.constant 0 : index
    %62 = vector.load %arg1[%c5_61, %c0_62, %c0_63] : memref<9x5x16xf32, #tpu.memory_space<vmem>>, vector<1x5x16xf32>
    %63 = vector.shape_cast %62 : vector<1x5x16xf32> to vector<5x16xf32>
    %cst_64 = arith.constant dense<0.000000e+00> : vector<32x16xf32>
    %64 = tpu.matmul %61, %63, %cst_64 {dimension_numbers = #tpu.dot_dimension_numbers<[1], [0], [0], [1], [0, 0, 1, 1], [], []>} : vector<32x5xf32>, vector<5x16xf32>, vector<32x16xf32> -> vector<32x16xf32>
    %c5_65 = arith.constant 5 : index
    %c0_66 = arith.constant 0 : index
    %c0_67 = arith.constant 0 : index
    %65 = vector.load %arg4[%c5_65, %c0_66, %c0_67] : memref<8x32x1xf32, #tpu.memory_space<vmem>>, vector<1x32x1xf32>
    %66 = vector.shape_cast %65 : vector<1x32x1xf32> to vector<32x1xf32>
    %67 = vector.broadcast %66 : vector<32x1xf32> to vector<32x16xf32>
    %68 = arith.addf %64, %67 : vector<32x16xf32>
    %c5_68 = arith.constant 5 : index
    %c0_69 = arith.constant 0 : index
    %c0_70 = arith.constant 0 : index
    %69 = vector.load %arg8[%c5_68, %c0_69, %c0_70] : memref<8x32x16xf32, #tpu.memory_space<vmem>>, vector<1x32x16xf32>
    %70 = vector.shape_cast %69 : vector<1x32x16xf32> to vector<32x16xf32>
    %71 = vector.shape_cast %68 : vector<32x16xf32> to vector<1x32x16xf32>
    tpu.vector_store %arg8[%c5_68, %c0_69, %c0_70], %71 {strides = array<i32>} : memref<8x32x16xf32, #tpu.memory_space<vmem>>, vector<1x32x16xf32>,
    %c6 = arith.constant 6 : index
    %c0_71 = arith.constant 0 : index
    %c0_72 = arith.constant 0 : index
    %72 = vector.load %arg2[%c6, %c0_71, %c0_72] : memref<8x32x5xf32, #tpu.memory_space<vmem>>, vector<1x32x5xf32>
    %73 = vector.shape_cast %72 : vector<1x32x5xf32> to vector<32x5xf32>
    %c6_73 = arith.constant 6 : index
    %c0_74 = arith.constant 0 : index
    %c0_75 = arith.constant 0 : index
    %74 = vector.load %arg1[%c6_73, %c0_74, %c0_75] : memref<9x5x16xf32, #tpu.memory_space<vmem>>, vector<1x5x16xf32>
    %75 = vector.shape_cast %74 : vector<1x5x16xf32> to vector<5x16xf32>
    %cst_76 = arith.constant dense<0.000000e+00> : vector<32x16xf32>
    %76 = tpu.matmul %73, %75, %cst_76 {dimension_numbers = #tpu.dot_dimension_numbers<[1], [0], [0], [1], [0, 0, 1, 1], [], []>} : vector<32x5xf32>, vector<5x16xf32>, vector<32x16xf32> -> vector<32x16xf32>
    %c6_77 = arith.constant 6 : index
    %c0_78 = arith.constant 0 : index
    %c0_79 = arith.constant 0 : index
    %77 = vector.load %arg4[%c6_77, %c0_78, %c0_79] : memref<8x32x1xf32, #tpu.memory_space<vmem>>, vector<1x32x1xf32>
    %78 = vector.shape_cast %77 : vector<1x32x1xf32> to vector<32x1xf32>
    %79 = vector.broadcast %78 : vector<32x1xf32> to vector<32x16xf32>
    %80 = arith.addf %76, %79 : vector<32x16xf32>
    %c6_80 = arith.constant 6 : index
    %c0_81 = arith.constant 0 : index
    %c0_82 = arith.constant 0 : index
    %81 = vector.load %arg8[%c6_80, %c0_81, %c0_82] : memref<8x32x16xf32, #tpu.memory_space<vmem>>, vector<1x32x16xf32>
    %82 = vector.shape_cast %81 : vector<1x32x16xf32> to vector<32x16xf32>
    %83 = vector.shape_cast %80 : vector<32x16xf32> to vector<1x32x16xf32>
    tpu.vector_store %arg8[%c6_80, %c0_81, %c0_82], %83 {strides = array<i32>} : memref<8x32x16xf32, #tpu.memory_space<vmem>>, vector<1x32x16xf32>,
    %c7 = arith.constant 7 : index
    %c0_83 = arith.constant 0 : index
    %c0_84 = arith.constant 0 : index
    %84 = vector.load %arg2[%c7, %c0_83, %c0_84] : memref<8x32x5xf32, #tpu.memory_space<vmem>>, vector<1x32x5xf32>
    %85 = vector.shape_cast %84 : vector<1x32x5xf32> to vector<32x5xf32>
    %c7_85 = arith.constant 7 : index
    %c0_86 = arith.constant 0 : index
    %c0_87 = arith.constant 0 : index
    %86 = vector.load %arg1[%c7_85, %c0_86, %c0_87] : memref<9x5x16xf32, #tpu.memory_space<vmem>>, vector<1x5x16xf32>
    %87 = vector.shape_cast %86 : vector<1x5x16xf32> to vector<5x16xf32>
    %cst_88 = arith.constant dense<0.000000e+00> : vector<32x16xf32>
    %88 = tpu.matmul %85, %87, %cst_88 {dimension_numbers = #tpu.dot_dimension_numbers<[1], [0], [0], [1], [0, 0, 1, 1], [], []>} : vector<32x5xf32>, vector<5x16xf32>, vector<32x16xf32> -> vector<32x16xf32>
    %c7_89 = arith.constant 7 : index
    %c0_90 = arith.constant 0 : index
    %c0_91 = arith.constant 0 : index
    %89 = vector.load %arg4[%c7_89, %c0_90, %c0_91] : memref<8x32x1xf32, #tpu.memory_space<vmem>>, vector<1x32x1xf32>
    %90 = vector.shape_cast %89 : vector<1x32x1xf32> to vector<32x1xf32>
    %91 = vector.broadcast %90 : vector<32x1xf32> to vector<32x16xf32>
    %92 = arith.addf %88, %91 : vector<32x16xf32>
    %c7_92 = arith.constant 7 : index
    %c0_93 = arith.constant 0 : index
    %c0_94 = arith.constant 0 : index
    %93 = vector.load %arg8[%c7_92, %c0_93, %c0_94] : memref<8x32x16xf32, #tpu.memory_space<vmem>>, vector<1x32x16xf32>
    %94 = vector.shape_cast %93 : vector<1x32x16xf32> to vector<32x16xf32>
    %95 = vector.shape_cast %92 : vector<32x16xf32> to vector<1x32x16xf32>
    tpu.vector_store %arg8[%c7_92, %c0_93, %c0_94], %95 {strides = array<i32>} : memref<8x32x16xf32, #tpu.memory_space<vmem>>, vector<1x32x16xf32>,
    %cst_95 = arith.constant 0.000000e+00 : f32
    %96 = vector.broadcast %cst_95 : f32 to vector<5x16xf32>
    %c0_96 = arith.constant 0 : index
    %c0_97 = arith.constant 0 : index
    %c0_98 = arith.constant 0 : index
    %97 = vector.load %arg8[%c0_96, %c0_97, %c0_98] : memref<8x32x16xf32, #tpu.memory_space<vmem>>, vector<1x32x16xf32>
    %98 = vector.shape_cast %97 : vector<1x32x16xf32> to vector<32x16xf32>
    %c0_99 = arith.constant 0 : index
    %c0_100 = arith.constant 0 : index
    %c0_101 = arith.constant 0 : index
    %99 = vector.load %arg3[%c0_99, %c0_100, %c0_101] : memref<8x32x5xf32, #tpu.memory_space<vmem>>, vector<1x32x5xf32>
    %100 = vector.shape_cast %99 : vector<1x32x5xf32> to vector<32x5xf32>
    %cst_102 = arith.constant dense<0.000000e+00> : vector<32x16xf32>
    %101 = tpu.matmul %100, %96, %cst_102 {dimension_numbers = #tpu.dot_dimension_numbers<[1], [0], [0], [1], [0, 0, 1, 1], [], []>} : vector<32x5xf32>, vector<5x16xf32>, vector<32x16xf32> -> vector<32x16xf32>
    %102 = arith.addf %98, %101 : vector<32x16xf32>
    %cst_103 = arith.constant 0.000000e+00 : f32
    %103 = vector.broadcast %cst_103 : f32 to vector<32x16xf32>
    %104 = arith.maximumf %102, %103 : vector<32x16xf32>
    %c0_104 = arith.constant 0 : index
    %c0_105 = arith.constant 0 : index
    %c0_106 = arith.constant 0 : index
    %105 = vector.load %arg5[%c0_104, %c0_105, %c0_106] : memref<8x5x32xf32, #tpu.memory_space<vmem>>, vector<1x5x32xf32>
    %106 = vector.shape_cast %105 : vector<1x5x32xf32> to vector<5x32xf32>
    %cst_107 = arith.constant dense<0.000000e+00> : vector<5x16xf32>
    %107 = tpu.matmul %106, %104, %cst_107 {dimension_numbers = #tpu.dot_dimension_numbers<[1], [0], [0], [1], [0, 0, 1, 1], [], []>} : vector<5x32xf32>, vector<32x16xf32>, vector<5x16xf32> -> vector<5x16xf32>
    %c0_108 = arith.constant 0 : index
    %c0_109 = arith.constant 0 : index
    %c0_110 = arith.constant 0 : index
    %108 = vector.load %arg6[%c0_108, %c0_109, %c0_110] : memref<8x5x1xf32, #tpu.memory_space<vmem>>, vector<1x5x1xf32>
    %109 = vector.shape_cast %108 : vector<1x5x1xf32> to vector<5x1xf32>
    %110 = vector.broadcast %109 : vector<5x1xf32> to vector<5x16xf32>
    %111 = arith.addf %107, %110 : vector<5x16xf32>
    %c0_111 = arith.constant 0 : index
    %c0_112 = arith.constant 0 : index
    %c0_113 = arith.constant 0 : index
    %112 = vector.load %arg7[%c0_111, %c0_112, %c0_113] : memref<8x5x16xf32, #tpu.memory_space<vmem>>, vector<1x5x16xf32>
    %113 = vector.shape_cast %112 : vector<1x5x16xf32> to vector<5x16xf32>
    %114 = vector.shape_cast %111 : vector<5x16xf32> to vector<1x5x16xf32>
    tpu.vector_store %arg7[%c0_111, %c0_112, %c0_113], %114 {strides = array<i32>} : memref<8x5x16xf32, #tpu.memory_space<vmem>>, vector<1x5x16xf32>,
    %c1_114 = arith.constant 1 : index
    %c0_115 = arith.constant 0 : index
    %c0_116 = arith.constant 0 : index
    %115 = vector.load %arg8[%c1_114, %c0_115, %c0_116] : memref<8x32x16xf32, #tpu.memory_space<vmem>>, vector<1x32x16xf32>
    %116 = vector.shape_cast %115 : vector<1x32x16xf32> to vector<32x16xf32>
    %c1_117 = arith.constant 1 : index
    %c0_118 = arith.constant 0 : index
    %c0_119 = arith.constant 0 : index
    %117 = vector.load %arg3[%c1_117, %c0_118, %c0_119] : memref<8x32x5xf32, #tpu.memory_space<vmem>>, vector<1x32x5xf32>
    %118 = vector.shape_cast %117 : vector<1x32x5xf32> to vector<32x5xf32>
    %cst_120 = arith.constant dense<0.000000e+00> : vector<32x16xf32>
    %119 = tpu.matmul %118, %111, %cst_120 {dimension_numbers = #tpu.dot_dimension_numbers<[1], [0], [0], [1], [0, 0, 1, 1], [], []>} : vector<32x5xf32>, vector<5x16xf32>, vector<32x16xf32> -> vector<32x16xf32>
    %120 = arith.addf %116, %119 : vector<32x16xf32>
    %cst_121 = arith.constant 0.000000e+00 : f32
    %121 = vector.broadcast %cst_121 : f32 to vector<32x16xf32>
    %122 = arith.maximumf %120, %121 : vector<32x16xf32>
    %c1_122 = arith.constant 1 : index
    %c0_123 = arith.constant 0 : index
    %c0_124 = arith.constant 0 : index
    %123 = vector.load %arg5[%c1_122, %c0_123, %c0_124] : memref<8x5x32xf32, #tpu.memory_space<vmem>>, vector<1x5x32xf32>
    %124 = vector.shape_cast %123 : vector<1x5x32xf32> to vector<5x32xf32>
    %cst_125 = arith.constant dense<0.000000e+00> : vector<5x16xf32>
    %125 = tpu.matmul %124, %122, %cst_125 {dimension_numbers = #tpu.dot_dimension_numbers<[1], [0], [0], [1], [0, 0, 1, 1], [], []>} : vector<5x32xf32>, vector<32x16xf32>, vector<5x16xf32> -> vector<5x16xf32>
    %c1_126 = arith.constant 1 : index
    %c0_127 = arith.constant 0 : index
    %c0_128 = arith.constant 0 : index
    %126 = vector.load %arg6[%c1_126, %c0_127, %c0_128] : memref<8x5x1xf32, #tpu.memory_space<vmem>>, vector<1x5x1xf32>
    %127 = vector.shape_cast %126 : vector<1x5x1xf32> to vector<5x1xf32>
    %128 = vector.broadcast %127 : vector<5x1xf32> to vector<5x16xf32>
    %129 = arith.addf %125, %128 : vector<5x16xf32>
    %c1_129 = arith.constant 1 : index
    %c0_130 = arith.constant 0 : index
    %c0_131 = arith.constant 0 : index
    %130 = vector.load %arg7[%c1_129, %c0_130, %c0_131] : memref<8x5x16xf32, #tpu.memory_space<vmem>>, vector<1x5x16xf32>
    %131 = vector.shape_cast %130 : vector<1x5x16xf32> to vector<5x16xf32>
    %132 = vector.shape_cast %129 : vector<5x16xf32> to vector<1x5x16xf32>
    tpu.vector_store %arg7[%c1_129, %c0_130, %c0_131], %132 {strides = array<i32>} : memref<8x5x16xf32, #tpu.memory_space<vmem>>, vector<1x5x16xf32>,
    %c2_132 = arith.constant 2 : index
    %c0_133 = arith.constant 0 : index
    %c0_134 = arith.constant 0 : index
    %133 = vector.load %arg8[%c2_132, %c0_133, %c0_134] : memref<8x32x16xf32, #tpu.memory_space<vmem>>, vector<1x32x16xf32>
    %134 = vector.shape_cast %133 : vector<1x32x16xf32> to vector<32x16xf32>
    %c2_135 = arith.constant 2 : index
    %c0_136 = arith.constant 0 : index
    %c0_137 = arith.constant 0 : index
    %135 = vector.load %arg3[%c2_135, %c0_136, %c0_137] : memref<8x32x5xf32, #tpu.memory_space<vmem>>, vector<1x32x5xf32>
    %136 = vector.shape_cast %135 : vector<1x32x5xf32> to vector<32x5xf32>
    %cst_138 = arith.constant dense<0.000000e+00> : vector<32x16xf32>
    %137 = tpu.matmul %136, %129, %cst_138 {dimension_numbers = #tpu.dot_dimension_numbers<[1], [0], [0], [1], [0, 0, 1, 1], [], []>} : vector<32x5xf32>, vector<5x16xf32>, vector<32x16xf32> -> vector<32x16xf32>
    %138 = arith.addf %134, %137 : vector<32x16xf32>
    %cst_139 = arith.constant 0.000000e+00 : f32
    %139 = vector.broadcast %cst_139 : f32 to vector<32x16xf32>
    %140 = arith.maximumf %138, %139 : vector<32x16xf32>
    %c2_140 = arith.constant 2 : index
    %c0_141 = arith.constant 0 : index
    %c0_142 = arith.constant 0 : index
    %141 = vector.load %arg5[%c2_140, %c0_141, %c0_142] : memref<8x5x32xf32, #tpu.memory_space<vmem>>, vector<1x5x32xf32>
    %142 = vector.shape_cast %141 : vector<1x5x32xf32> to vector<5x32xf32>
    %cst_143 = arith.constant dense<0.000000e+00> : vector<5x16xf32>
    %143 = tpu.matmul %142, %140, %cst_143 {dimension_numbers = #tpu.dot_dimension_numbers<[1], [0], [0], [1], [0, 0, 1, 1], [], []>} : vector<5x32xf32>, vector<32x16xf32>, vector<5x16xf32> -> vector<5x16xf32>
    %c2_144 = arith.constant 2 : index
    %c0_145 = arith.constant 0 : index
    %c0_146 = arith.constant 0 : index
    %144 = vector.load %arg6[%c2_144, %c0_145, %c0_146] : memref<8x5x1xf32, #tpu.memory_space<vmem>>, vector<1x5x1xf32>
    %145 = vector.shape_cast %144 : vector<1x5x1xf32> to vector<5x1xf32>
    %146 = vector.broadcast %145 : vector<5x1xf32> to vector<5x16xf32>
    %147 = arith.addf %143, %146 : vector<5x16xf32>
    %c2_147 = arith.constant 2 : index
    %c0_148 = arith.constant 0 : index
    %c0_149 = arith.constant 0 : index
    %148 = vector.load %arg7[%c2_147, %c0_148, %c0_149] : memref<8x5x16xf32, #tpu.memory_space<vmem>>, vector<1x5x16xf32>
    %149 = vector.shape_cast %148 : vector<1x5x16xf32> to vector<5x16xf32>
    %150 = vector.shape_cast %147 : vector<5x16xf32> to vector<1x5x16xf32>
    tpu.vector_store %arg7[%c2_147, %c0_148, %c0_149], %150 {strides = array<i32>} : memref<8x5x16xf32, #tpu.memory_space<vmem>>, vector<1x5x16xf32>,
    %c3_150 = arith.constant 3 : index
    %c0_151 = arith.constant 0 : index
    %c0_152 = arith.constant 0 : index
    %151 = vector.load %arg8[%c3_150, %c0_151, %c0_152] : memref<8x32x16xf32, #tpu.memory_space<vmem>>, vector<1x32x16xf32>
    %152 = vector.shape_cast %151 : vector<1x32x16xf32> to vector<32x16xf32>
    %c3_153 = arith.constant 3 : index
    %c0_154 = arith.constant 0 : index
    %c0_155 = arith.constant 0 : index
    %153 = vector.load %arg3[%c3_153, %c0_154, %c0_155] : memref<8x32x5xf32, #tpu.memory_space<vmem>>, vector<1x32x5xf32>
    %154 = vector.shape_cast %153 : vector<1x32x5xf32> to vector<32x5xf32>
    %cst_156 = arith.constant dense<0.000000e+00> : vector<32x16xf32>
    %155 = tpu.matmul %154, %147, %cst_156 {dimension_numbers = #tpu.dot_dimension_numbers<[1], [0], [0], [1], [0, 0, 1, 1], [], []>} : vector<32x5xf32>, vector<5x16xf32>, vector<32x16xf32> -> vector<32x16xf32>
    %156 = arith.addf %152, %155 : vector<32x16xf32>
    %cst_157 = arith.constant 0.000000e+00 : f32
    %157 = vector.broadcast %cst_157 : f32 to vector<32x16xf32>
    %158 = arith.maximumf %156, %157 : vector<32x16xf32>
    %c3_158 = arith.constant 3 : index
    %c0_159 = arith.constant 0 : index
    %c0_160 = arith.constant 0 : index
    %159 = vector.load %arg5[%c3_158, %c0_159, %c0_160] : memref<8x5x32xf32, #tpu.memory_space<vmem>>, vector<1x5x32xf32>
    %160 = vector.shape_cast %159 : vector<1x5x32xf32> to vector<5x32xf32>
    %cst_161 = arith.constant dense<0.000000e+00> : vector<5x16xf32>
    %161 = tpu.matmul %160, %158, %cst_161 {dimension_numbers = #tpu.dot_dimension_numbers<[1], [0], [0], [1], [0, 0, 1, 1], [], []>} : vector<5x32xf32>, vector<32x16xf32>, vector<5x16xf32> -> vector<5x16xf32>
    %c3_162 = arith.constant 3 : index
    %c0_163 = arith.constant 0 : index
    %c0_164 = arith.constant 0 : index
    %162 = vector.load %arg6[%c3_162, %c0_163, %c0_164] : memref<8x5x1xf32, #tpu.memory_space<vmem>>, vector<1x5x1xf32>
    %163 = vector.shape_cast %162 : vector<1x5x1xf32> to vector<5x1xf32>
    %164 = vector.broadcast %163 : vector<5x1xf32> to vector<5x16xf32>
    %165 = arith.addf %161, %164 : vector<5x16xf32>
    %c3_165 = arith.constant 3 : index
    %c0_166 = arith.constant 0 : index
    %c0_167 = arith.constant 0 : index
    %166 = vector.load %arg7[%c3_165, %c0_166, %c0_167] : memref<8x5x16xf32, #tpu.memory_space<vmem>>, vector<1x5x16xf32>
    %167 = vector.shape_cast %166 : vector<1x5x16xf32> to vector<5x16xf32>
    %168 = vector.shape_cast %165 : vector<5x16xf32> to vector<1x5x16xf32>
    tpu.vector_store %arg7[%c3_165, %c0_166, %c0_167], %168 {strides = array<i32>} : memref<8x5x16xf32, #tpu.memory_space<vmem>>, vector<1x5x16xf32>,
    %c4_168 = arith.constant 4 : index
    %c0_169 = arith.constant 0 : index
    %c0_170 = arith.constant 0 : index
    %169 = vector.load %arg8[%c4_168, %c0_169, %c0_170] : memref<8x32x16xf32, #tpu.memory_space<vmem>>, vector<1x32x16xf32>
    %170 = vector.shape_cast %169 : vector<1x32x16xf32> to vector<32x16xf32>
    %c4_171 = arith.constant 4 : index
    %c0_172 = arith.constant 0 : index
    %c0_173 = arith.constant 0 : index
    %171 = vector.load %arg3[%c4_171, %c0_172, %c0_173] : memref<8x32x5xf32, #tpu.memory_space<vmem>>, vector<1x32x5xf32>
    %172 = vector.shape_cast %171 : vector<1x32x5xf32> to vector<32x5xf32>
    %cst_174 = arith.constant dense<0.000000e+00> : vector<32x16xf32>
    %173 = tpu.matmul %172, %165, %cst_174 {dimension_numbers = #tpu.dot_dimension_numbers<[1], [0], [0], [1], [0, 0, 1, 1], [], []>} : vector<32x5xf32>, vector<5x16xf32>, vector<32x16xf32> -> vector<32x16xf32>
    %174 = arith.addf %170, %173 : vector<32x16xf32>
    %cst_175 = arith.constant 0.000000e+00 : f32
    %175 = vector.broadcast %cst_175 : f32 to vector<32x16xf32>
    %176 = arith.maximumf %174, %175 : vector<32x16xf32>
    %c4_176 = arith.constant 4 : index
    %c0_177 = arith.constant 0 : index
    %c0_178 = arith.constant 0 : index
    %177 = vector.load %arg5[%c4_176, %c0_177, %c0_178] : memref<8x5x32xf32, #tpu.memory_space<vmem>>, vector<1x5x32xf32>
    %178 = vector.shape_cast %177 : vector<1x5x32xf32> to vector<5x32xf32>
    %cst_179 = arith.constant dense<0.000000e+00> : vector<5x16xf32>
    %179 = tpu.matmul %178, %176, %cst_179 {dimension_numbers = #tpu.dot_dimension_numbers<[1], [0], [0], [1], [0, 0, 1, 1], [], []>} : vector<5x32xf32>, vector<32x16xf32>, vector<5x16xf32> -> vector<5x16xf32>
    %c4_180 = arith.constant 4 : index
    %c0_181 = arith.constant 0 : index
    %c0_182 = arith.constant 0 : index
    %180 = vector.load %arg6[%c4_180, %c0_181, %c0_182] : memref<8x5x1xf32, #tpu.memory_space<vmem>>, vector<1x5x1xf32>
    %181 = vector.shape_cast %180 : vector<1x5x1xf32> to vector<5x1xf32>
    %182 = vector.broadcast %181 : vector<5x1xf32> to vector<5x16xf32>
    %183 = arith.addf %179, %182 : vector<5x16xf32>
    %c4_183 = arith.constant 4 : index
    %c0_184 = arith.constant 0 : index
    %c0_185 = arith.constant 0 : index
    %184 = vector.load %arg7[%c4_183, %c0_184, %c0_185] : memref<8x5x16xf32, #tpu.memory_space<vmem>>, vector<1x5x16xf32>
    %185 = vector.shape_cast %184 : vector<1x5x16xf32> to vector<5x16xf32>
    %186 = vector.shape_cast %183 : vector<5x16xf32> to vector<1x5x16xf32>
    tpu.vector_store %arg7[%c4_183, %c0_184, %c0_185], %186 {strides = array<i32>} : memref<8x5x16xf32, #tpu.memory_space<vmem>>, vector<1x5x16xf32>,
    %c5_186 = arith.constant 5 : index
    %c0_187 = arith.constant 0 : index
    %c0_188 = arith.constant 0 : index
    %187 = vector.load %arg8[%c5_186, %c0_187, %c0_188] : memref<8x32x16xf32, #tpu.memory_space<vmem>>, vector<1x32x16xf32>
    %188 = vector.shape_cast %187 : vector<1x32x16xf32> to vector<32x16xf32>
    %c5_189 = arith.constant 5 : index
    %c0_190 = arith.constant 0 : index
    %c0_191 = arith.constant 0 : index
    %189 = vector.load %arg3[%c5_189, %c0_190, %c0_191] : memref<8x32x5xf32, #tpu.memory_space<vmem>>, vector<1x32x5xf32>
    %190 = vector.shape_cast %189 : vector<1x32x5xf32> to vector<32x5xf32>
    %cst_192 = arith.constant dense<0.000000e+00> : vector<32x16xf32>
    %191 = tpu.matmul %190, %183, %cst_192 {dimension_numbers = #tpu.dot_dimension_numbers<[1], [0], [0], [1], [0, 0, 1, 1], [], []>} : vector<32x5xf32>, vector<5x16xf32>, vector<32x16xf32> -> vector<32x16xf32>
    %192 = arith.addf %188, %191 : vector<32x16xf32>
    %cst_193 = arith.constant 0.000000e+00 : f32
    %193 = vector.broadcast %cst_193 : f32 to vector<32x16xf32>
    %194 = arith.maximumf %192, %193 : vector<32x16xf32>
    %c5_194 = arith.constant 5 : index
    %c0_195 = arith.constant 0 : index
    %c0_196 = arith.constant 0 : index
    %195 = vector.load %arg5[%c5_194, %c0_195, %c0_196] : memref<8x5x32xf32, #tpu.memory_space<vmem>>, vector<1x5x32xf32>
    %196 = vector.shape_cast %195 : vector<1x5x32xf32> to vector<5x32xf32>
    %cst_197 = arith.constant dense<0.000000e+00> : vector<5x16xf32>
    %197 = tpu.matmul %196, %194, %cst_197 {dimension_numbers = #tpu.dot_dimension_numbers<[1], [0], [0], [1], [0, 0, 1, 1], [], []>} : vector<5x32xf32>, vector<32x16xf32>, vector<5x16xf32> -> vector<5x16xf32>
    %c5_198 = arith.constant 5 : index
    %c0_199 = arith.constant 0 : index
    %c0_200 = arith.constant 0 : index
    %198 = vector.load %arg6[%c5_198, %c0_199, %c0_200] : memref<8x5x1xf32, #tpu.memory_space<vmem>>, vector<1x5x1xf32>
    %199 = vector.shape_cast %198 : vector<1x5x1xf32> to vector<5x1xf32>
    %200 = vector.broadcast %199 : vector<5x1xf32> to vector<5x16xf32>
    %201 = arith.addf %197, %200 : vector<5x16xf32>
    %c5_201 = arith.constant 5 : index
    %c0_202 = arith.constant 0 : index
    %c0_203 = arith.constant 0 : index
    %202 = vector.load %arg7[%c5_201, %c0_202, %c0_203] : memref<8x5x16xf32, #tpu.memory_space<vmem>>, vector<1x5x16xf32>
    %203 = vector.shape_cast %202 : vector<1x5x16xf32> to vector<5x16xf32>
    %204 = vector.shape_cast %201 : vector<5x16xf32> to vector<1x5x16xf32>
    tpu.vector_store %arg7[%c5_201, %c0_202, %c0_203], %204 {strides = array<i32>} : memref<8x5x16xf32, #tpu.memory_space<vmem>>, vector<1x5x16xf32>,
    %c6_204 = arith.constant 6 : index
    %c0_205 = arith.constant 0 : index
    %c0_206 = arith.constant 0 : index
    %205 = vector.load %arg8[%c6_204, %c0_205, %c0_206] : memref<8x32x16xf32, #tpu.memory_space<vmem>>, vector<1x32x16xf32>
    %206 = vector.shape_cast %205 : vector<1x32x16xf32> to vector<32x16xf32>
    %c6_207 = arith.constant 6 : index
    %c0_208 = arith.constant 0 : index
    %c0_209 = arith.constant 0 : index
    %207 = vector.load %arg3[%c6_207, %c0_208, %c0_209] : memref<8x32x5xf32, #tpu.memory_space<vmem>>, vector<1x32x5xf32>
    %208 = vector.shape_cast %207 : vector<1x32x5xf32> to vector<32x5xf32>
    %cst_210 = arith.constant dense<0.000000e+00> : vector<32x16xf32>
    %209 = tpu.matmul %208, %201, %cst_210 {dimension_numbers = #tpu.dot_dimension_numbers<[1], [0], [0], [1], [0, 0, 1, 1], [], []>} : vector<32x5xf32>, vector<5x16xf32>, vector<32x16xf32> -> vector<32x16xf32>
    %210 = arith.addf %206, %209 : vector<32x16xf32>
    %cst_211 = arith.constant 0.000000e+00 : f32
    %211 = vector.broadcast %cst_211 : f32 to vector<32x16xf32>
    %212 = arith.maximumf %210, %211 : vector<32x16xf32>
    %c6_212 = arith.constant 6 : index
    %c0_213 = arith.constant 0 : index
    %c0_214 = arith.constant 0 : index
    %213 = vector.load %arg5[%c6_212, %c0_213, %c0_214] : memref<8x5x32xf32, #tpu.memory_space<vmem>>, vector<1x5x32xf32>
    %214 = vector.shape_cast %213 : vector<1x5x32xf32> to vector<5x32xf32>
    %cst_215 = arith.constant dense<0.000000e+00> : vector<5x16xf32>
    %215 = tpu.matmul %214, %212, %cst_215 {dimension_numbers = #tpu.dot_dimension_numbers<[1], [0], [0], [1], [0, 0, 1, 1], [], []>} : vector<5x32xf32>, vector<32x16xf32>, vector<5x16xf32> -> vector<5x16xf32>
    %c6_216 = arith.constant 6 : index
    %c0_217 = arith.constant 0 : index
    %c0_218 = arith.constant 0 : index
    %216 = vector.load %arg6[%c6_216, %c0_217, %c0_218] : memref<8x5x1xf32, #tpu.memory_space<vmem>>, vector<1x5x1xf32>
    %217 = vector.shape_cast %216 : vector<1x5x1xf32> to vector<5x1xf32>
    %218 = vector.broadcast %217 : vector<5x1xf32> to vector<5x16xf32>
    %219 = arith.addf %215, %218 : vector<5x16xf32>
    %c6_219 = arith.constant 6 : index
    %c0_220 = arith.constant 0 : index
    %c0_221 = arith.constant 0 : index
    %220 = vector.load %arg7[%c6_219, %c0_220, %c0_221] : memref<8x5x16xf32, #tpu.memory_space<vmem>>, vector<1x5x16xf32>
    %221 = vector.shape_cast %220 : vector<1x5x16xf32> to vector<5x16xf32>
    %222 = vector.shape_cast %219 : vector<5x16xf32> to vector<1x5x16xf32>
    tpu.vector_store %arg7[%c6_219, %c0_220, %c0_221], %222 {strides = array<i32>} : memref<8x5x16xf32, #tpu.memory_space<vmem>>, vector<1x5x16xf32>,
    %c7_222 = arith.constant 7 : index
    %c0_223 = arith.constant 0 : index
    %c0_224 = arith.constant 0 : index
    %223 = vector.load %arg8[%c7_222, %c0_223, %c0_224] : memref<8x32x16xf32, #tpu.memory_space<vmem>>, vector<1x32x16xf32>
    %224 = vector.shape_cast %223 : vector<1x32x16xf32> to vector<32x16xf32>
    %c7_225 = arith.constant 7 : index
    %c0_226 = arith.constant 0 : index
    %c0_227 = arith.constant 0 : index
    %225 = vector.load %arg3[%c7_225, %c0_226, %c0_227] : memref<8x32x5xf32, #tpu.memory_space<vmem>>, vector<1x32x5xf32>
    %226 = vector.shape_cast %225 : vector<1x32x5xf32> to vector<32x5xf32>
    %cst_228 = arith.constant dense<0.000000e+00> : vector<32x16xf32>
    %227 = tpu.matmul %226, %219, %cst_228 {dimension_numbers = #tpu.dot_dimension_numbers<[1], [0], [0], [1], [0, 0, 1, 1], [], []>} : vector<32x5xf32>, vector<5x16xf32>, vector<32x16xf32> -> vector<32x16xf32>
    %228 = arith.addf %224, %227 : vector<32x16xf32>
    %cst_229 = arith.constant 0.000000e+00 : f32
    %229 = vector.broadcast %cst_229 : f32 to vector<32x16xf32>
    %230 = arith.maximumf %228, %229 : vector<32x16xf32>
    %c7_230 = arith.constant 7 : index
    %c0_231 = arith.constant 0 : index
    %c0_232 = arith.constant 0 : index
    %231 = vector.load %arg5[%c7_230, %c0_231, %c0_232] : memref<8x5x32xf32, #tpu.memory_space<vmem>>, vector<1x5x32xf32>
    %232 = vector.shape_cast %231 : vector<1x5x32xf32> to vector<5x32xf32>
    %cst_233 = arith.constant dense<0.000000e+00> : vector<5x16xf32>
    %233 = tpu.matmul %232, %230, %cst_233 {dimension_numbers = #tpu.dot_dimension_numbers<[1], [0], [0], [1], [0, 0, 1, 1], [], []>} : vector<5x32xf32>, vector<32x16xf32>, vector<5x16xf32> -> vector<5x16xf32>
    %c7_234 = arith.constant 7 : index
    %c0_235 = arith.constant 0 : index
    %c0_236 = arith.constant 0 : index
    %234 = vector.load %arg6[%c7_234, %c0_235, %c0_236] : memref<8x5x1xf32, #tpu.memory_space<vmem>>, vector<1x5x1xf32>
    %235 = vector.shape_cast %234 : vector<1x5x1xf32> to vector<5x1xf32>
    %236 = vector.broadcast %235 : vector<5x1xf32> to vector<5x16xf32>
    %237 = arith.addf %233, %236 : vector<5x16xf32>
    %c7_237 = arith.constant 7 : index
    %c0_238 = arith.constant 0 : index
    %c0_239 = arith.constant 0 : index
    %238 = vector.load %arg7[%c7_237, %c0_238, %c0_239] : memref<8x5x16xf32, #tpu.memory_space<vmem>>, vector<1x5x16xf32>
    %239 = vector.shape_cast %238 : vector<1x5x16xf32> to vector<5x16xf32>
    %240 = vector.shape_cast %237 : vector<5x16xf32> to vector<1x5x16xf32>
    tpu.vector_store %arg7[%c7_237, %c0_238, %c0_239], %240 {strides = array<i32>} : memref<8x5x16xf32, #tpu.memory_space<vmem>>, vector<1x5x16xf32>,
    return
  }
  func.func @transform_0(%arg0: i32) -> (i32, i32, i32) {
    %c0_i32 = arith.constant 0 : i32
    %c0_i32_0 = arith.constant 0 : i32
    %c0_i32_1 = arith.constant 0 : i32
    return %c0_i32, %c0_i32_0, %arg0 : i32, i32, i32
  }
  func.func @transform_1(%arg0: i32) -> (i32, i32, i32) {
    %c0_i32 = arith.constant 0 : i32
    %c0_i32_0 = arith.constant 0 : i32
    %c0_i32_1 = arith.constant 0 : i32
    %c0_i32_2 = arith.constant 0 : i32
    return %c0_i32, %c0_i32_0, %c0_i32_1 : i32, i32, i32
  }
  func.func @transform_2(%arg0: i32) -> (i32, i32, i32) {
    %c0_i32 = arith.constant 0 : i32
    %c0_i32_0 = arith.constant 0 : i32
    %c0_i32_1 = arith.constant 0 : i32
    %c0_i32_2 = arith.constant 0 : i32
    return %c0_i32, %c0_i32_0, %c0_i32_1 : i32, i32, i32
  }
  func.func @transform_3(%arg0: i32) -> (i32, i32, i32) {
    %c0_i32 = arith.constant 0 : i32
    %c0_i32_0 = arith.constant 0 : i32
    %c0_i32_1 = arith.constant 0 : i32
    %c0_i32_2 = arith.constant 0 : i32
    return %c0_i32, %c0_i32_0, %c0_i32_1 : i32, i32, i32
  }
  func.func @transform_4(%arg0: i32) -> (i32, i32, i32) {
    %c0_i32 = arith.constant 0 : i32
    %c0_i32_0 = arith.constant 0 : i32
    %c0_i32_1 = arith.constant 0 : i32
    %c0_i32_2 = arith.constant 0 : i32
    return %c0_i32, %c0_i32_0, %c0_i32_1 : i32, i32, i32
  }
  func.func @transform_5(%arg0: i32) -> (i32, i32, i32) {
    %c0_i32 = arith.constant 0 : i32
    %c0_i32_0 = arith.constant 0 : i32
    %c0_i32_1 = arith.constant 0 : i32
    %c0_i32_2 = arith.constant 0 : i32
    return %c0_i32, %c0_i32_0, %c0_i32_1 : i32, i32, i32
  }
  func.func @transform_6(%arg0: i32) -> (i32, i32, i32) {
    %c0_i32 = arith.constant 0 : i32
    %c0_i32_0 = arith.constant 0 : i32
    %c0_i32_1 = arith.constant 0 : i32
    return %c0_i32, %c0_i32_0, %arg0 : i32, i32, i32
  }
}

</mosaic_0001>

<llo_original>
// kernel: tpu_custom_call.1
$region0: #{tpu_custom_call.1}
  #allocation0 [shape = 'u32[]', space=smem, size = 0x4, offset = 0x4, fixed_abs, tag = 'smem constant byte address 0x4 - core index']
  #allocation1 [shape = 'u32[144,128]{1,0:T(1,128)}', space=vmem, size = 0x12000, scoped, tag = 'internal scratch']
  #allocation2 [shape = 'f32[8,32,16]{2,1,0:T(8,128)}', space=vmem, size = 0x20000, scoped, tag = 'scratch operand']
  %s0 = inlined_call_operand.vmem [shape: f32[9,5,16], index: 0, kind: input, shape index: {}]
  %s1 = inlined_call_operand.vmem [shape: f32[8,32,5], index: 1, kind: input, shape index: {}]
  %s2 = inlined_call_operand.vmem [shape: f32[8,32,5], index: 2, kind: input, shape index: {}]
  %s3 = inlined_call_operand.vmem [shape: f32[8,32,1], index: 3, kind: input, shape index: {}]
  %s4 = inlined_call_operand.vmem [shape: f32[8,5,32], index: 4, kind: input, shape index: {}]
  %s5 = inlined_call_operand.vmem [shape: f32[8,5,1], index: 5, kind: input, shape index: {}]
  %s6 = inlined_call_operand.vmem [shape: f32[8,5,16], index: 6, kind: output, shape index: {}]
  %s7 = sld [smem:[#allocation0]]
  $region34: #{tpu_custom_call.1} parent=0
    _
  %s9 = ssub.s32 1, %s7
  %s10 = scalar_select 0, %s9, %s7
  // Predicated region
  $region2: #{tpu_custom_call.1} parent=0 // pred_check
    _
  $region3: #{tpu_custom_call.1} parent=0 // pred_check_branch
    %12 = sbr.rel (0) target = $region5
  $region4: #{tpu_custom_call.1} parent=0 // pred_region
    _
  $region5: #{tpu_custom_call.1} parent=0 // pred_fallthru
    _
  // Predicated region
  $region6: #{tpu_custom_call.1} parent=0 // pred_check
    _
  $region7: #{tpu_custom_call.1} parent=0 // pred_check_branch
    %14 = sbr.rel (0) target = $region9
  $region8: #{tpu_custom_call.1} parent=0 // pred_region
    _
  $region9: #{tpu_custom_call.1} parent=0 // pred_fallthru
    _
  // Predicated region
  $region10: #{tpu_custom_call.1} parent=0 // pred_check
    _
  $region11: #{tpu_custom_call.1} parent=0 // pred_check_branch
    %16 = sbr.rel (0) target = $region13
  $region12: #{tpu_custom_call.1} parent=0 // pred_region
    _
  $region13: #{tpu_custom_call.1} parent=0 // pred_fallthru
    _
  // Predicated region
  $region14: #{tpu_custom_call.1} parent=0 // pred_check
    _
  $region15: #{tpu_custom_call.1} parent=0 // pred_check_branch
    %18 = sbr.rel (0) target = $region17
  $region16: #{tpu_custom_call.1} parent=0 // pred_region
    _
  $region17: #{tpu_custom_call.1} parent=0 // pred_fallthru
    _
  // Predicated region
  $region18: #{tpu_custom_call.1} parent=0 // pred_check
    _
  $region19: #{tpu_custom_call.1} parent=0 // pred_check_branch
    %20 = sbr.rel (0) target = $region21
  $region20: #{tpu_custom_call.1} parent=0 // pred_region
    _
  $region21: #{tpu_custom_call.1} parent=0 // pred_fallthru
    _
  // Predicated region
  $region22: #{tpu_custom_call.1} parent=0 // pred_check
    _
  $region23: #{tpu_custom_call.1} parent=0 // pred_check_branch
    %22 = sbr.rel (0) target = $region25
  $region24: #{tpu_custom_call.1} parent=0 // pred_region
    _
  $region25: #{tpu_custom_call.1} parent=0 // pred_fallthru
    _
  %v23 = vld [vmem:[%s1] sm:$0xff]
  %v24 = vld [vmem:[%s1 + $0x8] sm:$0xff]
  %v25 = vld [vmem:[%s1 + $0x10] sm:$0xff]
  %v26 = vld [vmem:[%s1 + $0x18] sm:$0xff]
  %v27 = vld [vmem:[%s0] sm:$0x1f]
  %v28 = vld [vmem:[%s3] sm:$0xff]
  %v29 = vld [vmem:[%s3 + $0x8] sm:$0xff]
  %v30 = vld [vmem:[%s3 + $0x10] sm:$0xff]
  %v31 = vld [vmem:[%s3 + $0x18] sm:$0xff]
  %33 = vset.pattern.permute.xlu0 0
  %34 = vperm.xlu0 %33, %v28
  %v35 = vpop.permute.xlu0 %34
  %38 = vset.pattern.permute.xlu0 0
  %39 = vperm.xlu0 %38, %v29
  %v40 = vpop.permute.xlu0 %39
  %43 = vset.pattern.permute.xlu0 0
  %44 = vperm.xlu0 %43, %v30
  %v45 = vpop.permute.xlu0 %44
  %48 = vset.pattern.permute.xlu0 0
  %49 = vperm.xlu0 %48, %v31
  %v50 = vpop.permute.xlu0 %49
  %vm52 = vcmask 39936
  %v54 = vsel %vm52, %v23, 0
  %v57 = vsel %vm52, %v24, 0
  %v60 = vsel %vm52, %v25, 0
  %v63 = vsel %vm52, %v26, 0
  %vm65 = vcmask 1044480
  %v67 = vsel %vm65, %v27, 0
  %69 = vmatprep.subr.mxu0 0.0
  %70 = vmatpush1.msra.mxu0 0.0
  %71 = vmatprep.subr.mxu0 0.0
  %72 = vmatpush1.msra.mxu0 0.0
  %73 = vmatprep.subr.mxu0 0.0
  %74 = vmatpush1.msra.mxu0 0.0
  %75 = vmatprep.subr.mxu0 0.0
  %76 = vmatpush1.msra.mxu0 0.0
  %77 = vmatprep.subr.mxu0 0.0
  %78 = vmatpush1.msra.mxu0 0.0
  %79 = vmatprep.subr.mxu0 0.0
  %80 = vmatpush1.msra.mxu0 0.0
  %81 = vmatprep.subr.mxu0 0.0
  %82 = vmatpush1.msra.mxu0 0.0
  %83 = vmatprep.subr.mxu0 0.0
  %84 = vmatpush1.msra.mxu0 0.0
  %85 = vmatprep.subr.mxu0 0.0
  %86 = vmatpush1.msra.mxu0 0.0
  %87 = vmatprep.subr.mxu0 0.0
  %88 = vmatpush1.msra.mxu0 0.0
  %89 = vmatprep.subr.mxu0 0.0
  %90 = vmatpush1.msra.mxu0 0.0
  %91 = vmatprep.subr.mxu0 0.0
  %92 = vmatpush1.msra.mxu0 0.0
  %93 = vmatprep.subr.mxu0 0.0
  %94 = vmatpush1.msra.mxu0 0.0
  %95 = vmatprep.subr.mxu0 0.0
  %96 = vmatpush1.msra.mxu0 0.0
  %97 = vmatprep.subr.mxu0 0.0
  %98 = vmatpush1.msra.mxu0 0.0
  %99 = vmatprep.subr.mxu0 0.0
  %100 = vmatpush1.msra.mxu0 %v67
  %101 = vmatprep.subr.mxu0 0.0
  %102 = vmatpush2.msra.mxu0 0.0
  %103 = vmatprep.subr.mxu0 0.0
  %104 = vmatpush2.msra.mxu0 0.0
  %105 = vmatprep.subr.mxu0 0.0
  %106 = vmatpush2.msra.mxu0 0.0
  %107 = vmatprep.subr.mxu0 0.0
  %108 = vmatpush2.msra.mxu0 0.0
  %109 = vmatprep.subr.mxu0 0.0
  %110 = vmatpush2.msra.mxu0 0.0
  %111 = vmatprep.subr.mxu0 0.0
  %112 = vmatpush2.msra.mxu0 0.0
  %113 = vmatprep.subr.mxu0 0.0
  %114 = vmatpush2.msra.mxu0 0.0
  %115 = vmatprep.subr.mxu0 0.0
  %116 = vmatpush2.msra.mxu0 0.0
  %117 = vmatprep.subr.mxu0 0.0
  %118 = vmatpush2.msra.mxu0 0.0
  %119 = vmatprep.subr.mxu0 0.0
  %120 = vmatpush2.msra.mxu0 0.0
  %121 = vmatprep.subr.mxu0 0.0
  %122 = vmatpush2.msra.mxu0 0.0
  %123 = vmatprep.subr.mxu0 0.0
  %124 = vmatpush2.msra.mxu0 0.0
  %125 = vmatprep.subr.mxu0 0.0
  %126 = vmatpush2.msra.mxu0 0.0
  %127 = vmatprep.subr.mxu0 0.0
  %128 = vmatpush2.msra.mxu0 0.0
  %129 = vmatprep.subr.mxu0 0.0
  %130 = vmatpush2.msra.mxu0 0.0
  %131 = vmatprep.subr.mxu0 0.0
  %132 = vmatpush2.msra.mxu0 0.0
  %133 = vmatprep.mubr.f32.mxu0 0.0
  %134 = vmatmul.mubr.f32.gmra.mxu0 %v54
  %v135 = vpop.f32.mrf.mxu0
  %v136 = vadd.f32 %v35, %v135
  %v137 = vpop.f32.mrf.mxu0
  %138 = vmatprep.mubr.f32.mxu0 0.0
  %139 = vmatmul.mubr.f32.gmra.mxu0 %v57
  %v140 = vpop.f32.mrf.mxu0
  %v141 = vadd.f32 %v40, %v140
  %v142 = vpop.f32.mrf.mxu0
  %143 = vmatprep.mubr.f32.mxu0 0.0
  %144 = vmatmul.mubr.f32.gmra.mxu0 %v60
  %v145 = vpop.f32.mrf.mxu0
  %v146 = vadd.f32 %v45, %v145
  %v147 = vpop.f32.mrf.mxu0
  %148 = vmatprep.mubr.f32.mxu0 0.0
  %149 = vmatmul.mubr.f32.gmra.mxu0 %v63
  %v150 = vpop.f32.mrf.mxu0
  %v151 = vadd.f32 %v50, %v150
  %v152 = vpop.f32.mrf.mxu0
  %153 = vdwg.mxu0
  %vm154 = vcmask 130048
  %155 = vst.msk [vmem:[#allocation2] sm:$0xff] %vm154, %v136
  %156 = vst.msk [vmem:[#allocation2 + $0x8] sm:$0xff] %vm154, %v141
  %157 = vst.msk [vmem:[#allocation2 + $0x10] sm:$0xff] %vm154, %v146
  %158 = vst.msk [vmem:[#allocation2 + $0x18] sm:$0xff] %vm154, %v151
  %s159 = scalar_lea.vmem %s1, 32
  %v160 = vld [vmem:[%s159] sm:$0xff]
  %v161 = vld [vmem:[%s159 + $0x8] sm:$0xff]
  %v162 = vld [vmem:[%s159 + $0x10] sm:$0xff]
  %v163 = vld [vmem:[%s159 + $0x18] sm:$0xff]
  %s164 = scalar_lea.vmem %s0, 8
  %v165 = vld [vmem:[%s164] sm:$0x1f]
  %s166 = scalar_lea.vmem %s3, 32
  %v167 = vld [vmem:[%s166] sm:$0xff]
  %v168 = vld [vmem:[%s166 + $0x8] sm:$0xff]
  %v169 = vld [vmem:[%s166 + $0x10] sm:$0xff]
  %v170 = vld [vmem:[%s166 + $0x18] sm:$0xff]
  %172 = vset.pattern.permute.xlu0 0
  %173 = vperm.xlu0 %172, %v167
  %v174 = vpop.permute.xlu0 %173
  %177 = vset.pattern.permute.xlu0 0
  %178 = vperm.xlu0 %177, %v168
  %v179 = vpop.permute.xlu0 %178
  %182 = vset.pattern.permute.xlu0 0
  %183 = vperm.xlu0 %182, %v169
  %v184 = vpop.permute.xlu0 %183
  %187 = vset.pattern.permute.xlu0 0
  %188 = vperm.xlu0 %187, %v170
  %v189 = vpop.permute.xlu0 %188
  %v192 = vsel %vm52, %v160, 0
  %v195 = vsel %vm52, %v161, 0
  %v198 = vsel %vm52, %v162, 0
  %v201 = vsel %vm52, %v163, 0
  %v204 = vsel %vm65, %v165, 0
  %206 = vmatprep.subr.mxu0 0.0
  %207 = vmatpush1.msra.mxu0 0.0
  %208 = vmatprep.subr.mxu0 0.0
  %209 = vmatpush1.msra.mxu0 0.0
  %210 = vmatprep.subr.mxu0 0.0
  %211 = vmatpush1.msra.mxu0 0.0
  %212 = vmatprep.subr.mxu0 0.0
  %213 = vmatpush1.msra.mxu0 0.0
  %214 = vmatprep.subr.mxu0 0.0
  %215 = vmatpush1.msra.mxu0 0.0
  %216 = vmatprep.subr.mxu0 0.0
  %217 = vmatpush1.msra.mxu0 0.0
  %218 = vmatprep.subr.mxu0 0.0
  %219 = vmatpush1.msra.mxu0 0.0
  %220 = vmatprep.subr.mxu0 0.0
  %221 = vmatpush1.msra.mxu0 0.0
  %222 = vmatprep.subr.mxu0 0.0
  %223 = vmatpush1.msra.mxu0 0.0
  %224 = vmatprep.subr.mxu0 0.0
  %225 = vmatpush1.msra.mxu0 0.0
  %226 = vmatprep.subr.mxu0 0.0
  %227 = vmatpush1.msra.mxu0 0.0
  %228 = vmatprep.subr.mxu0 0.0
  %229 = vmatpush1.msra.mxu0 0.0
  %230 = vmatprep.subr.mxu0 0.0
  %231 = vmatpush1.msra.mxu0 0.0
  %232 = vmatprep.subr.mxu0 0.0
  %233 = vmatpush1.msra.mxu0 0.0
  %234 = vmatprep.subr.mxu0 0.0
  %235 = vmatpush1.msra.mxu0 0.0
  %236 = vmatprep.subr.mxu0 0.0
  %237 = vmatpush1.msra.mxu0 %v204
  %238 = vmatprep.subr.mxu0 0.0
  %239 = vmatpush2.msra.mxu0 0.0
  %240 = vmatprep.subr.mxu0 0.0
  %241 = vmatpush2.msra.mxu0 0.0
  %242 = vmatprep.subr.mxu0 0.0
  %243 = vmatpush2.msra.mxu0 0.0
  %244 = vmatprep.subr.mxu0 0.0
  %245 = vmatpush2.msra.mxu0 0.0
  %246 = vmatprep.subr.mxu0 0.0
  %247 = vmatpush2.msra.mxu0 0.0
  %248 = vmatprep.subr.mxu0 0.0
  %249 = vmatpush2.msra.mxu0 0.0
  %250 = vmatprep.subr.mxu0 0.0
  %251 = vmatpush2.msra.mxu0 0.0
  %252 = vmatprep.subr.mxu0 0.0
  %253 = vmatpush2.msra.mxu0 0.0
  %254 = vmatprep.subr.mxu0 0.0
  %255 = vmatpush2.msra.mxu0 0.0
  %256 = vmatprep.subr.mxu0 0.0
  %257 = vmatpush2.msra.mxu0 0.0
  %258 = vmatprep.subr.mxu0 0.0
  %259 = vmatpush2.msra.mxu0 0.0
  %260 = vmatprep.subr.mxu0 0.0
  %261 = vmatpush2.msra.mxu0 0.0
  %262 = vmatprep.subr.mxu0 0.0
  %263 = vmatpush2.msra.mxu0 0.0
  %264 = vmatprep.subr.mxu0 0.0
  %265 = vmatpush2.msra.mxu0 0.0
  %266 = vmatprep.subr.mxu0 0.0
  %267 = vmatpush2.msra.mxu0 0.0
  %268 = vmatprep.subr.mxu0 0.0
  %269 = vmatpush2.msra.mxu0 0.0
  %270 = vmatprep.mubr.f32.mxu0 0.0
  %271 = vmatmul.mubr.f32.gmra.mxu0 %v192
  %v272 = vpop.f32.mrf.mxu0
  %v273 = vadd.f32 %v174, %v272
  %v274 = vpop.f32.mrf.mxu0
  %275 = vmatprep.mubr.f32.mxu0 0.0
  %276 = vmatmul.mubr.f32.gmra.mxu0 %v195
  %v277 = vpop.f32.mrf.mxu0
  %v278 = vadd.f32 %v179, %v277
  %v279 = vpop.f32.mrf.mxu0
  %280 = vmatprep.mubr.f32.mxu0 0.0
  %281 = vmatmul.mubr.f32.gmra.mxu0 %v198
  %v282 = vpop.f32.mrf.mxu0
  %v283 = vadd.f32 %v184, %v282
  %v284 = vpop.f32.mrf.mxu0
  %285 = vmatprep.mubr.f32.mxu0 0.0
  %286 = vmatmul.mubr.f32.gmra.mxu0 %v201
  %v287 = vpop.f32.mrf.mxu0
  %v288 = vadd.f32 %v189, %v287
  %v289 = vpop.f32.mrf.mxu0
  %290 = vdwg.mxu0
  %s291 = scalar_lea.vmem [#allocation2], 32
  %292 = vst.msk [vmem:[%s291] sm:$0xff] %vm154, %v273
  %293 = vst.msk [vmem:[%s291 + $0x8] sm:$0xff] %vm154, %v278
  %294 = vst.msk [vmem:[%s291 + $0x10] sm:$0xff] %vm154, %v283
  %295 = vst.msk [vmem:[%s291 + $0x18] sm:$0xff] %vm154, %v288
  %s296 = scalar_lea.vmem %s1, 64
  %v297 = vld [vmem:[%s296] sm:$0xff]
  %v298 = vld [vmem:[%s296 + $0x8] sm:$0xff]
  %v299 = vld [vmem:[%s296 + $0x10] sm:$0xff]
  %v300 = vld [vmem:[%s296 + $0x18] sm:$0xff]
  %s301 = scalar_lea.vmem %s0, 16
  %v302 = vld [vmem:[%s301] sm:$0x1f]
  %s303 = scalar_lea.vmem %s3, 64
  %v304 = vld [vmem:[%s303] sm:$0xff]
  %v305 = vld [vmem:[%s303 + $0x8] sm:$0xff]
  %v306 = vld [vmem:[%s303 + $0x10] sm:$0xff]
  %v307 = vld [vmem:[%s303 + $0x18] sm:$0xff]
  %309 = vset.pattern.permute.xlu0 0
  %310 = vperm.xlu0 %309, %v304
  %v311 = vpop.permute.xlu0 %310
  %314 = vset.pattern.permute.xlu0 0
  %315 = vperm.xlu0 %314, %v305
  %v316 = vpop.permute.xlu0 %315
  %319 = vset.pattern.permute.xlu0 0
  %320 = vperm.xlu0 %319, %v306
  %v321 = vpop.permute.xlu0 %320
  %324 = vset.pattern.permute.xlu0 0
  %325 = vperm.xlu0 %324, %v307
  %v326 = vpop.permute.xlu0 %325
  %v329 = vsel %vm52, %v297, 0
  %v332 = vsel %vm52, %v298, 0
  %v335 = vsel %vm52, %v299, 0
  %v338 = vsel %vm52, %v300, 0
  %v341 = vsel %vm65, %v302, 0
  %343 = vmatprep.subr.mxu0 0.0
  %344 = vmatpush1.msra.mxu0 0.0
  %345 = vmatprep.subr.mxu0 0.0
  %346 = vmatpush1.msra.mxu0 0.0
  %347 = vmatprep.subr.mxu0 0.0
  %348 = vmatpush1.msra.mxu0 0.0
  %349 = vmatprep.subr.mxu0 0.0
  %350 = vmatpush1.msra.mxu0 0.0
  %351 = vmatprep.subr.mxu0 0.0
  %352 = vmatpush1.msra.mxu0 0.0
  %353 = vmatprep.subr.mxu0 0.0
  %354 = vmatpush1.msra.mxu0 0.0
  %355 = vmatprep.subr.mxu0 0.0
  %356 = vmatpush1.msra.mxu0 0.0
  %357 = vmatprep.subr.mxu0 0.0
  %358 = vmatpush1.msra.mxu0 0.0
  %359 = vmatprep.subr.mxu0 0.0
  %360 = vmatpush1.msra.mxu0 0.0
  %361 = vmatprep.subr.mxu0 0.0
  %362 = vmatpush1.msra.mxu0 0.0
  %363 = vmatprep.subr.mxu0 0.0
  %364 = vmatpush1.msra.mxu0 0.0
  %365 = vmatprep.subr.mxu0 0.0
  %366 = vmatpush1.msra.mxu0 0.0
  %367 = vmatprep.subr.mxu0 0.0
  %368 = vmatpush1.msra.mxu0 0.0
  %369 = vmatprep.subr.mxu0 0.0
  %370 = vmatpush1.msra.mxu0 0.0
  %371 = vmatprep.subr.mxu0 0.0
  %372 = vmatpush1.msra.mxu0 0.0
  %373 = vmatprep.subr.mxu0 0.0
  %374 = vmatpush1.msra.mxu0 %v341
  %375 = vmatprep.subr.mxu0 0.0
  %376 = vmatpush2.msra.mxu0 0.0
  %377 = vmatprep.subr.mxu0 0.0
  %378 = vmatpush2.msra.mxu0 0.0
  %379 = vmatprep.subr.mxu0 0.0
  %380 = vmatpush2.msra.mxu0 0.0
  %381 = vmatprep.subr.mxu0 0.0
  %382 = vmatpush2.msra.mxu0 0.0
  %383 = vmatprep.subr.mxu0 0.0
  %384 = vmatpush2.msra.mxu0 0.0
  %385 = vmatprep.subr.mxu0 0.0
  %386 = vmatpush2.msra.mxu0 0.0
  %387 = vmatprep.subr.mxu0 0.0
  %388 = vmatpush2.msra.mxu0 0.0
  %389 = vmatprep.subr.mxu0 0.0
  %390 = vmatpush2.msra.mxu0 0.0
  %391 = vmatprep.subr.mxu0 0.0
  %392 = vmatpush2.msra.mxu0 0.0
  %393 = vmatprep.subr.mxu0 0.0
  %394 = vmatpush2.msra.mxu0 0.0
  %395 = vmatprep.subr.mxu0 0.0
  %396 = vmatpush2.msra.mxu0 0.0
  %397 = vmatprep.subr.mxu0 0.0
  %398 = vmatpush2.msra.mxu0 0.0
  %399 = vmatprep.subr.mxu0 0.0
  %400 = vmatpush2.msra.mxu0 0.0
  %401 = vmatprep.subr.mxu0 0.0
  %402 = vmatpush2.msra.mxu0 0.0
  %403 = vmatprep.subr.mxu0 0.0
  %404 = vmatpush2.msra.mxu0 0.0
  %405 = vmatprep.subr.mxu0 0.0
  %406 = vmatpush2.msra.mxu0 0.0
  %407 = vmatprep.mubr.f32.mxu0 0.0
  %408 = vmatmul.mubr.f32.gmra.mxu0 %v329
  %v409 = vpop.f32.mrf.mxu0
  %v410 = vadd.f32 %v311, %v409
  %v411 = vpop.f32.mrf.mxu0
  %412 = vmatprep.mubr.f32.mxu0 0.0
  %413 = vmatmul.mubr.f32.gmra.mxu0 %v332
  %v414 = vpop.f32.mrf.mxu0
  %v415 = vadd.f32 %v316, %v414
  %v416 = vpop.f32.mrf.mxu0
  %417 = vmatprep.mubr.f32.mxu0 0.0
  %418 = vmatmul.mubr.f32.gmra.mxu0 %v335
  %v419 = vpop.f32.mrf.mxu0
  %v420 = vadd.f32 %v321, %v419
  %v421 = vpop.f32.mrf.mxu0
  %422 = vmatprep.mubr.f32.mxu0 0.0
  %423 = vmatmul.mubr.f32.gmra.mxu0 %v338
  %v424 = vpop.f32.mrf.mxu0
  %v425 = vadd.f32 %v326, %v424
  %v426 = vpop.f32.mrf.mxu0
  %427 = vdwg.mxu0
  %s428 = scalar_lea.vmem [#allocation2], 64
  %429 = vst.msk [vmem:[%s428] sm:$0xff] %vm154, %v410
  %430 = vst.msk [vmem:[%s428 + $0x8] sm:$0xff] %vm154, %v415
  %431 = vst.msk [vmem:[%s428 + $0x10] sm:$0xff] %vm154, %v420
  %432 = vst.msk [vmem:[%s428 + $0x18] sm:$0xff] %vm154, %v425
  %s433 = scalar_lea.vmem %s1, 96
  %v434 = vld [vmem:[%s433] sm:$0xff]
  %v435 = vld [vmem:[%s433 + $0x8] sm:$0xff]
  %v436 = vld [vmem:[%s433 + $0x10] sm:$0xff]
  %v437 = vld [vmem:[%s433 + $0x18] sm:$0xff]
  %s438 = scalar_lea.vmem %s0, 24
  %v439 = vld [vmem:[%s438] sm:$0x1f]
  %s440 = scalar_lea.vmem %s3, 96
  %v441 = vld [vmem:[%s440] sm:$0xff]
  %v442 = vld [vmem:[%s440 + $0x8] sm:$0xff]
  %v443 = vld [vmem:[%s440 + $0x10] sm:$0xff]
  %v444 = vld [vmem:[%s440 + $0x18] sm:$0xff]
  %446 = vset.pattern.permute.xlu0 0
  %447 = vperm.xlu0 %446, %v441
  %v448 = vpop.permute.xlu0 %447
  %451 = vset.pattern.permute.xlu0 0
  %452 = vperm.xlu0 %451, %v442
  %v453 = vpop.permute.xlu0 %452
  %456 = vset.pattern.permute.xlu0 0
  %457 = vperm.xlu0 %456, %v443
  %v458 = vpop.permute.xlu0 %457
  %461 = vset.pattern.permute.xlu0 0
  %462 = vperm.xlu0 %461, %v444
  %v463 = vpop.permute.xlu0 %462
  %v466 = vsel %vm52, %v434, 0
  %v469 = vsel %vm52, %v435, 0
  %v472 = vsel %vm52, %v436, 0
  %v475 = vsel %vm52, %v437, 0
  %v478 = vsel %vm65, %v439, 0
  %480 = vmatprep.subr.mxu0 0.0
  %481 = vmatpush1.msra.mxu0 0.0
  %482 = vmatprep.subr.mxu0 0.0
  %483 = vmatpush1.msra.mxu0 0.0
  %484 = vmatprep.subr.mxu0 0.0
  %485 = vmatpush1.msra.mxu0 0.0
  %486 = vmatprep.subr.mxu0 0.0
  %487 = vmatpush1.msra.mxu0 0.0
  %488 = vmatprep.subr.mxu0 0.0
  %489 = vmatpush1.msra.mxu0 0.0
  %490 = vmatprep.subr.mxu0 0.0
  %491 = vmatpush1.msra.mxu0 0.0
  %492 = vmatprep.subr.mxu0 0.0
  %493 = vmatpush1.msra.mxu0 0.0
  %494 = vmatprep.subr.mxu0 0.0
  %495 = vmatpush1.msra.mxu0 0.0
  %496 = vmatprep.subr.mxu0 0.0
  %497 = vmatpush1.msra.mxu0 0.0
  %498 = vmatprep.subr.mxu0 0.0
  %499 = vmatpush1.msra.mxu0 0.0
  %500 = vmatprep.subr.mxu0 0.0
  %501 = vmatpush1.msra.mxu0 0.0
  %502 = vmatprep.subr.mxu0 0.0
  %503 = vmatpush1.msra.mxu0 0.0
  %504 = vmatprep.subr.mxu0 0.0
  %505 = vmatpush1.msra.mxu0 0.0
  %506 = vmatprep.subr.mxu0 0.0
  %507 = vmatpush1.msra.mxu0 0.0
  %508 = vmatprep.subr.mxu0 0.0
  %509 = vmatpush1.msra.mxu0 0.0
  %510 = vmatprep.subr.mxu0 0.0
  %511 = vmatpush1.msra.mxu0 %v478
  %512 = vmatprep.subr.mxu0 0.0
  %513 = vmatpush2.msra.mxu0 0.0
  %514 = vmatprep.subr.mxu0 0.0
  %515 = vmatpush2.msra.mxu0 0.0
  %516 = vmatprep.subr.mxu0 0.0
  %517 = vmatpush2.msra.mxu0 0.0
  %518 = vmatprep.subr.mxu0 0.0
  %519 = vmatpush2.msra.mxu0 0.0
  %520 = vmatprep.subr.mxu0 0.0
  %521 = vmatpush2.msra.mxu0 0.0
  %522 = vmatprep.subr.mxu0 0.0
  %523 = vmatpush2.msra.mxu0 0.0
  %524 = vmatprep.subr.mxu0 0.0
  %525 = vmatpush2.msra.mxu0 0.0
  %526 = vmatprep.subr.mxu0 0.0
  %527 = vmatpush2.msra.mxu0 0.0
  %528 = vmatprep.subr.mxu0 0.0
  %529 = vmatpush2.msra.mxu0 0.0
  %530 = vmatprep.subr.mxu0 0.0
  %531 = vmatpush2.msra.mxu0 0.0
  %532 = vmatprep.subr.mxu0 0.0
  %533 = vmatpush2.msra.mxu0 0.0
  %534 = vmatprep.subr.mxu0 0.0
  %535 = vmatpush2.msra.mxu0 0.0
  %536 = vmatprep.subr.mxu0 0.0
  %537 = vmatpush2.msra.mxu0 0.0
  %538 = vmatprep.subr.mxu0 0.0
  %539 = vmatpush2.msra.mxu0 0.0
  %540 = vmatprep.subr.mxu0 0.0
  %541 = vmatpush2.msra.mxu0 0.0
  %542 = vmatprep.subr.mxu0 0.0
  %543 = vmatpush2.msra.mxu0 0.0
  %544 = vmatprep.mubr.f32.mxu0 0.0
  %545 = vmatmul.mubr.f32.gmra.mxu0 %v466
  %v546 = vpop.f32.mrf.mxu0
  %v547 = vadd.f32 %v448, %v546
  %v548 = vpop.f32.mrf.mxu0
  %549 = vmatprep.mubr.f32.mxu0 0.0
  %550 = vmatmul.mubr.f32.gmra.mxu0 %v469
  %v551 = vpop.f32.mrf.mxu0
  %v552 = vadd.f32 %v453, %v551
  %v553 = vpop.f32.mrf.mxu0
  %554 = vmatprep.mubr.f32.mxu0 0.0
  %555 = vmatmul.mubr.f32.gmra.mxu0 %v472
  %v556 = vpop.f32.mrf.mxu0
  %v557 = vadd.f32 %v458, %v556
  %v558 = vpop.f32.mrf.mxu0
  %559 = vmatprep.mubr.f32.mxu0 0.0
  %560 = vmatmul.mubr.f32.gmra.mxu0 %v475
  %v561 = vpop.f32.mrf.mxu0
  %v562 = vadd.f32 %v463, %v561
  %v563 = vpop.f32.mrf.mxu0
  %564 = vdwg.mxu0
  %s565 = scalar_lea.vmem [#allocation2], 96
  %566 = vst.msk [vmem:[%s565] sm:$0xff] %vm154, %v547
  %567 = vst.msk [vmem:[%s565 + $0x8] sm:$0xff] %vm154, %v552
  %568 = vst.msk [vmem:[%s565 + $0x10] sm:$0xff] %vm154, %v557
  %569 = vst.msk [vmem:[%s565 + $0x18] sm:$0xff] %vm154, %v562
  %s570 = scalar_lea.vmem %s1, 128
  %v571 = vld [vmem:[%s570] sm:$0xff]
  %v572 = vld [vmem:[%s570 + $0x8] sm:$0xff]
  %v573 = vld [vmem:[%s570 + $0x10] sm:$0xff]
  %v574 = vld [vmem:[%s570 + $0x18] sm:$0xff]
  %s575 = scalar_lea.vmem %s0, 32
  %v576 = vld [vmem:[%s575] sm:$0x1f]
  %s577 = scalar_lea.vmem %s3, 128
  %v578 = vld [vmem:[%s577] sm:$0xff]
  %v579 = vld [vmem:[%s577 + $0x8] sm:$0xff]
  %v580 = vld [vmem:[%s577 + $0x10] sm:$0xff]
  %v581 = vld [vmem:[%s577 + $0x18] sm:$0xff]
  %583 = vset.pattern.permute.xlu0 0
  %584 = vperm.xlu0 %583, %v578
  %v585 = vpop.permute.xlu0 %584
  %588 = vset.pattern.permute.xlu0 0
  %589 = vperm.xlu0 %588, %v579
  %v590 = vpop.permute.xlu0 %589
  %593 = vset.pattern.permute.xlu0 0
  %594 = vperm.xlu0 %593, %v580
  %v595 = vpop.permute.xlu0 %594
  %598 = vset.pattern.permute.xlu0 0
  %599 = vperm.xlu0 %598, %v581
  %v600 = vpop.permute.xlu0 %599
  %v603 = vsel %vm52, %v571, 0
  %v606 = vsel %vm52, %v572, 0
  %v609 = vsel %vm52, %v573, 0
  %v612 = vsel %vm52, %v574, 0
  %v615 = vsel %vm65, %v576, 0
  %617 = vmatprep.subr.mxu0 0.0
  %618 = vmatpush1.msra.mxu0 0.0
  %619 = vmatprep.subr.mxu0 0.0
  %620 = vmatpush1.msra.mxu0 0.0
  %621 = vmatprep.subr.mxu0 0.0
  %622 = vmatpush1.msra.mxu0 0.0
  %623 = vmatprep.subr.mxu0 0.0
  %624 = vmatpush1.msra.mxu0 0.0
  %625 = vmatprep.subr.mxu0 0.0
  %626 = vmatpush1.msra.mxu0 0.0
  %627 = vmatprep.subr.mxu0 0.0
  %628 = vmatpush1.msra.mxu0 0.0
  %629 = vmatprep.subr.mxu0 0.0
  %630 = vmatpush1.msra.mxu0 0.0
  %631 = vmatprep.subr.mxu0 0.0
  %632 = vmatpush1.msra.mxu0 0.0
  %633 = vmatprep.subr.mxu0 0.0
  %634 = vmatpush1.msra.mxu0 0.0
  %635 = vmatprep.subr.mxu0 0.0
  %636 = vmatpush1.msra.mxu0 0.0
  %637 = vmatprep.subr.mxu0 0.0
  %638 = vmatpush1.msra.mxu0 0.0
  %639 = vmatprep.subr.mxu0 0.0
  %640 = vmatpush1.msra.mxu0 0.0
  %641 = vmatprep.subr.mxu0 0.0
  %642 = vmatpush1.msra.mxu0 0.0
  %643 = vmatprep.subr.mxu0 0.0
  %644 = vmatpush1.msra.mxu0 0.0
  %645 = vmatprep.subr.mxu0 0.0
  %646 = vmatpush1.msra.mxu0 0.0
  %647 = vmatprep.subr.mxu0 0.0
  %648 = vmatpush1.msra.mxu0 %v615
  %649 = vmatprep.subr.mxu0 0.0
  %650 = vmatpush2.msra.mxu0 0.0
  %651 = vmatprep.subr.mxu0 0.0
  %652 = vmatpush2.msra.mxu0 0.0
  %653 = vmatprep.subr.mxu0 0.0
  %654 = vmatpush2.msra.mxu0 0.0
  %655 = vmatprep.subr.mxu0 0.0
  %656 = vmatpush2.msra.mxu0 0.0
  %657 = vmatprep.subr.mxu0 0.0
  %658 = vmatpush2.msra.mxu0 0.0
  %659 = vmatprep.subr.mxu0 0.0
  %660 = vmatpush2.msra.mxu0 0.0
  %661 = vmatprep.subr.mxu0 0.0
  %662 = vmatpush2.msra.mxu0 0.0
  %663 = vmatprep.subr.mxu0 0.0
  %664 = vmatpush2.msra.mxu0 0.0
  %665 = vmatprep.subr.mxu0 0.0
  %666 = vmatpush2.msra.mxu0 0.0
  %667 = vmatprep.subr.mxu0 0.0
  %668 = vmatpush2.msra.mxu0 0.0
  %669 = vmatprep.subr.mxu0 0.0
  %670 = vmatpush2.msra.mxu0 0.0
  %671 = vmatprep.subr.mxu0 0.0
  %672 = vmatpush2.msra.mxu0 0.0
  %673 = vmatprep.subr.mxu0 0.0
  %674 = vmatpush2.msra.mxu0 0.0
  %675 = vmatprep.subr.mxu0 0.0
  %676 = vmatpush2.msra.mxu0 0.0
  %677 = vmatprep.subr.mxu0 0.0
  %678 = vmatpush2.msra.mxu0 0.0
  %679 = vmatprep.subr.mxu0 0.0
  %680 = vmatpush2.msra.mxu0 0.0
  %681 = vmatprep.mubr.f32.mxu0 0.0
  %682 = vmatmul.mubr.f32.gmra.mxu0 %v603
  %v683 = vpop.f32.mrf.mxu0
  %v684 = vadd.f32 %v585, %v683
  %v685 = vpop.f32.mrf.mxu0
  %686 = vmatprep.mubr.f32.mxu0 0.0
  %687 = vmatmul.mubr.f32.gmra.mxu0 %v606
  %v688 = vpop.f32.mrf.mxu0
  %v689 = vadd.f32 %v590, %v688
  %v690 = vpop.f32.mrf.mxu0
  %691 = vmatprep.mubr.f32.mxu0 0.0
  %692 = vmatmul.mubr.f32.gmra.mxu0 %v609
  %v693 = vpop.f32.mrf.mxu0
  %v694 = vadd.f32 %v595, %v693
  %v695 = vpop.f32.mrf.mxu0
  %696 = vmatprep.mubr.f32.mxu0 0.0
  %697 = vmatmul.mubr.f32.gmra.mxu0 %v612
  %v698 = vpop.f32.mrf.mxu0
  %v699 = vadd.f32 %v600, %v698
  %v700 = vpop.f32.mrf.mxu0
  %701 = vdwg.mxu0
  %s702 = scalar_lea.vmem [#allocation2], 128
  %703 = vst.msk [vmem:[%s702] sm:$0xff] %vm154, %v684
  %704 = vst.msk [vmem:[%s702 + $0x8] sm:$0xff] %vm154, %v689
  %705 = vst.msk [vmem:[%s702 + $0x10] sm:$0xff] %vm154, %v694
  %706 = vst.msk [vmem:[%s702 + $0x18] sm:$0xff] %vm154, %v699
  %s707 = scalar_lea.vmem %s1, 160
  %v708 = vld [vmem:[%s707] sm:$0xff]
  %v709 = vld [vmem:[%s707 + $0x8] sm:$0xff]
  %v710 = vld [vmem:[%s707 + $0x10] sm:$0xff]
  %v711 = vld [vmem:[%s707 + $0x18] sm:$0xff]
  %s712 = scalar_lea.vmem %s0, 40
  %v713 = vld [vmem:[%s712] sm:$0x1f]
  %s714 = scalar_lea.vmem %s3, 160
  %v715 = vld [vmem:[%s714] sm:$0xff]
  %v716 = vld [vmem:[%s714 + $0x8] sm:$0xff]
  %v717 = vld [vmem:[%s714 + $0x10] sm:$0xff]
  %v718 = vld [vmem:[%s714 + $0x18] sm:$0xff]
  %720 = vset.pattern.permute.xlu0 0
  %721 = vperm.xlu0 %720, %v715
  %v722 = vpop.permute.xlu0 %721
  %725 = vset.pattern.permute.xlu0 0
  %726 = vperm.xlu0 %725, %v716
  %v727 = vpop.permute.xlu0 %726
  %730 = vset.pattern.permute.xlu0 0
  %731 = vperm.xlu0 %730, %v717
  %v732 = vpop.permute.xlu0 %731
  %735 = vset.pattern.permute.xlu0 0
  %736 = vperm.xlu0 %735, %v718
  %v737 = vpop.permute.xlu0 %736
  %v740 = vsel %vm52, %v708, 0
  %v743 = vsel %vm52, %v709, 0
  %v746 = vsel %vm52, %v710, 0
  %v749 = vsel %vm52, %v711, 0
  %v752 = vsel %vm65, %v713, 0
  %754 = vmatprep.subr.mxu0 0.0
  %755 = vmatpush1.msra.mxu0 0.0
  %756 = vmatprep.subr.mxu0 0.0
  %757 = vmatpush1.msra.mxu0 0.0
  %758 = vmatprep.subr.mxu0 0.0
  %759 = vmatpush1.msra.mxu0 0.0
  %760 = vmatprep.subr.mxu0 0.0
  %761 = vmatpush1.msra.mxu0 0.0
  %762 = vmatprep.subr.mxu0 0.0
  %763 = vmatpush1.msra.mxu0 0.0
  %764 = vmatprep.subr.mxu0 0.0
  %765 = vmatpush1.msra.mxu0 0.0
  %766 = vmatprep.subr.mxu0 0.0
  %767 = vmatpush1.msra.mxu0 0.0
  %768 = vmatprep.subr.mxu0 0.0
  %769 = vmatpush1.msra.mxu0 0.0
  %770 = vmatprep.subr.mxu0 0.0
  %771 = vmatpush1.msra.mxu0 0.0
  %772 = vmatprep.subr.mxu0 0.0
  %773 = vmatpush1.msra.mxu0 0.0
  %774 = vmatprep.subr.mxu0 0.0
  %775 = vmatpush1.msra.mxu0 0.0
  %776 = vmatprep.subr.mxu0 0.0
  %777 = vmatpush1.msra.mxu0 0.0
  %778 = vmatprep.subr.mxu0 0.0
  %779 = vmatpush1.msra.mxu0 0.0
  %780 = vmatprep.subr.mxu0 0.0
  %781 = vmatpush1.msra.mxu0 0.0
  %782 = vmatprep.subr.mxu0 0.0
  %783 = vmatpush1.msra.mxu0 0.0
  %784 = vmatprep.subr.mxu0 0.0
  %785 = vmatpush1.msra.mxu0 %v752
  %786 = vmatprep.subr.mxu0 0.0
  %787 = vmatpush2.msra.mxu0 0.0
  %788 = vmatprep.subr.mxu0 0.0
  %789 = vmatpush2.msra.mxu0 0.0
  %790 = vmatprep.subr.mxu0 0.0
  %791 = vmatpush2.msra.mxu0 0.0
  %792 = vmatprep.subr.mxu0 0.0
  %793 = vmatpush2.msra.mxu0 0.0
  %794 = vmatprep.subr.mxu0 0.0
  %795 = vmatpush2.msra.mxu0 0.0
  %796 = vmatprep.subr.mxu0 0.0
  %797 = vmatpush2.msra.mxu0 0.0
  %798 = vmatprep.subr.mxu0 0.0
  %799 = vmatpush2.msra.mxu0 0.0
  %800 = vmatprep.subr.mxu0 0.0
  %801 = vmatpush2.msra.mxu0 0.0
  %802 = vmatprep.subr.mxu0 0.0
  %803 = vmatpush2.msra.mxu0 0.0
  %804 = vmatprep.subr.mxu0 0.0
  %805 = vmatpush2.msra.mxu0 0.0
  %806 = vmatprep.subr.mxu0 0.0
  %807 = vmatpush2.msra.mxu0 0.0
  %808 = vmatprep.subr.mxu0 0.0
  %809 = vmatpush2.msra.mxu0 0.0
  %810 = vmatprep.subr.mxu0 0.0
  %811 = vmatpush2.msra.mxu0 0.0
  %812 = vmatprep.subr.mxu0 0.0
  %813 = vmatpush2.msra.mxu0 0.0
  %814 = vmatprep.subr.mxu0 0.0
  %815 = vmatpush2.msra.mxu0 0.0
  %816 = vmatprep.subr.mxu0 0.0
  %817 = vmatpush2.msra.mxu0 0.0
  %818 = vmatprep.mubr.f32.mxu0 0.0
  %819 = vmatmul.mubr.f32.gmra.mxu0 %v740
  %v820 = vpop.f32.mrf.mxu0
  %v821 = vadd.f32 %v722, %v820
  %v822 = vpop.f32.mrf.mxu0
  %823 = vmatprep.mubr.f32.mxu0 0.0
  %824 = vmatmul.mubr.f32.gmra.mxu0 %v743
  %v825 = vpop.f32.mrf.mxu0
  %v826 = vadd.f32 %v727, %v825
  %v827 = vpop.f32.mrf.mxu0
  %828 = vmatprep.mubr.f32.mxu0 0.0
  %829 = vmatmul.mubr.f32.gmra.mxu0 %v746
  %v830 = vpop.f32.mrf.mxu0
  %v831 = vadd.f32 %v732, %v830
  %v832 = vpop.f32.mrf.mxu0
  %833 = vmatprep.mubr.f32.mxu0 0.0
  %834 = vmatmul.mubr.f32.gmra.mxu0 %v749
  %v835 = vpop.f32.mrf.mxu0
  %v836 = vadd.f32 %v737, %v835
  %v837 = vpop.f32.mrf.mxu0
  %838 = vdwg.mxu0
  %s839 = scalar_lea.vmem [#allocation2], 160
  %840 = vst.msk [vmem:[%s839] sm:$0xff] %vm154, %v821
  %841 = vst.msk [vmem:[%s839 + $0x8] sm:$0xff] %vm154, %v826
  %842 = vst.msk [vmem:[%s839 + $0x10] sm:$0xff] %vm154, %v831
  %843 = vst.msk [vmem:[%s839 + $0x18] sm:$0xff] %vm154, %v836
  %s844 = scalar_lea.vmem %s1, 192
  %v845 = vld [vmem:[%s844] sm:$0xff]
  %v846 = vld [vmem:[%s844 + $0x8] sm:$0xff]
  %v847 = vld [vmem:[%s844 + $0x10] sm:$0xff]
  %v848 = vld [vmem:[%s844 + $0x18] sm:$0xff]
  %s849 = scalar_lea.vmem %s0, 48
  %v850 = vld [vmem:[%s849] sm:$0x1f]
  %s851 = scalar_lea.vmem %s3, 192
  %v852 = vld [vmem:[%s851] sm:$0xff]
  %v853 = vld [vmem:[%s851 + $0x8] sm:$0xff]
  %v854 = vld [vmem:[%s851 + $0x10] sm:$0xff]
  %v855 = vld [vmem:[%s851 + $0x18] sm:$0xff]
  %857 = vset.pattern.permute.xlu0 0
  %858 = vperm.xlu0 %857, %v852
  %v859 = vpop.permute.xlu0 %858
  %862 = vset.pattern.permute.xlu0 0
  %863 = vperm.xlu0 %862, %v853
  %v864 = vpop.permute.xlu0 %863
  %867 = vset.pattern.permute.xlu0 0
  %868 = vperm.xlu0 %867, %v854
  %v869 = vpop.permute.xlu0 %868
  %872 = vset.pattern.permute.xlu0 0
  %873 = vperm.xlu0 %872, %v855
  %v874 = vpop.permute.xlu0 %873
  %v877 = vsel %vm52, %v845, 0
  %v880 = vsel %vm52, %v846, 0
  %v883 = vsel %vm52, %v847, 0
  %v886 = vsel %vm52, %v848, 0
  %v889 = vsel %vm65, %v850, 0
  %891 = vmatprep.subr.mxu0 0.0
  %892 = vmatpush1.msra.mxu0 0.0
  %893 = vmatprep.subr.mxu0 0.0
  %894 = vmatpush1.msra.mxu0 0.0
  %895 = vmatprep.subr.mxu0 0.0
  %896 = vmatpush1.msra.mxu0 0.0
  %897 = vmatprep.subr.mxu0 0.0
  %898 = vmatpush1.msra.mxu0 0.0
  %899 = vmatprep.subr.mxu0 0.0
  %900 = vmatpush1.msra.mxu0 0.0
  %901 = vmatprep.subr.mxu0 0.0
  %902 = vmatpush1.msra.mxu0 0.0
  %903 = vmatprep.subr.mxu0 0.0
  %904 = vmatpush1.msra.mxu0 0.0
  %905 = vmatprep.subr.mxu0 0.0
  %906 = vmatpush1.msra.mxu0 0.0
  %907 = vmatprep.subr.mxu0 0.0
  %908 = vmatpush1.msra.mxu0 0.0
  %909 = vmatprep.subr.mxu0 0.0
  %910 = vmatpush1.msra.mxu0 0.0
  %911 = vmatprep.subr.mxu0 0.0
  %912 = vmatpush1.msra.mxu0 0.0
  %913 = vmatprep.subr.mxu0 0.0
  %914 = vmatpush1.msra.mxu0 0.0
  %915 = vmatprep.subr.mxu0 0.0
  %916 = vmatpush1.msra.mxu0 0.0
  %917 = vmatprep.subr.mxu0 0.0
  %918 = vmatpush1.msra.mxu0 0.0
  %919 = vmatprep.subr.mxu0 0.0
  %920 = vmatpush1.msra.mxu0 0.0
  %921 = vmatprep.subr.mxu0 0.0
  %922 = vmatpush1.msra.mxu0 %v889
  %923 = vmatprep.subr.mxu0 0.0
  %924 = vmatpush2.msra.mxu0 0.0
  %925 = vmatprep.subr.mxu0 0.0
  %926 = vmatpush2.msra.mxu0 0.0
  %927 = vmatprep.subr.mxu0 0.0
  %928 = vmatpush2.msra.mxu0 0.0
  %929 = vmatprep.subr.mxu0 0.0
  %930 = vmatpush2.msra.mxu0 0.0
  %931 = vmatprep.subr.mxu0 0.0
  %932 = vmatpush2.msra.mxu0 0.0
  %933 = vmatprep.subr.mxu0 0.0
  %934 = vmatpush2.msra.mxu0 0.0
  %935 = vmatprep.subr.mxu0 0.0
  %936 = vmatpush2.msra.mxu0 0.0
  %937 = vmatprep.subr.mxu0 0.0
  %938 = vmatpush2.msra.mxu0 0.0
  %939 = vmatprep.subr.mxu0 0.0
  %940 = vmatpush2.msra.mxu0 0.0
  %941 = vmatprep.subr.mxu0 0.0
  %942 = vmatpush2.msra.mxu0 0.0
  %943 = vmatprep.subr.mxu0 0.0
  %944 = vmatpush2.msra.mxu0 0.0
  %945 = vmatprep.subr.mxu0 0.0
  %946 = vmatpush2.msra.mxu0 0.0
  %947 = vmatprep.subr.mxu0 0.0
  %948 = vmatpush2.msra.mxu0 0.0
  %949 = vmatprep.subr.mxu0 0.0
  %950 = vmatpush2.msra.mxu0 0.0
  %951 = vmatprep.subr.mxu0 0.0
  %952 = vmatpush2.msra.mxu0 0.0
  %953 = vmatprep.subr.mxu0 0.0
  %954 = vmatpush2.msra.mxu0 0.0
  %955 = vmatprep.mubr.f32.mxu0 0.0
  %956 = vmatmul.mubr.f32.gmra.mxu0 %v877
  %v957 = vpop.f32.mrf.mxu0
  %v958 = vadd.f32 %v859, %v957
  %v959 = vpop.f32.mrf.mxu0
  %960 = vmatprep.mubr.f32.mxu0 0.0
  %961 = vmatmul.mubr.f32.gmra.mxu0 %v880
  %v962 = vpop.f32.mrf.mxu0
  %v963 = vadd.f32 %v864, %v962
  %v964 = vpop.f32.mrf.mxu0
  %965 = vmatprep.mubr.f32.mxu0 0.0
  %966 = vmatmul.mubr.f32.gmra.mxu0 %v883
  %v967 = vpop.f32.mrf.mxu0
  %v968 = vadd.f32 %v869, %v967
  %v969 = vpop.f32.mrf.mxu0
  %970 = vmatprep.mubr.f32.mxu0 0.0
  %971 = vmatmul.mubr.f32.gmra.mxu0 %v886
  %v972 = vpop.f32.mrf.mxu0
  %v973 = vadd.f32 %v874, %v972
  %v974 = vpop.f32.mrf.mxu0
  %975 = vdwg.mxu0
  %s976 = scalar_lea.vmem [#allocation2], 192
  %977 = vst.msk [vmem:[%s976] sm:$0xff] %vm154, %v958
  %978 = vst.msk [vmem:[%s976 + $0x8] sm:$0xff] %vm154, %v963
  %979 = vst.msk [vmem:[%s976 + $0x10] sm:$0xff] %vm154, %v968
  %980 = vst.msk [vmem:[%s976 + $0x18] sm:$0xff] %vm154, %v973
  %s981 = scalar_lea.vmem %s1, 224
  %v982 = vld [vmem:[%s981] sm:$0xff]
  %v983 = vld [vmem:[%s981 + $0x8] sm:$0xff]
  %v984 = vld [vmem:[%s981 + $0x10] sm:$0xff]
  %v985 = vld [vmem:[%s981 + $0x18] sm:$0xff]
  %s986 = scalar_lea.vmem %s0, 56
  %v987 = vld [vmem:[%s986] sm:$0x1f]
  %s988 = scalar_lea.vmem %s3, 224
  %v989 = vld [vmem:[%s988] sm:$0xff]
  %v990 = vld [vmem:[%s988 + $0x8] sm:$0xff]
  %v991 = vld [vmem:[%s988 + $0x10] sm:$0xff]
  %v992 = vld [vmem:[%s988 + $0x18] sm:$0xff]
  %994 = vset.pattern.permute.xlu0 0
  %995 = vperm.xlu0 %994, %v989
  %v996 = vpop.permute.xlu0 %995
  %999 = vset.pattern.permute.xlu0 0
  %1000 = vperm.xlu0 %999, %v990
  %v1001 = vpop.permute.xlu0 %1000
  %1004 = vset.pattern.permute.xlu0 0
  %1005 = vperm.xlu0 %1004, %v991
  %v1006 = vpop.permute.xlu0 %1005
  %1009 = vset.pattern.permute.xlu0 0
  %1010 = vperm.xlu0 %1009, %v992
  %v1011 = vpop.permute.xlu0 %1010
  %v1014 = vsel %vm52, %v982, 0
  %v1017 = vsel %vm52, %v983, 0
  %v1020 = vsel %vm52, %v984, 0
  %v1023 = vsel %vm52, %v985, 0
  %v1026 = vsel %vm65, %v987, 0
  %1028 = vmatprep.subr.mxu0 0.0
  %1029 = vmatpush1.msra.mxu0 0.0
  %1030 = vmatprep.subr.mxu0 0.0
  %1031 = vmatpush1.msra.mxu0 0.0
  %1032 = vmatprep.subr.mxu0 0.0
  %1033 = vmatpush1.msra.mxu0 0.0
  %1034 = vmatprep.subr.mxu0 0.0
  %1035 = vmatpush1.msra.mxu0 0.0
  %1036 = vmatprep.subr.mxu0 0.0
  %1037 = vmatpush1.msra.mxu0 0.0
  %1038 = vmatprep.subr.mxu0 0.0
  %1039 = vmatpush1.msra.mxu0 0.0
  %1040 = vmatprep.subr.mxu0 0.0
  %1041 = vmatpush1.msra.mxu0 0.0
  %1042 = vmatprep.subr.mxu0 0.0
  %1043 = vmatpush1.msra.mxu0 0.0
  %1044 = vmatprep.subr.mxu0 0.0
  %1045 = vmatpush1.msra.mxu0 0.0
  %1046 = vmatprep.subr.mxu0 0.0
  %1047 = vmatpush1.msra.mxu0 0.0
  %1048 = vmatprep.subr.mxu0 0.0
  %1049 = vmatpush1.msra.mxu0 0.0
  %1050 = vmatprep.subr.mxu0 0.0
  %1051 = vmatpush1.msra.mxu0 0.0
  %1052 = vmatprep.subr.mxu0 0.0
  %1053 = vmatpush1.msra.mxu0 0.0
  %1054 = vmatprep.subr.mxu0 0.0
  %1055 = vmatpush1.msra.mxu0 0.0
  %1056 = vmatprep.subr.mxu0 0.0
  %1057 = vmatpush1.msra.mxu0 0.0
  %1058 = vmatprep.subr.mxu0 0.0
  %1059 = vmatpush1.msra.mxu0 %v1026
  %1060 = vmatprep.subr.mxu0 0.0
  %1061 = vmatpush2.msra.mxu0 0.0
  %1062 = vmatprep.subr.mxu0 0.0
  %1063 = vmatpush2.msra.mxu0 0.0
  %1064 = vmatprep.subr.mxu0 0.0
  %1065 = vmatpush2.msra.mxu0 0.0
  %1066 = vmatprep.subr.mxu0 0.0
  %1067 = vmatpush2.msra.mxu0 0.0
  %1068 = vmatprep.subr.mxu0 0.0
  %1069 = vmatpush2.msra.mxu0 0.0
  %1070 = vmatprep.subr.mxu0 0.0
  %1071 = vmatpush2.msra.mxu0 0.0
  %1072 = vmatprep.subr.mxu0 0.0
  %1073 = vmatpush2.msra.mxu0 0.0
  %1074 = vmatprep.subr.mxu0 0.0
  %1075 = vmatpush2.msra.mxu0 0.0
  %1076 = vmatprep.subr.mxu0 0.0
  %1077 = vmatpush2.msra.mxu0 0.0
  %1078 = vmatprep.subr.mxu0 0.0
  %1079 = vmatpush2.msra.mxu0 0.0
  %1080 = vmatprep.subr.mxu0 0.0
  %1081 = vmatpush2.msra.mxu0 0.0
  %1082 = vmatprep.subr.mxu0 0.0
  %1083 = vmatpush2.msra.mxu0 0.0
  %1084 = vmatprep.subr.mxu0 0.0
  %1085 = vmatpush2.msra.mxu0 0.0
  %1086 = vmatprep.subr.mxu0 0.0
  %1087 = vmatpush2.msra.mxu0 0.0
  %1088 = vmatprep.subr.mxu0 0.0
  %1089 = vmatpush2.msra.mxu0 0.0
  %1090 = vmatprep.subr.mxu0 0.0
  %1091 = vmatpush2.msra.mxu0 0.0
  %1092 = vmatprep.mubr.f32.mxu0 0.0
  %1093 = vmatmul.mubr.f32.gmra.mxu0 %v1014
  %v1094 = vpop.f32.mrf.mxu0
  %v1095 = vadd.f32 %v996, %v1094
  %v1096 = vpop.f32.mrf.mxu0
  %1097 = vmatprep.mubr.f32.mxu0 0.0
  %1098 = vmatmul.mubr.f32.gmra.mxu0 %v1017
  %v1099 = vpop.f32.mrf.mxu0
  %v1100 = vadd.f32 %v1001, %v1099
  %v1101 = vpop.f32.mrf.mxu0
  %1102 = vmatprep.mubr.f32.mxu0 0.0
  %1103 = vmatmul.mubr.f32.gmra.mxu0 %v1020
  %v1104 = vpop.f32.mrf.mxu0
  %v1105 = vadd.f32 %v1006, %v1104
  %v1106 = vpop.f32.mrf.mxu0
  %1107 = vmatprep.mubr.f32.mxu0 0.0
  %1108 = vmatmul.mubr.f32.gmra.mxu0 %v1023
  %v1109 = vpop.f32.mrf.mxu0
  %v1110 = vadd.f32 %v1011, %v1109
  %v1111 = vpop.f32.mrf.mxu0
  %1112 = vdwg.mxu0
  %s1113 = scalar_lea.vmem [#allocation2], 224
  %1114 = vst.msk [vmem:[%s1113] sm:$0xff] %vm154, %v1095
  %1115 = vst.msk [vmem:[%s1113 + $0x8] sm:$0xff] %vm154, %v1100
  %1116 = vst.msk [vmem:[%s1113 + $0x10] sm:$0xff] %vm154, %v1105
  %1117 = vst.msk [vmem:[%s1113 + $0x18] sm:$0xff] %vm154, %v1110
  %v1118 = vld [vmem:[#allocation2] sm:$0xff]
  %v1119 = vld [vmem:[#allocation2 + $0x8] sm:$0xff]
  %v1120 = vld [vmem:[#allocation2 + $0x10] sm:$0xff]
  %v1121 = vld [vmem:[#allocation2 + $0x18] sm:$0xff]
  %v1122 = vld [vmem:[%s2] sm:$0xff]
  %v1123 = vld [vmem:[%s2 + $0x8] sm:$0xff]
  %v1124 = vld [vmem:[%s2 + $0x10] sm:$0xff]
  %v1125 = vld [vmem:[%s2 + $0x18] sm:$0xff]
  %v1127 = vsel %vm52, %v1122, 0
  %v1130 = vsel %vm52, %v1123, 0
  %v1133 = vsel %vm52, %v1124, 0
  %v1136 = vsel %vm52, %v1125, 0
  %v1139 = vsel %vm65, 0.0, 0
  %1141 = vmatprep.subr.mxu0 0.0
  %1142 = vmatpush1.msra.mxu0 0.0
  %1143 = vmatprep.subr.mxu0 0.0
  %1144 = vmatpush1.msra.mxu0 0.0
  %1145 = vmatprep.subr.mxu0 0.0
  %1146 = vmatpush1.msra.mxu0 0.0
  %1147 = vmatprep.subr.mxu0 0.0
  %1148 = vmatpush1.msra.mxu0 0.0
  %1149 = vmatprep.subr.mxu0 0.0
  %1150 = vmatpush1.msra.mxu0 0.0
  %1151 = vmatprep.subr.mxu0 0.0
  %1152 = vmatpush1.msra.mxu0 0.0
  %1153 = vmatprep.subr.mxu0 0.0
  %1154 = vmatpush1.msra.mxu0 0.0
  %1155 = vmatprep.subr.mxu0 0.0
  %1156 = vmatpush1.msra.mxu0 0.0
  %1157 = vmatprep.subr.mxu0 0.0
  %1158 = vmatpush1.msra.mxu0 0.0
  %1159 = vmatprep.subr.mxu0 0.0
  %1160 = vmatpush1.msra.mxu0 0.0
  %1161 = vmatprep.subr.mxu0 0.0
  %1162 = vmatpush1.msra.mxu0 0.0
  %1163 = vmatprep.subr.mxu0 0.0
  %1164 = vmatpush1.msra.mxu0 0.0
  %1165 = vmatprep.subr.mxu0 0.0
  %1166 = vmatpush1.msra.mxu0 0.0
  %1167 = vmatprep.subr.mxu0 0.0
  %1168 = vmatpush1.msra.mxu0 0.0
  %1169 = vmatprep.subr.mxu0 0.0
  %1170 = vmatpush1.msra.mxu0 0.0
  %1171 = vmatprep.subr.mxu0 0.0
  %1172 = vmatpush1.msra.mxu0 %v1139
  %1173 = vmatprep.subr.mxu0 0.0
  %1174 = vmatpush2.msra.mxu0 0.0
  %1175 = vmatprep.subr.mxu0 0.0
  %1176 = vmatpush2.msra.mxu0 0.0
  %1177 = vmatprep.subr.mxu0 0.0
  %1178 = vmatpush2.msra.mxu0 0.0
  %1179 = vmatprep.subr.mxu0 0.0
  %1180 = vmatpush2.msra.mxu0 0.0
  %1181 = vmatprep.subr.mxu0 0.0
  %1182 = vmatpush2.msra.mxu0 0.0
  %1183 = vmatprep.subr.mxu0 0.0
  %1184 = vmatpush2.msra.mxu0 0.0
  %1185 = vmatprep.subr.mxu0 0.0
  %1186 = vmatpush2.msra.mxu0 0.0
  %1187 = vmatprep.subr.mxu0 0.0
  %1188 = vmatpush2.msra.mxu0 0.0
  %1189 = vmatprep.subr.mxu0 0.0
  %1190 = vmatpush2.msra.mxu0 0.0
  %1191 = vmatprep.subr.mxu0 0.0
  %1192 = vmatpush2.msra.mxu0 0.0
  %1193 = vmatprep.subr.mxu0 0.0
  %1194 = vmatpush2.msra.mxu0 0.0
  %1195 = vmatprep.subr.mxu0 0.0
  %1196 = vmatpush2.msra.mxu0 0.0
  %1197 = vmatprep.subr.mxu0 0.0
  %1198 = vmatpush2.msra.mxu0 0.0
  %1199 = vmatprep.subr.mxu0 0.0
  %1200 = vmatpush2.msra.mxu0 0.0
  %1201 = vmatprep.subr.mxu0 0.0
  %1202 = vmatpush2.msra.mxu0 0.0
  %1203 = vmatprep.subr.mxu0 0.0
  %1204 = vmatpush2.msra.mxu0 0.0
  %1205 = vmatprep.mubr.f32.mxu0 0.0
  %1206 = vmatmul.mubr.f32.gmra.mxu0 %v1127
  %v1207 = vpop.f32.mrf.mxu0
  %v1208 = vadd.f32 0.0, %v1207
  %v1209 = vpop.f32.mrf.mxu0
  %1210 = vmatprep.mubr.f32.mxu0 0.0
  %1211 = vmatmul.mubr.f32.gmra.mxu0 %v1130
  %v1212 = vpop.f32.mrf.mxu0
  %v1213 = vadd.f32 0.0, %v1212
  %v1214 = vpop.f32.mrf.mxu0
  %1215 = vmatprep.mubr.f32.mxu0 0.0
  %1216 = vmatmul.mubr.f32.gmra.mxu0 %v1133
  %v1217 = vpop.f32.mrf.mxu0
  %v1218 = vadd.f32 0.0, %v1217
  %v1219 = vpop.f32.mrf.mxu0
  %1220 = vmatprep.mubr.f32.mxu0 0.0
  %1221 = vmatmul.mubr.f32.gmra.mxu0 %v1136
  %v1222 = vpop.f32.mrf.mxu0
  %v1223 = vadd.f32 0.0, %v1222
  %v1224 = vpop.f32.mrf.mxu0
  %1225 = vdwg.mxu0
  %v1226 = vadd.f32 %v1118, %v1208
  %v1227 = vadd.f32 %v1119, %v1213
  %v1228 = vadd.f32 %v1120, %v1218
  %v1229 = vadd.f32 %v1121, %v1223
  %v1230 = vmax.f32 %v1226, 0.0
  %v1231 = vmax.f32 %v1227, 0.0
  %v1232 = vmax.f32 %v1228, 0.0
  %v1233 = vmax.f32 %v1229, 0.0
  %v1234 = vld [vmem:[%s4] sm:$0x1f]
  %v1235 = vld [vmem:[%s5] sm:$0x1f]
  %1237 = vset.pattern.permute.xlu0 0
  %1238 = vperm.xlu0 %1237, %v1235
  %v1239 = vpop.permute.xlu0 %1238
  %vm1241 = vcmask 261120
  %v1243 = vsel %vm1241, %v1234, 0
  %1245 = vmatprep.subr.mxu0 0.0
  %1246 = vmatpush1.msra.mxu0 0.0
  %1247 = vmatprep.subr.mxu0 0.0
  %1248 = vmatpush1.msra.mxu0 0.0
  %1249 = vmatprep.subr.mxu0 0.0
  %1250 = vmatpush1.msra.mxu0 0.0
  %1251 = vmatprep.subr.mxu0 0.0
  %1252 = vmatpush1.msra.mxu0 0.0
  %1253 = vmatprep.subr.mxu0 0.0
  %1254 = vmatpush1.msra.mxu0 0.0
  %1255 = vmatprep.subr.mxu0 0.0
  %1256 = vmatpush1.msra.mxu0 0.0
  %1257 = vmatprep.subr.mxu0 0.0
  %1258 = vmatpush1.msra.mxu0 0.0
  %1259 = vmatprep.subr.mxu0 0.0
  %1260 = vmatpush1.msra.mxu0 0.0
  %1261 = vmatprep.subr.mxu0 0.0
  %1262 = vmatpush1.msra.mxu0 0.0
  %1263 = vmatprep.subr.mxu0 0.0
  %1264 = vmatpush1.msra.mxu0 0.0
  %1265 = vmatprep.subr.mxu0 0.0
  %1266 = vmatpush1.msra.mxu0 0.0
  %1267 = vmatprep.subr.mxu0 0.0
  %1268 = vmatpush1.msra.mxu0 0.0
  %1269 = vmatprep.subr.mxu0 0.0
  %1270 = vmatpush1.msra.mxu0 %v1233
  %1271 = vmatprep.subr.mxu0 0.0
  %1272 = vmatpush1.msra.mxu0 %v1232
  %1273 = vmatprep.subr.mxu0 0.0
  %1274 = vmatpush1.msra.mxu0 %v1231
  %1275 = vmatprep.subr.mxu0 0.0
  %1276 = vmatpush1.msra.mxu0 %v1230
  %1277 = vmatprep.subr.mxu0 0.0
  %1278 = vmatpush2.msra.mxu0 0.0
  %1279 = vmatprep.subr.mxu0 0.0
  %1280 = vmatpush2.msra.mxu0 0.0
  %1281 = vmatprep.subr.mxu0 0.0
  %1282 = vmatpush2.msra.mxu0 0.0
  %1283 = vmatprep.subr.mxu0 0.0
  %1284 = vmatpush2.msra.mxu0 0.0
  %1285 = vmatprep.subr.mxu0 0.0
  %1286 = vmatpush2.msra.mxu0 0.0
  %1287 = vmatprep.subr.mxu0 0.0
  %1288 = vmatpush2.msra.mxu0 0.0
  %1289 = vmatprep.subr.mxu0 0.0
  %1290 = vmatpush2.msra.mxu0 0.0
  %1291 = vmatprep.subr.mxu0 0.0
  %1292 = vmatpush2.msra.mxu0 0.0
  %1293 = vmatprep.subr.mxu0 0.0
  %1294 = vmatpush2.msra.mxu0 0.0
  %1295 = vmatprep.subr.mxu0 0.0
  %1296 = vmatpush2.msra.mxu0 0.0
  %1297 = vmatprep.subr.mxu0 0.0
  %1298 = vmatpush2.msra.mxu0 0.0
  %1299 = vmatprep.subr.mxu0 0.0
  %1300 = vmatpush2.msra.mxu0 0.0
  %1301 = vmatprep.subr.mxu0 0.0
  %1302 = vmatpush2.msra.mxu0 0.0
  %1303 = vmatprep.subr.mxu0 0.0
  %1304 = vmatpush2.msra.mxu0 0.0
  %1305 = vmatprep.subr.mxu0 0.0
  %1306 = vmatpush2.msra.mxu0 0.0
  %1307 = vmatprep.subr.mxu0 0.0
  %1308 = vmatpush2.msra.mxu0 0.0
  %1309 = vmatprep.mubr.f32.mxu0 0.0
  %1310 = vmatmul.mubr.f32.gmra.mxu0 %v1243
  %v1311 = vpop.f32.mrf.mxu0
  %v1312 = vadd.f32 %v1239, %v1311
  %v1313 = vpop.f32.mrf.mxu0
  %1314 = vdwg.mxu0
  %vm1315 = vcmask 126976
  %1316 = vst.msk [vmem:[%s6] sm:$0x1f] %vm1315, %v1312
  %v1317 = vld [vmem:[%s291] sm:$0xff]
  %v1318 = vld [vmem:[%s291 + $0x8] sm:$0xff]
  %v1319 = vld [vmem:[%s291 + $0x10] sm:$0xff]
  %v1320 = vld [vmem:[%s291 + $0x18] sm:$0xff]
  %s1321 = scalar_lea.vmem %s2, 32
  %v1322 = vld [vmem:[%s1321] sm:$0xff]
  %v1323 = vld [vmem:[%s1321 + $0x8] sm:$0xff]
  %v1324 = vld [vmem:[%s1321 + $0x10] sm:$0xff]
  %v1325 = vld [vmem:[%s1321 + $0x18] sm:$0xff]
  %v1327 = vsel %vm52, %v1322, 0
  %v1330 = vsel %vm52, %v1323, 0
  %v1333 = vsel %vm52, %v1324, 0
  %v1336 = vsel %vm52, %v1325, 0
  %v1339 = vsel %vm65, %v1312, 0
  %1341 = vmatprep.subr.mxu0 0.0
  %1342 = vmatpush1.msra.mxu0 0.0
  %1343 = vmatprep.subr.mxu0 0.0
  %1344 = vmatpush1.msra.mxu0 0.0
  %1345 = vmatprep.subr.mxu0 0.0
  %1346 = vmatpush1.msra.mxu0 0.0
  %1347 = vmatprep.subr.mxu0 0.0
  %1348 = vmatpush1.msra.mxu0 0.0
  %1349 = vmatprep.subr.mxu0 0.0
  %1350 = vmatpush1.msra.mxu0 0.0
  %1351 = vmatprep.subr.mxu0 0.0
  %1352 = vmatpush1.msra.mxu0 0.0
  %1353 = vmatprep.subr.mxu0 0.0
  %1354 = vmatpush1.msra.mxu0 0.0
  %1355 = vmatprep.subr.mxu0 0.0
  %1356 = vmatpush1.msra.mxu0 0.0
  %1357 = vmatprep.subr.mxu0 0.0
  %1358 = vmatpush1.msra.mxu0 0.0
  %1359 = vmatprep.subr.mxu0 0.0
  %1360 = vmatpush1.msra.mxu0 0.0
  %1361 = vmatprep.subr.mxu0 0.0
  %1362 = vmatpush1.msra.mxu0 0.0
  %1363 = vmatprep.subr.mxu0 0.0
  %1364 = vmatpush1.msra.mxu0 0.0
  %1365 = vmatprep.subr.mxu0 0.0
  %1366 = vmatpush1.msra.mxu0 0.0
  %1367 = vmatprep.subr.mxu0 0.0
  %1368 = vmatpush1.msra.mxu0 0.0
  %1369 = vmatprep.subr.mxu0 0.0
  %1370 = vmatpush1.msra.mxu0 0.0
  %1371 = vmatprep.subr.mxu0 0.0
  %1372 = vmatpush1.msra.mxu0 %v1339
  %1373 = vmatprep.subr.mxu0 0.0
  %1374 = vmatpush2.msra.mxu0 0.0
  %1375 = vmatprep.subr.mxu0 0.0
  %1376 = vmatpush2.msra.mxu0 0.0
  %1377 = vmatprep.subr.mxu0 0.0
  %1378 = vmatpush2.msra.mxu0 0.0
  %1379 = vmatprep.subr.mxu0 0.0
  %1380 = vmatpush2.msra.mxu0 0.0
  %1381 = vmatprep.subr.mxu0 0.0
  %1382 = vmatpush2.msra.mxu0 0.0
  %1383 = vmatprep.subr.mxu0 0.0
  %1384 = vmatpush2.msra.mxu0 0.0
  %1385 = vmatprep.subr.mxu0 0.0
  %1386 = vmatpush2.msra.mxu0 0.0
  %1387 = vmatprep.subr.mxu0 0.0
  %1388 = vmatpush2.msra.mxu0 0.0
  %1389 = vmatprep.subr.mxu0 0.0
  %1390 = vmatpush2.msra.mxu0 0.0
  %1391 = vmatprep.subr.mxu0 0.0
  %1392 = vmatpush2.msra.mxu0 0.0
  %1393 = vmatprep.subr.mxu0 0.0
  %1394 = vmatpush2.msra.mxu0 0.0
  %1395 = vmatprep.subr.mxu0 0.0
  %1396 = vmatpush2.msra.mxu0 0.0
  %1397 = vmatprep.subr.mxu0 0.0
  %1398 = vmatpush2.msra.mxu0 0.0
  %1399 = vmatprep.subr.mxu0 0.0
  %1400 = vmatpush2.msra.mxu0 0.0
  %1401 = vmatprep.subr.mxu0 0.0
  %1402 = vmatpush2.msra.mxu0 0.0
  %1403 = vmatprep.subr.mxu0 0.0
  %1404 = vmatpush2.msra.mxu0 0.0
  %1405 = vmatprep.mubr.f32.mxu0 0.0
  %1406 = vmatmul.mubr.f32.gmra.mxu0 %v1327
  %v1407 = vpop.f32.mrf.mxu0
  %v1408 = vadd.f32 0.0, %v1407
  %v1409 = vpop.f32.mrf.mxu0
  %1410 = vmatprep.mubr.f32.mxu0 0.0
  %1411 = vmatmul.mubr.f32.gmra.mxu0 %v1330
  %v1412 = vpop.f32.mrf.mxu0
  %v1413 = vadd.f32 0.0, %v1412
  %v1414 = vpop.f32.mrf.mxu0
  %1415 = vmatprep.mubr.f32.mxu0 0.0
  %1416 = vmatmul.mubr.f32.gmra.mxu0 %v1333
  %v1417 = vpop.f32.mrf.mxu0
  %v1418 = vadd.f32 0.0, %v1417
  %v1419 = vpop.f32.mrf.mxu0
  %1420 = vmatprep.mubr.f32.mxu0 0.0
  %1421 = vmatmul.mubr.f32.gmra.mxu0 %v1336
  %v1422 = vpop.f32.mrf.mxu0
  %v1423 = vadd.f32 0.0, %v1422
  %v1424 = vpop.f32.mrf.mxu0
  %1425 = vdwg.mxu0
  %v1426 = vadd.f32 %v1317, %v1408
  %v1427 = vadd.f32 %v1318, %v1413
  %v1428 = vadd.f32 %v1319, %v1418
  %v1429 = vadd.f32 %v1320, %v1423
  %v1430 = vmax.f32 %v1426, 0.0
  %v1431 = vmax.f32 %v1427, 0.0
  %v1432 = vmax.f32 %v1428, 0.0
  %v1433 = vmax.f32 %v1429, 0.0
  %s1434 = scalar_lea.vmem %s4, 8
  %v1435 = vld [vmem:[%s1434] sm:$0x1f]
  %s1436 = scalar_lea.vmem %s5, 8
  %v1437 = vld [vmem:[%s1436] sm:$0x1f]
  %1439 = vset.pattern.permute.xlu0 0
  %1440 = vperm.xlu0 %1439, %v1437
  %v1441 = vpop.permute.xlu0 %1440
  %v1444 = vsel %vm1241, %v1435, 0
  %1446 = vmatprep.subr.mxu0 0.0
  %1447 = vmatpush1.msra.mxu0 0.0
  %1448 = vmatprep.subr.mxu0 0.0
  %1449 = vmatpush1.msra.mxu0 0.0
  %1450 = vmatprep.subr.mxu0 0.0
  %1451 = vmatpush1.msra.mxu0 0.0
  %1452 = vmatprep.subr.mxu0 0.0
  %1453 = vmatpush1.msra.mxu0 0.0
  %1454 = vmatprep.subr.mxu0 0.0
  %1455 = vmatpush1.msra.mxu0 0.0
  %1456 = vmatprep.subr.mxu0 0.0
  %1457 = vmatpush1.msra.mxu0 0.0
  %1458 = vmatprep.subr.mxu0 0.0
  %1459 = vmatpush1.msra.mxu0 0.0
  %1460 = vmatprep.subr.mxu0 0.0
  %1461 = vmatpush1.msra.mxu0 0.0
  %1462 = vmatprep.subr.mxu0 0.0
  %1463 = vmatpush1.msra.mxu0 0.0
  %1464 = vmatprep.subr.mxu0 0.0
  %1465 = vmatpush1.msra.mxu0 0.0
  %1466 = vmatprep.subr.mxu0 0.0
  %1467 = vmatpush1.msra.mxu0 0.0
  %1468 = vmatprep.subr.mxu0 0.0
  %1469 = vmatpush1.msra.mxu0 0.0
  %1470 = vmatprep.subr.mxu0 0.0
  %1471 = vmatpush1.msra.mxu0 %v1433
  %1472 = vmatprep.subr.mxu0 0.0
  %1473 = vmatpush1.msra.mxu0 %v1432
  %1474 = vmatprep.subr.mxu0 0.0
  %1475 = vmatpush1.msra.mxu0 %v1431
  %1476 = vmatprep.subr.mxu0 0.0
  %1477 = vmatpush1.msra.mxu0 %v1430
  %1478 = vmatprep.subr.mxu0 0.0
  %1479 = vmatpush2.msra.mxu0 0.0
  %1480 = vmatprep.subr.mxu0 0.0
  %1481 = vmatpush2.msra.mxu0 0.0
  %1482 = vmatprep.subr.mxu0 0.0
  %1483 = vmatpush2.msra.mxu0 0.0
  %1484 = vmatprep.subr.mxu0 0.0
  %1485 = vmatpush2.msra.mxu0 0.0
  %1486 = vmatprep.subr.mxu0 0.0
  %1487 = vmatpush2.msra.mxu0 0.0
  %1488 = vmatprep.subr.mxu0 0.0
  %1489 = vmatpush2.msra.mxu0 0.0
  %1490 = vmatprep.subr.mxu0 0.0
  %1491 = vmatpush2.msra.mxu0 0.0
  %1492 = vmatprep.subr.mxu0 0.0
  %1493 = vmatpush2.msra.mxu0 0.0
  %1494 = vmatprep.subr.mxu0 0.0
  %1495 = vmatpush2.msra.mxu0 0.0
  %1496 = vmatprep.subr.mxu0 0.0
  %1497 = vmatpush2.msra.mxu0 0.0
  %1498 = vmatprep.subr.mxu0 0.0
  %1499 = vmatpush2.msra.mxu0 0.0
  %1500 = vmatprep.subr.mxu0 0.0
  %1501 = vmatpush2.msra.mxu0 0.0
  %1502 = vmatprep.subr.mxu0 0.0
  %1503 = vmatpush2.msra.mxu0 0.0
  %1504 = vmatprep.subr.mxu0 0.0
  %1505 = vmatpush2.msra.mxu0 0.0
  %1506 = vmatprep.subr.mxu0 0.0
  %1507 = vmatpush2.msra.mxu0 0.0
  %1508 = vmatprep.subr.mxu0 0.0
  %1509 = vmatpush2.msra.mxu0 0.0
  %1510 = vmatprep.mubr.f32.mxu0 0.0
  %1511 = vmatmul.mubr.f32.gmra.mxu0 %v1444
  %v1512 = vpop.f32.mrf.mxu0
  %v1513 = vadd.f32 %v1441, %v1512
  %v1514 = vpop.f32.mrf.mxu0
  %1515 = vdwg.mxu0
  %s1516 = scalar_lea.vmem %s6, 8
  %1517 = vst.msk [vmem:[%s1516] sm:$0x1f] %vm1315, %v1513
  %v1518 = vld [vmem:[%s428] sm:$0xff]
  %v1519 = vld [vmem:[%s428 + $0x8] sm:$0xff]
  %v1520 = vld [vmem:[%s428 + $0x10] sm:$0xff]
  %v1521 = vld [vmem:[%s428 + $0x18] sm:$0xff]
  %s1522 = scalar_lea.vmem %s2, 64
  %v1523 = vld [vmem:[%s1522] sm:$0xff]
  %v1524 = vld [vmem:[%s1522 + $0x8] sm:$0xff]
  %v1525 = vld [vmem:[%s1522 + $0x10] sm:$0xff]
  %v1526 = vld [vmem:[%s1522 + $0x18] sm:$0xff]
  %v1528 = vsel %vm52, %v1523, 0
  %v1531 = vsel %vm52, %v1524, 0
  %v1534 = vsel %vm52, %v1525, 0
  %v1537 = vsel %vm52, %v1526, 0
  %v1540 = vsel %vm65, %v1513, 0
  %1542 = vmatprep.subr.mxu0 0.0
  %1543 = vmatpush1.msra.mxu0 0.0
  %1544 = vmatprep.subr.mxu0 0.0
  %1545 = vmatpush1.msra.mxu0 0.0
  %1546 = vmatprep.subr.mxu0 0.0
  %1547 = vmatpush1.msra.mxu0 0.0
  %1548 = vmatprep.subr.mxu0 0.0
  %1549 = vmatpush1.msra.mxu0 0.0
  %1550 = vmatprep.subr.mxu0 0.0
  %1551 = vmatpush1.msra.mxu0 0.0
  %1552 = vmatprep.subr.mxu0 0.0
  %1553 = vmatpush1.msra.mxu0 0.0
  %1554 = vmatprep.subr.mxu0 0.0
  %1555 = vmatpush1.msra.mxu0 0.0
  %1556 = vmatprep.subr.mxu0 0.0
  %1557 = vmatpush1.msra.mxu0 0.0
  %1558 = vmatprep.subr.mxu0 0.0
  %1559 = vmatpush1.msra.mxu0 0.0
  %1560 = vmatprep.subr.mxu0 0.0
  %1561 = vmatpush1.msra.mxu0 0.0
  %1562 = vmatprep.subr.mxu0 0.0
  %1563 = vmatpush1.msra.mxu0 0.0
  %1564 = vmatprep.subr.mxu0 0.0
  %1565 = vmatpush1.msra.mxu0 0.0
  %1566 = vmatprep.subr.mxu0 0.0
  %1567 = vmatpush1.msra.mxu0 0.0
  %1568 = vmatprep.subr.mxu0 0.0
  %1569 = vmatpush1.msra.mxu0 0.0
  %1570 = vmatprep.subr.mxu0 0.0
  %1571 = vmatpush1.msra.mxu0 0.0
  %1572 = vmatprep.subr.mxu0 0.0
  %1573 = vmatpush1.msra.mxu0 %v1540
  %1574 = vmatprep.subr.mxu0 0.0
  %1575 = vmatpush2.msra.mxu0 0.0
  %1576 = vmatprep.subr.mxu0 0.0
  %1577 = vmatpush2.msra.mxu0 0.0
  %1578 = vmatprep.subr.mxu0 0.0
  %1579 = vmatpush2.msra.mxu0 0.0
  %1580 = vmatprep.subr.mxu0 0.0
  %1581 = vmatpush2.msra.mxu0 0.0
  %1582 = vmatprep.subr.mxu0 0.0
  %1583 = vmatpush2.msra.mxu0 0.0
  %1584 = vmatprep.subr.mxu0 0.0
  %1585 = vmatpush2.msra.mxu0 0.0
  %1586 = vmatprep.subr.mxu0 0.0
  %1587 = vmatpush2.msra.mxu0 0.0
  %1588 = vmatprep.subr.mxu0 0.0
  %1589 = vmatpush2.msra.mxu0 0.0
  %1590 = vmatprep.subr.mxu0 0.0
  %1591 = vmatpush2.msra.mxu0 0.0
  %1592 = vmatprep.subr.mxu0 0.0
  %1593 = vmatpush2.msra.mxu0 0.0
  %1594 = vmatprep.subr.mxu0 0.0
  %1595 = vmatpush2.msra.mxu0 0.0
  %1596 = vmatprep.subr.mxu0 0.0
  %1597 = vmatpush2.msra.mxu0 0.0
  %1598 = vmatprep.subr.mxu0 0.0
  %1599 = vmatpush2.msra.mxu0 0.0
  %1600 = vmatprep.subr.mxu0 0.0
  %1601 = vmatpush2.msra.mxu0 0.0
  %1602 = vmatprep.subr.mxu0 0.0
  %1603 = vmatpush2.msra.mxu0 0.0
  %1604 = vmatprep.subr.mxu0 0.0
  %1605 = vmatpush2.msra.mxu0 0.0
  %1606 = vmatprep.mubr.f32.mxu0 0.0
  %1607 = vmatmul.mubr.f32.gmra.mxu0 %v1528
  %v1608 = vpop.f32.mrf.mxu0
  %v1609 = vadd.f32 0.0, %v1608
  %v1610 = vpop.f32.mrf.mxu0
  %1611 = vmatprep.mubr.f32.mxu0 0.0
  %1612 = vmatmul.mubr.f32.gmra.mxu0 %v1531
  %v1613 = vpop.f32.mrf.mxu0
  %v1614 = vadd.f32 0.0, %v1613
  %v1615 = vpop.f32.mrf.mxu0
  %1616 = vmatprep.mubr.f32.mxu0 0.0
  %1617 = vmatmul.mubr.f32.gmra.mxu0 %v1534
  %v1618 = vpop.f32.mrf.mxu0
  %v1619 = vadd.f32 0.0, %v1618
  %v1620 = vpop.f32.mrf.mxu0
  %1621 = vmatprep.mubr.f32.mxu0 0.0
  %1622 = vmatmul.mubr.f32.gmra.mxu0 %v1537
  %v1623 = vpop.f32.mrf.mxu0
  %v1624 = vadd.f32 0.0, %v1623
  %v1625 = vpop.f32.mrf.mxu0
  %1626 = vdwg.mxu0
  %v1627 = vadd.f32 %v1518, %v1609
  %v1628 = vadd.f32 %v1519, %v1614
  %v1629 = vadd.f32 %v1520, %v1619
  %v1630 = vadd.f32 %v1521, %v1624
  %v1631 = vmax.f32 %v1627, 0.0
  %v1632 = vmax.f32 %v1628, 0.0
  %v1633 = vmax.f32 %v1629, 0.0
  %v1634 = vmax.f32 %v1630, 0.0
  %s1635 = scalar_lea.vmem %s4, 16
  %v1636 = vld [vmem:[%s1635] sm:$0x1f]
  %s1637 = scalar_lea.vmem %s5, 16
  %v1638 = vld [vmem:[%s1637] sm:$0x1f]
  %1640 = vset.pattern.permute.xlu0 0
  %1641 = vperm.xlu0 %1640, %v1638
  %v1642 = vpop.permute.xlu0 %1641
  %v1645 = vsel %vm1241, %v1636, 0
  %1647 = vmatprep.subr.mxu0 0.0
  %1648 = vmatpush1.msra.mxu0 0.0
  %1649 = vmatprep.subr.mxu0 0.0
  %1650 = vmatpush1.msra.mxu0 0.0
  %1651 = vmatprep.subr.mxu0 0.0
  %1652 = vmatpush1.msra.mxu0 0.0
  %1653 = vmatprep.subr.mxu0 0.0
  %1654 = vmatpush1.msra.mxu0 0.0
  %1655 = vmatprep.subr.mxu0 0.0
  %1656 = vmatpush1.msra.mxu0 0.0
  %1657 = vmatprep.subr.mxu0 0.0
  %1658 = vmatpush1.msra.mxu0 0.0
  %1659 = vmatprep.subr.mxu0 0.0
  %1660 = vmatpush1.msra.mxu0 0.0
  %1661 = vmatprep.subr.mxu0 0.0
  %1662 = vmatpush1.msra.mxu0 0.0
  %1663 = vmatprep.subr.mxu0 0.0
  %1664 = vmatpush1.msra.mxu0 0.0
  %1665 = vmatprep.subr.mxu0 0.0
  %1666 = vmatpush1.msra.mxu0 0.0
  %1667 = vmatprep.subr.mxu0 0.0
  %1668 = vmatpush1.msra.mxu0 0.0
  %1669 = vmatprep.subr.mxu0 0.0
  %1670 = vmatpush1.msra.mxu0 0.0
  %1671 = vmatprep.subr.mxu0 0.0
  %1672 = vmatpush1.msra.mxu0 %v1634
  %1673 = vmatprep.subr.mxu0 0.0
  %1674 = vmatpush1.msra.mxu0 %v1633
  %1675 = vmatprep.subr.mxu0 0.0
  %1676 = vmatpush1.msra.mxu0 %v1632
  %1677 = vmatprep.subr.mxu0 0.0
  %1678 = vmatpush1.msra.mxu0 %v1631
  %1679 = vmatprep.subr.mxu0 0.0
  %1680 = vmatpush2.msra.mxu0 0.0
  %1681 = vmatprep.subr.mxu0 0.0
  %1682 = vmatpush2.msra.mxu0 0.0
  %1683 = vmatprep.subr.mxu0 0.0
  %1684 = vmatpush2.msra.mxu0 0.0
  %1685 = vmatprep.subr.mxu0 0.0
  %1686 = vmatpush2.msra.mxu0 0.0
  %1687 = vmatprep.subr.mxu0 0.0
  %1688 = vmatpush2.msra.mxu0 0.0
  %1689 = vmatprep.subr.mxu0 0.0
  %1690 = vmatpush2.msra.mxu0 0.0
  %1691 = vmatprep.subr.mxu0 0.0
  %1692 = vmatpush2.msra.mxu0 0.0
  %1693 = vmatprep.subr.mxu0 0.0
  %1694 = vmatpush2.msra.mxu0 0.0
  %1695 = vmatprep.subr.mxu0 0.0
  %1696 = vmatpush2.msra.mxu0 0.0
  %1697 = vmatprep.subr.mxu0 0.0
  %1698 = vmatpush2.msra.mxu0 0.0
  %1699 = vmatprep.subr.mxu0 0.0
  %1700 = vmatpush2.msra.mxu0 0.0
  %1701 = vmatprep.subr.mxu0 0.0
  %1702 = vmatpush2.msra.mxu0 0.0
  %1703 = vmatprep.subr.mxu0 0.0
  %1704 = vmatpush2.msra.mxu0 0.0
  %1705 = vmatprep.subr.mxu0 0.0
  %1706 = vmatpush2.msra.mxu0 0.0
  %1707 = vmatprep.subr.mxu0 0.0
  %1708 = vmatpush2.msra.mxu0 0.0
  %1709 = vmatprep.subr.mxu0 0.0
  %1710 = vmatpush2.msra.mxu0 0.0
  %1711 = vmatprep.mubr.f32.mxu0 0.0
  %1712 = vmatmul.mubr.f32.gmra.mxu0 %v1645
  %v1713 = vpop.f32.mrf.mxu0
  %v1714 = vadd.f32 %v1642, %v1713
  %v1715 = vpop.f32.mrf.mxu0
  %1716 = vdwg.mxu0
  %s1717 = scalar_lea.vmem %s6, 16
  %1718 = vst.msk [vmem:[%s1717] sm:$0x1f] %vm1315, %v1714
  %v1719 = vld [vmem:[%s565] sm:$0xff]
  %v1720 = vld [vmem:[%s565 + $0x8] sm:$0xff]
  %v1721 = vld [vmem:[%s565 + $0x10] sm:$0xff]
  %v1722 = vld [vmem:[%s565 + $0x18] sm:$0xff]
  %s1723 = scalar_lea.vmem %s2, 96
  %v1724 = vld [vmem:[%s1723] sm:$0xff]
  %v1725 = vld [vmem:[%s1723 + $0x8] sm:$0xff]
  %v1726 = vld [vmem:[%s1723 + $0x10] sm:$0xff]
  %v1727 = vld [vmem:[%s1723 + $0x18] sm:$0xff]
  %v1729 = vsel %vm52, %v1724, 0
  %v1732 = vsel %vm52, %v1725, 0
  %v1735 = vsel %vm52, %v1726, 0
  %v1738 = vsel %vm52, %v1727, 0
  %v1741 = vsel %vm65, %v1714, 0
  %1743 = vmatprep.subr.mxu0 0.0
  %1744 = vmatpush1.msra.mxu0 0.0
  %1745 = vmatprep.subr.mxu0 0.0
  %1746 = vmatpush1.msra.mxu0 0.0
  %1747 = vmatprep.subr.mxu0 0.0
  %1748 = vmatpush1.msra.mxu0 0.0
  %1749 = vmatprep.subr.mxu0 0.0
  %1750 = vmatpush1.msra.mxu0 0.0
  %1751 = vmatprep.subr.mxu0 0.0
  %1752 = vmatpush1.msra.mxu0 0.0
  %1753 = vmatprep.subr.mxu0 0.0
  %1754 = vmatpush1.msra.mxu0 0.0
  %1755 = vmatprep.subr.mxu0 0.0
  %1756 = vmatpush1.msra.mxu0 0.0
  %1757 = vmatprep.subr.mxu0 0.0
  %1758 = vmatpush1.msra.mxu0 0.0
  %1759 = vmatprep.subr.mxu0 0.0
  %1760 = vmatpush1.msra.mxu0 0.0
  %1761 = vmatprep.subr.mxu0 0.0
  %1762 = vmatpush1.msra.mxu0 0.0
  %1763 = vmatprep.subr.mxu0 0.0
  %1764 = vmatpush1.msra.mxu0 0.0
  %1765 = vmatprep.subr.mxu0 0.0
  %1766 = vmatpush1.msra.mxu0 0.0
  %1767 = vmatprep.subr.mxu0 0.0
  %1768 = vmatpush1.msra.mxu0 0.0
  %1769 = vmatprep.subr.mxu0 0.0
  %1770 = vmatpush1.msra.mxu0 0.0
  %1771 = vmatprep.subr.mxu0 0.0
  %1772 = vmatpush1.msra.mxu0 0.0
  %1773 = vmatprep.subr.mxu0 0.0
  %1774 = vmatpush1.msra.mxu0 %v1741
  %1775 = vmatprep.subr.mxu0 0.0
  %1776 = vmatpush2.msra.mxu0 0.0
  %1777 = vmatprep.subr.mxu0 0.0
  %1778 = vmatpush2.msra.mxu0 0.0
  %1779 = vmatprep.subr.mxu0 0.0
  %1780 = vmatpush2.msra.mxu0 0.0
  %1781 = vmatprep.subr.mxu0 0.0
  %1782 = vmatpush2.msra.mxu0 0.0
  %1783 = vmatprep.subr.mxu0 0.0
  %1784 = vmatpush2.msra.mxu0 0.0
  %1785 = vmatprep.subr.mxu0 0.0
  %1786 = vmatpush2.msra.mxu0 0.0
  %1787 = vmatprep.subr.mxu0 0.0
  %1788 = vmatpush2.msra.mxu0 0.0
  %1789 = vmatprep.subr.mxu0 0.0
  %1790 = vmatpush2.msra.mxu0 0.0
  %1791 = vmatprep.subr.mxu0 0.0
  %1792 = vmatpush2.msra.mxu0 0.0
  %1793 = vmatprep.subr.mxu0 0.0
  %1794 = vmatpush2.msra.mxu0 0.0
  %1795 = vmatprep.subr.mxu0 0.0
  %1796 = vmatpush2.msra.mxu0 0.0
  %1797 = vmatprep.subr.mxu0 0.0
  %1798 = vmatpush2.msra.mxu0 0.0
  %1799 = vmatprep.subr.mxu0 0.0
  %1800 = vmatpush2.msra.mxu0 0.0
  %1801 = vmatprep.subr.mxu0 0.0
  %1802 = vmatpush2.msra.mxu0 0.0
  %1803 = vmatprep.subr.mxu0 0.0
  %1804 = vmatpush2.msra.mxu0 0.0
  %1805 = vmatprep.subr.mxu0 0.0
  %1806 = vmatpush2.msra.mxu0 0.0
  %1807 = vmatprep.mubr.f32.mxu0 0.0
  %1808 = vmatmul.mubr.f32.gmra.mxu0 %v1729
  %v1809 = vpop.f32.mrf.mxu0
  %v1810 = vadd.f32 0.0, %v1809
  %v1811 = vpop.f32.mrf.mxu0
  %1812 = vmatprep.mubr.f32.mxu0 0.0
  %1813 = vmatmul.mubr.f32.gmra.mxu0 %v1732
  %v1814 = vpop.f32.mrf.mxu0
  %v1815 = vadd.f32 0.0, %v1814
  %v1816 = vpop.f32.mrf.mxu0
  %1817 = vmatprep.mubr.f32.mxu0 0.0
  %1818 = vmatmul.mubr.f32.gmra.mxu0 %v1735
  %v1819 = vpop.f32.mrf.mxu0
  %v1820 = vadd.f32 0.0, %v1819
  %v1821 = vpop.f32.mrf.mxu0
  %1822 = vmatprep.mubr.f32.mxu0 0.0
  %1823 = vmatmul.mubr.f32.gmra.mxu0 %v1738
  %v1824 = vpop.f32.mrf.mxu0
  %v1825 = vadd.f32 0.0, %v1824
  %v1826 = vpop.f32.mrf.mxu0
  %1827 = vdwg.mxu0
  %v1828 = vadd.f32 %v1719, %v1810
  %v1829 = vadd.f32 %v1720, %v1815
  %v1830 = vadd.f32 %v1721, %v1820
  %v1831 = vadd.f32 %v1722, %v1825
  %v1832 = vmax.f32 %v1828, 0.0
  %v1833 = vmax.f32 %v1829, 0.0
  %v1834 = vmax.f32 %v1830, 0.0
  %v1835 = vmax.f32 %v1831, 0.0
  %s1836 = scalar_lea.vmem %s4, 24
  %v1837 = vld [vmem:[%s1836] sm:$0x1f]
  %s1838 = scalar_lea.vmem %s5, 24
  %v1839 = vld [vmem:[%s1838] sm:$0x1f]
  %1841 = vset.pattern.permute.xlu0 0
  %1842 = vperm.xlu0 %1841, %v1839
  %v1843 = vpop.permute.xlu0 %1842
  %v1846 = vsel %vm1241, %v1837, 0
  %1848 = vmatprep.subr.mxu0 0.0
  %1849 = vmatpush1.msra.mxu0 0.0
  %1850 = vmatprep.subr.mxu0 0.0
  %1851 = vmatpush1.msra.mxu0 0.0
  %1852 = vmatprep.subr.mxu0 0.0
  %1853 = vmatpush1.msra.mxu0 0.0
  %1854 = vmatprep.subr.mxu0 0.0
  %1855 = vmatpush1.msra.mxu0 0.0
  %1856 = vmatprep.subr.mxu0 0.0
  %1857 = vmatpush1.msra.mxu0 0.0
  %1858 = vmatprep.subr.mxu0 0.0
  %1859 = vmatpush1.msra.mxu0 0.0
  %1860 = vmatprep.subr.mxu0 0.0
  %1861 = vmatpush1.msra.mxu0 0.0
  %1862 = vmatprep.subr.mxu0 0.0
  %1863 = vmatpush1.msra.mxu0 0.0
  %1864 = vmatprep.subr.mxu0 0.0
  %1865 = vmatpush1.msra.mxu0 0.0
  %1866 = vmatprep.subr.mxu0 0.0
  %1867 = vmatpush1.msra.mxu0 0.0
  %1868 = vmatprep.subr.mxu0 0.0
  %1869 = vmatpush1.msra.mxu0 0.0
  %1870 = vmatprep.subr.mxu0 0.0
  %1871 = vmatpush1.msra.mxu0 0.0
  %1872 = vmatprep.subr.mxu0 0.0
  %1873 = vmatpush1.msra.mxu0 %v1835
  %1874 = vmatprep.subr.mxu0 0.0
  %1875 = vmatpush1.msra.mxu0 %v1834
  %1876 = vmatprep.subr.mxu0 0.0
  %1877 = vmatpush1.msra.mxu0 %v1833
  %1878 = vmatprep.subr.mxu0 0.0
  %1879 = vmatpush1.msra.mxu0 %v1832
  %1880 = vmatprep.subr.mxu0 0.0
  %1881 = vmatpush2.msra.mxu0 0.0
  %1882 = vmatprep.subr.mxu0 0.0
  %1883 = vmatpush2.msra.mxu0 0.0
  %1884 = vmatprep.subr.mxu0 0.0
  %1885 = vmatpush2.msra.mxu0 0.0
  %1886 = vmatprep.subr.mxu0 0.0
  %1887 = vmatpush2.msra.mxu0 0.0
  %1888 = vmatprep.subr.mxu0 0.0
  %1889 = vmatpush2.msra.mxu0 0.0
  %1890 = vmatprep.subr.mxu0 0.0
  %1891 = vmatpush2.msra.mxu0 0.0
  %1892 = vmatprep.subr.mxu0 0.0
  %1893 = vmatpush2.msra.mxu0 0.0
  %1894 = vmatprep.subr.mxu0 0.0
  %1895 = vmatpush2.msra.mxu0 0.0
  %1896 = vmatprep.subr.mxu0 0.0
  %1897 = vmatpush2.msra.mxu0 0.0
  %1898 = vmatprep.subr.mxu0 0.0
  %1899 = vmatpush2.msra.mxu0 0.0
  %1900 = vmatprep.subr.mxu0 0.0
  %1901 = vmatpush2.msra.mxu0 0.0
  %1902 = vmatprep.subr.mxu0 0.0
  %1903 = vmatpush2.msra.mxu0 0.0
  %1904 = vmatprep.subr.mxu0 0.0
  %1905 = vmatpush2.msra.mxu0 0.0
  %1906 = vmatprep.subr.mxu0 0.0
  %1907 = vmatpush2.msra.mxu0 0.0
  %1908 = vmatprep.subr.mxu0 0.0
  %1909 = vmatpush2.msra.mxu0 0.0
  %1910 = vmatprep.subr.mxu0 0.0
  %1911 = vmatpush2.msra.mxu0 0.0
  %1912 = vmatprep.mubr.f32.mxu0 0.0
  %1913 = vmatmul.mubr.f32.gmra.mxu0 %v1846
  %v1914 = vpop.f32.mrf.mxu0
  %v1915 = vadd.f32 %v1843, %v1914
  %v1916 = vpop.f32.mrf.mxu0
  %1917 = vdwg.mxu0
  %s1918 = scalar_lea.vmem %s6, 24
  %1919 = vst.msk [vmem:[%s1918] sm:$0x1f] %vm1315, %v1915
  %v1920 = vld [vmem:[%s702] sm:$0xff]
  %v1921 = vld [vmem:[%s702 + $0x8] sm:$0xff]
  %v1922 = vld [vmem:[%s702 + $0x10] sm:$0xff]
  %v1923 = vld [vmem:[%s702 + $0x18] sm:$0xff]
  %s1924 = scalar_lea.vmem %s2, 128
  %v1925 = vld [vmem:[%s1924] sm:$0xff]
  %v1926 = vld [vmem:[%s1924 + $0x8] sm:$0xff]
  %v1927 = vld [vmem:[%s1924 + $0x10] sm:$0xff]
  %v1928 = vld [vmem:[%s1924 + $0x18] sm:$0xff]
  %v1930 = vsel %vm52, %v1925, 0
  %v1933 = vsel %vm52, %v1926, 0
  %v1936 = vsel %vm52, %v1927, 0
  %v1939 = vsel %vm52, %v1928, 0
  %v1942 = vsel %vm65, %v1915, 0
  %1944 = vmatprep.subr.mxu0 0.0
  %1945 = vmatpush1.msra.mxu0 0.0
  %1946 = vmatprep.subr.mxu0 0.0
  %1947 = vmatpush1.msra.mxu0 0.0
  %1948 = vmatprep.subr.mxu0 0.0
  %1949 = vmatpush1.msra.mxu0 0.0
  %1950 = vmatprep.subr.mxu0 0.0
  %1951 = vmatpush1.msra.mxu0 0.0
  %1952 = vmatprep.subr.mxu0 0.0
  %1953 = vmatpush1.msra.mxu0 0.0
  %1954 = vmatprep.subr.mxu0 0.0
  %1955 = vmatpush1.msra.mxu0 0.0
  %1956 = vmatprep.subr.mxu0 0.0
  %1957 = vmatpush1.msra.mxu0 0.0
  %1958 = vmatprep.subr.mxu0 0.0
  %1959 = vmatpush1.msra.mxu0 0.0
  %1960 = vmatprep.subr.mxu0 0.0
  %1961 = vmatpush1.msra.mxu0 0.0
  %1962 = vmatprep.subr.mxu0 0.0
  %1963 = vmatpush1.msra.mxu0 0.0
  %1964 = vmatprep.subr.mxu0 0.0
  %1965 = vmatpush1.msra.mxu0 0.0
  %1966 = vmatprep.subr.mxu0 0.0
  %1967 = vmatpush1.msra.mxu0 0.0
  %1968 = vmatprep.subr.mxu0 0.0
  %1969 = vmatpush1.msra.mxu0 0.0
  %1970 = vmatprep.subr.mxu0 0.0
  %1971 = vmatpush1.msra.mxu0 0.0
  %1972 = vmatprep.subr.mxu0 0.0
  %1973 = vmatpush1.msra.mxu0 0.0
  %1974 = vmatprep.subr.mxu0 0.0
  %1975 = vmatpush1.msra.mxu0 %v1942
  %1976 = vmatprep.subr.mxu0 0.0
  %1977 = vmatpush2.msra.mxu0 0.0
  %1978 = vmatprep.subr.mxu0 0.0
  %1979 = vmatpush2.msra.mxu0 0.0
  %1980 = vmatprep.subr.mxu0 0.0
  %1981 = vmatpush2.msra.mxu0 0.0
  %1982 = vmatprep.subr.mxu0 0.0
  %1983 = vmatpush2.msra.mxu0 0.0
  %1984 = vmatprep.subr.mxu0 0.0
  %1985 = vmatpush2.msra.mxu0 0.0
  %1986 = vmatprep.subr.mxu0 0.0
  %1987 = vmatpush2.msra.mxu0 0.0
  %1988 = vmatprep.subr.mxu0 0.0
  %1989 = vmatpush2.msra.mxu0 0.0
  %1990 = vmatprep.subr.mxu0 0.0
  %1991 = vmatpush2.msra.mxu0 0.0
  %1992 = vmatprep.subr.mxu0 0.0
  %1993 = vmatpush2.msra.mxu0 0.0
  %1994 = vmatprep.subr.mxu0 0.0
  %1995 = vmatpush2.msra.mxu0 0.0
  %1996 = vmatprep.subr.mxu0 0.0
  %1997 = vmatpush2.msra.mxu0 0.0
  %1998 = vmatprep.subr.mxu0 0.0
  %1999 = vmatpush2.msra.mxu0 0.0
  %2000 = vmatprep.subr.mxu0 0.0
  %2001 = vmatpush2.msra.mxu0 0.0
  %2002 = vmatprep.subr.mxu0 0.0
  %2003 = vmatpush2.msra.mxu0 0.0
  %2004 = vmatprep.subr.mxu0 0.0
  %2005 = vmatpush2.msra.mxu0 0.0
  %2006 = vmatprep.subr.mxu0 0.0
  %2007 = vmatpush2.msra.mxu0 0.0
  %2008 = vmatprep.mubr.f32.mxu0 0.0
  %2009 = vmatmul.mubr.f32.gmra.mxu0 %v1930
  %v2010 = vpop.f32.mrf.mxu0
  %v2011 = vadd.f32 0.0, %v2010
  %v2012 = vpop.f32.mrf.mxu0
  %2013 = vmatprep.mubr.f32.mxu0 0.0
  %2014 = vmatmul.mubr.f32.gmra.mxu0 %v1933
  %v2015 = vpop.f32.mrf.mxu0
  %v2016 = vadd.f32 0.0, %v2015
  %v2017 = vpop.f32.mrf.mxu0
  %2018 = vmatprep.mubr.f32.mxu0 0.0
  %2019 = vmatmul.mubr.f32.gmra.mxu0 %v1936
  %v2020 = vpop.f32.mrf.mxu0
  %v2021 = vadd.f32 0.0, %v2020
  %v2022 = vpop.f32.mrf.mxu0
  %2023 = vmatprep.mubr.f32.mxu0 0.0
  %2024 = vmatmul.mubr.f32.gmra.mxu0 %v1939
  %v2025 = vpop.f32.mrf.mxu0
  %v2026 = vadd.f32 0.0, %v2025
  %v2027 = vpop.f32.mrf.mxu0
  %2028 = vdwg.mxu0
  %v2029 = vadd.f32 %v1920, %v2011
  %v2030 = vadd.f32 %v1921, %v2016
  %v2031 = vadd.f32 %v1922, %v2021
  %v2032 = vadd.f32 %v1923, %v2026
  %v2033 = vmax.f32 %v2029, 0.0
  %v2034 = vmax.f32 %v2030, 0.0
  %v2035 = vmax.f32 %v2031, 0.0
  %v2036 = vmax.f32 %v2032, 0.0
  %s2037 = scalar_lea.vmem %s4, 32
  %v2038 = vld [vmem:[%s2037] sm:$0x1f]
  %s2039 = scalar_lea.vmem %s5, 32
  %v2040 = vld [vmem:[%s2039] sm:$0x1f]
  %2042 = vset.pattern.permute.xlu0 0
  %2043 = vperm.xlu0 %2042, %v2040
  %v2044 = vpop.permute.xlu0 %2043
  %v2047 = vsel %vm1241, %v2038, 0
  %2049 = vmatprep.subr.mxu0 0.0
  %2050 = vmatpush1.msra.mxu0 0.0
  %2051 = vmatprep.subr.mxu0 0.0
  %2052 = vmatpush1.msra.mxu0 0.0
  %2053 = vmatprep.subr.mxu0 0.0
  %2054 = vmatpush1.msra.mxu0 0.0
  %2055 = vmatprep.subr.mxu0 0.0
  %2056 = vmatpush1.msra.mxu0 0.0
  %2057 = vmatprep.subr.mxu0 0.0
  %2058 = vmatpush1.msra.mxu0 0.0
  %2059 = vmatprep.subr.mxu0 0.0
  %2060 = vmatpush1.msra.mxu0 0.0
  %2061 = vmatprep.subr.mxu0 0.0
  %2062 = vmatpush1.msra.mxu0 0.0
  %2063 = vmatprep.subr.mxu0 0.0
  %2064 = vmatpush1.msra.mxu0 0.0
  %2065 = vmatprep.subr.mxu0 0.0
  %2066 = vmatpush1.msra.mxu0 0.0
  %2067 = vmatprep.subr.mxu0 0.0
  %2068 = vmatpush1.msra.mxu0 0.0
  %2069 = vmatprep.subr.mxu0 0.0
  %2070 = vmatpush1.msra.mxu0 0.0
  %2071 = vmatprep.subr.mxu0 0.0
  %2072 = vmatpush1.msra.mxu0 0.0
  %2073 = vmatprep.subr.mxu0 0.0
  %2074 = vmatpush1.msra.mxu0 %v2036
  %2075 = vmatprep.subr.mxu0 0.0
  %2076 = vmatpush1.msra.mxu0 %v2035
  %2077 = vmatprep.subr.mxu0 0.0
  %2078 = vmatpush1.msra.mxu0 %v2034
  %2079 = vmatprep.subr.mxu0 0.0
  %2080 = vmatpush1.msra.mxu0 %v2033
  %2081 = vmatprep.subr.mxu0 0.0
  %2082 = vmatpush2.msra.mxu0 0.0
  %2083 = vmatprep.subr.mxu0 0.0
  %2084 = vmatpush2.msra.mxu0 0.0
  %2085 = vmatprep.subr.mxu0 0.0
  %2086 = vmatpush2.msra.mxu0 0.0
  %2087 = vmatprep.subr.mxu0 0.0
  %2088 = vmatpush2.msra.mxu0 0.0
  %2089 = vmatprep.subr.mxu0 0.0
  %2090 = vmatpush2.msra.mxu0 0.0
  %2091 = vmatprep.subr.mxu0 0.0
  %2092 = vmatpush2.msra.mxu0 0.0
  %2093 = vmatprep.subr.mxu0 0.0
  %2094 = vmatpush2.msra.mxu0 0.0
  %2095 = vmatprep.subr.mxu0 0.0
  %2096 = vmatpush2.msra.mxu0 0.0
  %2097 = vmatprep.subr.mxu0 0.0
  %2098 = vmatpush2.msra.mxu0 0.0
  %2099 = vmatprep.subr.mxu0 0.0
  %2100 = vmatpush2.msra.mxu0 0.0
  %2101 = vmatprep.subr.mxu0 0.0
  %2102 = vmatpush2.msra.mxu0 0.0
  %2103 = vmatprep.subr.mxu0 0.0
  %2104 = vmatpush2.msra.mxu0 0.0
  %2105 = vmatprep.subr.mxu0 0.0
  %2106 = vmatpush2.msra.mxu0 0.0
  %2107 = vmatprep.subr.mxu0 0.0
  %2108 = vmatpush2.msra.mxu0 0.0
  %2109 = vmatprep.subr.mxu0 0.0
  %2110 = vmatpush2.msra.mxu0 0.0
  %2111 = vmatprep.subr.mxu0 0.0
  %2112 = vmatpush2.msra.mxu0 0.0
  %2113 = vmatprep.mubr.f32.mxu0 0.0
  %2114 = vmatmul.mubr.f32.gmra.mxu0 %v2047
  %v2115 = vpop.f32.mrf.mxu0
  %v2116 = vadd.f32 %v2044, %v2115
  %v2117 = vpop.f32.mrf.mxu0
  %2118 = vdwg.mxu0
  %s2119 = scalar_lea.vmem %s6, 32
  %2120 = vst.msk [vmem:[%s2119] sm:$0x1f] %vm1315, %v2116
  %v2121 = vld [vmem:[%s839] sm:$0xff]
  %v2122 = vld [vmem:[%s839 + $0x8] sm:$0xff]
  %v2123 = vld [vmem:[%s839 + $0x10] sm:$0xff]
  %v2124 = vld [vmem:[%s839 + $0x18] sm:$0xff]
  %s2125 = scalar_lea.vmem %s2, 160
  %v2126 = vld [vmem:[%s2125] sm:$0xff]
  %v2127 = vld [vmem:[%s2125 + $0x8] sm:$0xff]
  %v2128 = vld [vmem:[%s2125 + $0x10] sm:$0xff]
  %v2129 = vld [vmem:[%s2125 + $0x18] sm:$0xff]
  %v2131 = vsel %vm52, %v2126, 0
  %v2134 = vsel %vm52, %v2127, 0
  %v2137 = vsel %vm52, %v2128, 0
  %v2140 = vsel %vm52, %v2129, 0
  %v2143 = vsel %vm65, %v2116, 0
  %2145 = vmatprep.subr.mxu0 0.0
  %2146 = vmatpush1.msra.mxu0 0.0
  %2147 = vmatprep.subr.mxu0 0.0
  %2148 = vmatpush1.msra.mxu0 0.0
  %2149 = vmatprep.subr.mxu0 0.0
  %2150 = vmatpush1.msra.mxu0 0.0
  %2151 = vmatprep.subr.mxu0 0.0
  %2152 = vmatpush1.msra.mxu0 0.0
  %2153 = vmatprep.subr.mxu0 0.0
  %2154 = vmatpush1.msra.mxu0 0.0
  %2155 = vmatprep.subr.mxu0 0.0
  %2156 = vmatpush1.msra.mxu0 0.0
  %2157 = vmatprep.subr.mxu0 0.0
  %2158 = vmatpush1.msra.mxu0 0.0
  %2159 = vmatprep.subr.mxu0 0.0
  %2160 = vmatpush1.msra.mxu0 0.0
  %2161 = vmatprep.subr.mxu0 0.0
  %2162 = vmatpush1.msra.mxu0 0.0
  %2163 = vmatprep.subr.mxu0 0.0
  %2164 = vmatpush1.msra.mxu0 0.0
  %2165 = vmatprep.subr.mxu0 0.0
  %2166 = vmatpush1.msra.mxu0 0.0
  %2167 = vmatprep.subr.mxu0 0.0
  %2168 = vmatpush1.msra.mxu0 0.0
  %2169 = vmatprep.subr.mxu0 0.0
  %2170 = vmatpush1.msra.mxu0 0.0
  %2171 = vmatprep.subr.mxu0 0.0
  %2172 = vmatpush1.msra.mxu0 0.0
  %2173 = vmatprep.subr.mxu0 0.0
  %2174 = vmatpush1.msra.mxu0 0.0
  %2175 = vmatprep.subr.mxu0 0.0
  %2176 = vmatpush1.msra.mxu0 %v2143
  %2177 = vmatprep.subr.mxu0 0.0
  %2178 = vmatpush2.msra.mxu0 0.0
  %2179 = vmatprep.subr.mxu0 0.0
  %2180 = vmatpush2.msra.mxu0 0.0
  %2181 = vmatprep.subr.mxu0 0.0
  %2182 = vmatpush2.msra.mxu0 0.0
  %2183 = vmatprep.subr.mxu0 0.0
  %2184 = vmatpush2.msra.mxu0 0.0
  %2185 = vmatprep.subr.mxu0 0.0
  %2186 = vmatpush2.msra.mxu0 0.0
  %2187 = vmatprep.subr.mxu0 0.0
  %2188 = vmatpush2.msra.mxu0 0.0
  %2189 = vmatprep.subr.mxu0 0.0
  %2190 = vmatpush2.msra.mxu0 0.0
  %2191 = vmatprep.subr.mxu0 0.0
  %2192 = vmatpush2.msra.mxu0 0.0
  %2193 = vmatprep.subr.mxu0 0.0
  %2194 = vmatpush2.msra.mxu0 0.0
  %2195 = vmatprep.subr.mxu0 0.0
  %2196 = vmatpush2.msra.mxu0 0.0
  %2197 = vmatprep.subr.mxu0 0.0
  %2198 = vmatpush2.msra.mxu0 0.0
  %2199 = vmatprep.subr.mxu0 0.0
  %2200 = vmatpush2.msra.mxu0 0.0
  %2201 = vmatprep.subr.mxu0 0.0
  %2202 = vmatpush2.msra.mxu0 0.0
  %2203 = vmatprep.subr.mxu0 0.0
  %2204 = vmatpush2.msra.mxu0 0.0
  %2205 = vmatprep.subr.mxu0 0.0
  %2206 = vmatpush2.msra.mxu0 0.0
  %2207 = vmatprep.subr.mxu0 0.0
  %2208 = vmatpush2.msra.mxu0 0.0
  %2209 = vmatprep.mubr.f32.mxu0 0.0
  %2210 = vmatmul.mubr.f32.gmra.mxu0 %v2131
  %v2211 = vpop.f32.mrf.mxu0
  %v2212 = vadd.f32 0.0, %v2211
  %v2213 = vpop.f32.mrf.mxu0
  %2214 = vmatprep.mubr.f32.mxu0 0.0
  %2215 = vmatmul.mubr.f32.gmra.mxu0 %v2134
  %v2216 = vpop.f32.mrf.mxu0
  %v2217 = vadd.f32 0.0, %v2216
  %v2218 = vpop.f32.mrf.mxu0
  %2219 = vmatprep.mubr.f32.mxu0 0.0
  %2220 = vmatmul.mubr.f32.gmra.mxu0 %v2137
  %v2221 = vpop.f32.mrf.mxu0
  %v2222 = vadd.f32 0.0, %v2221
  %v2223 = vpop.f32.mrf.mxu0
  %2224 = vmatprep.mubr.f32.mxu0 0.0
  %2225 = vmatmul.mubr.f32.gmra.mxu0 %v2140
  %v2226 = vpop.f32.mrf.mxu0
  %v2227 = vadd.f32 0.0, %v2226
  %v2228 = vpop.f32.mrf.mxu0
  %2229 = vdwg.mxu0
  %v2230 = vadd.f32 %v2121, %v2212
  %v2231 = vadd.f32 %v2122, %v2217
  %v2232 = vadd.f32 %v2123, %v2222
  %v2233 = vadd.f32 %v2124, %v2227
  %v2234 = vmax.f32 %v2230, 0.0
  %v2235 = vmax.f32 %v2231, 0.0
  %v2236 = vmax.f32 %v2232, 0.0
  %v2237 = vmax.f32 %v2233, 0.0
  %s2238 = scalar_lea.vmem %s4, 40
  %v2239 = vld [vmem:[%s2238] sm:$0x1f]
  %s2240 = scalar_lea.vmem %s5, 40
  %v2241 = vld [vmem:[%s2240] sm:$0x1f]
  %2243 = vset.pattern.permute.xlu0 0
  %2244 = vperm.xlu0 %2243, %v2241
  %v2245 = vpop.permute.xlu0 %2244
  %v2248 = vsel %vm1241, %v2239, 0
  %2250 = vmatprep.subr.mxu0 0.0
  %2251 = vmatpush1.msra.mxu0 0.0
  %2252 = vmatprep.subr.mxu0 0.0
  %2253 = vmatpush1.msra.mxu0 0.0
  %2254 = vmatprep.subr.mxu0 0.0
  %2255 = vmatpush1.msra.mxu0 0.0
  %2256 = vmatprep.subr.mxu0 0.0
  %2257 = vmatpush1.msra.mxu0 0.0
  %2258 = vmatprep.subr.mxu0 0.0
  %2259 = vmatpush1.msra.mxu0 0.0
  %2260 = vmatprep.subr.mxu0 0.0
  %2261 = vmatpush1.msra.mxu0 0.0
  %2262 = vmatprep.subr.mxu0 0.0
  %2263 = vmatpush1.msra.mxu0 0.0
  %2264 = vmatprep.subr.mxu0 0.0
  %2265 = vmatpush1.msra.mxu0 0.0
  %2266 = vmatprep.subr.mxu0 0.0
  %2267 = vmatpush1.msra.mxu0 0.0
  %2268 = vmatprep.subr.mxu0 0.0
  %2269 = vmatpush1.msra.mxu0 0.0
  %2270 = vmatprep.subr.mxu0 0.0
  %2271 = vmatpush1.msra.mxu0 0.0
  %2272 = vmatprep.subr.mxu0 0.0
  %2273 = vmatpush1.msra.mxu0 0.0
  %2274 = vmatprep.subr.mxu0 0.0
  %2275 = vmatpush1.msra.mxu0 %v2237
  %2276 = vmatprep.subr.mxu0 0.0
  %2277 = vmatpush1.msra.mxu0 %v2236
  %2278 = vmatprep.subr.mxu0 0.0
  %2279 = vmatpush1.msra.mxu0 %v2235
  %2280 = vmatprep.subr.mxu0 0.0
  %2281 = vmatpush1.msra.mxu0 %v2234
  %2282 = vmatprep.subr.mxu0 0.0
  %2283 = vmatpush2.msra.mxu0 0.0
  %2284 = vmatprep.subr.mxu0 0.0
  %2285 = vmatpush2.msra.mxu0 0.0
  %2286 = vmatprep.subr.mxu0 0.0
  %2287 = vmatpush2.msra.mxu0 0.0
  %2288 = vmatprep.subr.mxu0 0.0
  %2289 = vmatpush2.msra.mxu0 0.0
  %2290 = vmatprep.subr.mxu0 0.0
  %2291 = vmatpush2.msra.mxu0 0.0
  %2292 = vmatprep.subr.mxu0 0.0
  %2293 = vmatpush2.msra.mxu0 0.0
  %2294 = vmatprep.subr.mxu0 0.0
  %2295 = vmatpush2.msra.mxu0 0.0
  %2296 = vmatprep.subr.mxu0 0.0
  %2297 = vmatpush2.msra.mxu0 0.0
  %2298 = vmatprep.subr.mxu0 0.0
  %2299 = vmatpush2.msra.mxu0 0.0
  %2300 = vmatprep.subr.mxu0 0.0
  %2301 = vmatpush2.msra.mxu0 0.0
  %2302 = vmatprep.subr.mxu0 0.0
  %2303 = vmatpush2.msra.mxu0 0.0
  %2304 = vmatprep.subr.mxu0 0.0
  %2305 = vmatpush2.msra.mxu0 0.0
  %2306 = vmatprep.subr.mxu0 0.0
  %2307 = vmatpush2.msra.mxu0 0.0
  %2308 = vmatprep.subr.mxu0 0.0
  %2309 = vmatpush2.msra.mxu0 0.0
  %2310 = vmatprep.subr.mxu0 0.0
  %2311 = vmatpush2.msra.mxu0 0.0
  %2312 = vmatprep.subr.mxu0 0.0
  %2313 = vmatpush2.msra.mxu0 0.0
  %2314 = vmatprep.mubr.f32.mxu0 0.0
  %2315 = vmatmul.mubr.f32.gmra.mxu0 %v2248
  %v2316 = vpop.f32.mrf.mxu0
  %v2317 = vadd.f32 %v2245, %v2316
  %v2318 = vpop.f32.mrf.mxu0
  %2319 = vdwg.mxu0
  %s2320 = scalar_lea.vmem %s6, 40
  %2321 = vst.msk [vmem:[%s2320] sm:$0x1f] %vm1315, %v2317
  %v2322 = vld [vmem:[%s976] sm:$0xff]
  %v2323 = vld [vmem:[%s976 + $0x8] sm:$0xff]
  %v2324 = vld [vmem:[%s976 + $0x10] sm:$0xff]
  %v2325 = vld [vmem:[%s976 + $0x18] sm:$0xff]
  %s2326 = scalar_lea.vmem %s2, 192
  %v2327 = vld [vmem:[%s2326] sm:$0xff]
  %v2328 = vld [vmem:[%s2326 + $0x8] sm:$0xff]
  %v2329 = vld [vmem:[%s2326 + $0x10] sm:$0xff]
  %v2330 = vld [vmem:[%s2326 + $0x18] sm:$0xff]
  %v2332 = vsel %vm52, %v2327, 0
  %v2335 = vsel %vm52, %v2328, 0
  %v2338 = vsel %vm52, %v2329, 0
  %v2341 = vsel %vm52, %v2330, 0
  %v2344 = vsel %vm65, %v2317, 0
  %2346 = vmatprep.subr.mxu0 0.0
  %2347 = vmatpush1.msra.mxu0 0.0
  %2348 = vmatprep.subr.mxu0 0.0
  %2349 = vmatpush1.msra.mxu0 0.0
  %2350 = vmatprep.subr.mxu0 0.0
  %2351 = vmatpush1.msra.mxu0 0.0
  %2352 = vmatprep.subr.mxu0 0.0
  %2353 = vmatpush1.msra.mxu0 0.0
  %2354 = vmatprep.subr.mxu0 0.0
  %2355 = vmatpush1.msra.mxu0 0.0
  %2356 = vmatprep.subr.mxu0 0.0
  %2357 = vmatpush1.msra.mxu0 0.0
  %2358 = vmatprep.subr.mxu0 0.0
  %2359 = vmatpush1.msra.mxu0 0.0
  %2360 = vmatprep.subr.mxu0 0.0
  %2361 = vmatpush1.msra.mxu0 0.0
  %2362 = vmatprep.subr.mxu0 0.0
  %2363 = vmatpush1.msra.mxu0 0.0
  %2364 = vmatprep.subr.mxu0 0.0
  %2365 = vmatpush1.msra.mxu0 0.0
  %2366 = vmatprep.subr.mxu0 0.0
  %2367 = vmatpush1.msra.mxu0 0.0
  %2368 = vmatprep.subr.mxu0 0.0
  %2369 = vmatpush1.msra.mxu0 0.0
  %2370 = vmatprep.subr.mxu0 0.0
  %2371 = vmatpush1.msra.mxu0 0.0
  %2372 = vmatprep.subr.mxu0 0.0
  %2373 = vmatpush1.msra.mxu0 0.0
  %2374 = vmatprep.subr.mxu0 0.0
  %2375 = vmatpush1.msra.mxu0 0.0
  %2376 = vmatprep.subr.mxu0 0.0
  %2377 = vmatpush1.msra.mxu0 %v2344
  %2378 = vmatprep.subr.mxu0 0.0
  %2379 = vmatpush2.msra.mxu0 0.0
  %2380 = vmatprep.subr.mxu0 0.0
  %2381 = vmatpush2.msra.mxu0 0.0
  %2382 = vmatprep.subr.mxu0 0.0
  %2383 = vmatpush2.msra.mxu0 0.0
  %2384 = vmatprep.subr.mxu0 0.0
  %2385 = vmatpush2.msra.mxu0 0.0
  %2386 = vmatprep.subr.mxu0 0.0
  %2387 = vmatpush2.msra.mxu0 0.0
  %2388 = vmatprep.subr.mxu0 0.0
  %2389 = vmatpush2.msra.mxu0 0.0
  %2390 = vmatprep.subr.mxu0 0.0
  %2391 = vmatpush2.msra.mxu0 0.0
  %2392 = vmatprep.subr.mxu0 0.0
  %2393 = vmatpush2.msra.mxu0 0.0
  %2394 = vmatprep.subr.mxu0 0.0
  %2395 = vmatpush2.msra.mxu0 0.0
  %2396 = vmatprep.subr.mxu0 0.0
  %2397 = vmatpush2.msra.mxu0 0.0
  %2398 = vmatprep.subr.mxu0 0.0
  %2399 = vmatpush2.msra.mxu0 0.0
  %2400 = vmatprep.subr.mxu0 0.0
  %2401 = vmatpush2.msra.mxu0 0.0
  %2402 = vmatprep.subr.mxu0 0.0
  %2403 = vmatpush2.msra.mxu0 0.0
  %2404 = vmatprep.subr.mxu0 0.0
  %2405 = vmatpush2.msra.mxu0 0.0
  %2406 = vmatprep.subr.mxu0 0.0
  %2407 = vmatpush2.msra.mxu0 0.0
  %2408 = vmatprep.subr.mxu0 0.0
  %2409 = vmatpush2.msra.mxu0 0.0
  %2410 = vmatprep.mubr.f32.mxu0 0.0
  %2411 = vmatmul.mubr.f32.gmra.mxu0 %v2332
  %v2412 = vpop.f32.mrf.mxu0
  %v2413 = vadd.f32 0.0, %v2412
  %v2414 = vpop.f32.mrf.mxu0
  %2415 = vmatprep.mubr.f32.mxu0 0.0
  %2416 = vmatmul.mubr.f32.gmra.mxu0 %v2335
  %v2417 = vpop.f32.mrf.mxu0
  %v2418 = vadd.f32 0.0, %v2417
  %v2419 = vpop.f32.mrf.mxu0
  %2420 = vmatprep.mubr.f32.mxu0 0.0
  %2421 = vmatmul.mubr.f32.gmra.mxu0 %v2338
  %v2422 = vpop.f32.mrf.mxu0
  %v2423 = vadd.f32 0.0, %v2422
  %v2424 = vpop.f32.mrf.mxu0
  %2425 = vmatprep.mubr.f32.mxu0 0.0
  %2426 = vmatmul.mubr.f32.gmra.mxu0 %v2341
  %v2427 = vpop.f32.mrf.mxu0
  %v2428 = vadd.f32 0.0, %v2427
  %v2429 = vpop.f32.mrf.mxu0
  %2430 = vdwg.mxu0
  %v2431 = vadd.f32 %v2322, %v2413
  %v2432 = vadd.f32 %v2323, %v2418
  %v2433 = vadd.f32 %v2324, %v2423
  %v2434 = vadd.f32 %v2325, %v2428
  %v2435 = vmax.f32 %v2431, 0.0
  %v2436 = vmax.f32 %v2432, 0.0
  %v2437 = vmax.f32 %v2433, 0.0
  %v2438 = vmax.f32 %v2434, 0.0
  %s2439 = scalar_lea.vmem %s4, 48
  %v2440 = vld [vmem:[%s2439] sm:$0x1f]
  %s2441 = scalar_lea.vmem %s5, 48
  %v2442 = vld [vmem:[%s2441] sm:$0x1f]
  %2444 = vset.pattern.permute.xlu0 0
  %2445 = vperm.xlu0 %2444, %v2442
  %v2446 = vpop.permute.xlu0 %2445
  %v2449 = vsel %vm1241, %v2440, 0
  %2451 = vmatprep.subr.mxu0 0.0
  %2452 = vmatpush1.msra.mxu0 0.0
  %2453 = vmatprep.subr.mxu0 0.0
  %2454 = vmatpush1.msra.mxu0 0.0
  %2455 = vmatprep.subr.mxu0 0.0
  %2456 = vmatpush1.msra.mxu0 0.0
  %2457 = vmatprep.subr.mxu0 0.0
  %2458 = vmatpush1.msra.mxu0 0.0
  %2459 = vmatprep.subr.mxu0 0.0
  %2460 = vmatpush1.msra.mxu0 0.0
  %2461 = vmatprep.subr.mxu0 0.0
  %2462 = vmatpush1.msra.mxu0 0.0
  %2463 = vmatprep.subr.mxu0 0.0
  %2464 = vmatpush1.msra.mxu0 0.0
  %2465 = vmatprep.subr.mxu0 0.0
  %2466 = vmatpush1.msra.mxu0 0.0
  %2467 = vmatprep.subr.mxu0 0.0
  %2468 = vmatpush1.msra.mxu0 0.0
  %2469 = vmatprep.subr.mxu0 0.0
  %2470 = vmatpush1.msra.mxu0 0.0
  %2471 = vmatprep.subr.mxu0 0.0
  %2472 = vmatpush1.msra.mxu0 0.0
  %2473 = vmatprep.subr.mxu0 0.0
  %2474 = vmatpush1.msra.mxu0 0.0
  %2475 = vmatprep.subr.mxu0 0.0
  %2476 = vmatpush1.msra.mxu0 %v2438
  %2477 = vmatprep.subr.mxu0 0.0
  %2478 = vmatpush1.msra.mxu0 %v2437
  %2479 = vmatprep.subr.mxu0 0.0
  %2480 = vmatpush1.msra.mxu0 %v2436
  %2481 = vmatprep.subr.mxu0 0.0
  %2482 = vmatpush1.msra.mxu0 %v2435
  %2483 = vmatprep.subr.mxu0 0.0
  %2484 = vmatpush2.msra.mxu0 0.0
  %2485 = vmatprep.subr.mxu0 0.0
  %2486 = vmatpush2.msra.mxu0 0.0
  %2487 = vmatprep.subr.mxu0 0.0
  %2488 = vmatpush2.msra.mxu0 0.0
  %2489 = vmatprep.subr.mxu0 0.0
  %2490 = vmatpush2.msra.mxu0 0.0
  %2491 = vmatprep.subr.mxu0 0.0
  %2492 = vmatpush2.msra.mxu0 0.0
  %2493 = vmatprep.subr.mxu0 0.0
  %2494 = vmatpush2.msra.mxu0 0.0
  %2495 = vmatprep.subr.mxu0 0.0
  %2496 = vmatpush2.msra.mxu0 0.0
  %2497 = vmatprep.subr.mxu0 0.0
  %2498 = vmatpush2.msra.mxu0 0.0
  %2499 = vmatprep.subr.mxu0 0.0
  %2500 = vmatpush2.msra.mxu0 0.0
  %2501 = vmatprep.subr.mxu0 0.0
  %2502 = vmatpush2.msra.mxu0 0.0
  %2503 = vmatprep.subr.mxu0 0.0
  %2504 = vmatpush2.msra.mxu0 0.0
  %2505 = vmatprep.subr.mxu0 0.0
  %2506 = vmatpush2.msra.mxu0 0.0
  %2507 = vmatprep.subr.mxu0 0.0
  %2508 = vmatpush2.msra.mxu0 0.0
  %2509 = vmatprep.subr.mxu0 0.0
  %2510 = vmatpush2.msra.mxu0 0.0
  %2511 = vmatprep.subr.mxu0 0.0
  %2512 = vmatpush2.msra.mxu0 0.0
  %2513 = vmatprep.subr.mxu0 0.0
  %2514 = vmatpush2.msra.mxu0 0.0
  %2515 = vmatprep.mubr.f32.mxu0 0.0
  %2516 = vmatmul.mubr.f32.gmra.mxu0 %v2449
  %v2517 = vpop.f32.mrf.mxu0
  %v2518 = vadd.f32 %v2446, %v2517
  %v2519 = vpop.f32.mrf.mxu0
  %2520 = vdwg.mxu0
  %s2521 = scalar_lea.vmem %s6, 48
  %2522 = vst.msk [vmem:[%s2521] sm:$0x1f] %vm1315, %v2518
  %v2523 = vld [vmem:[%s1113] sm:$0xff]
  %v2524 = vld [vmem:[%s1113 + $0x8] sm:$0xff]
  %v2525 = vld [vmem:[%s1113 + $0x10] sm:$0xff]
  %v2526 = vld [vmem:[%s1113 + $0x18] sm:$0xff]
  %s2527 = scalar_lea.vmem %s2, 224
  %v2528 = vld [vmem:[%s2527] sm:$0xff]
  %v2529 = vld [vmem:[%s2527 + $0x8] sm:$0xff]
  %v2530 = vld [vmem:[%s2527 + $0x10] sm:$0xff]
  %v2531 = vld [vmem:[%s2527 + $0x18] sm:$0xff]
  %v2533 = vsel %vm52, %v2528, 0
  %v2536 = vsel %vm52, %v2529, 0
  %v2539 = vsel %vm52, %v2530, 0
  %v2542 = vsel %vm52, %v2531, 0
  %v2545 = vsel %vm65, %v2518, 0
  %2547 = vmatprep.subr.mxu0 0.0
  %2548 = vmatpush1.msra.mxu0 0.0
  %2549 = vmatprep.subr.mxu0 0.0
  %2550 = vmatpush1.msra.mxu0 0.0
  %2551 = vmatprep.subr.mxu0 0.0
  %2552 = vmatpush1.msra.mxu0 0.0
  %2553 = vmatprep.subr.mxu0 0.0
  %2554 = vmatpush1.msra.mxu0 0.0
  %2555 = vmatprep.subr.mxu0 0.0
  %2556 = vmatpush1.msra.mxu0 0.0
  %2557 = vmatprep.subr.mxu0 0.0
  %2558 = vmatpush1.msra.mxu0 0.0
  %2559 = vmatprep.subr.mxu0 0.0
  %2560 = vmatpush1.msra.mxu0 0.0
  %2561 = vmatprep.subr.mxu0 0.0
  %2562 = vmatpush1.msra.mxu0 0.0
  %2563 = vmatprep.subr.mxu0 0.0
  %2564 = vmatpush1.msra.mxu0 0.0
  %2565 = vmatprep.subr.mxu0 0.0
  %2566 = vmatpush1.msra.mxu0 0.0
  %2567 = vmatprep.subr.mxu0 0.0
  %2568 = vmatpush1.msra.mxu0 0.0
  %2569 = vmatprep.subr.mxu0 0.0
  %2570 = vmatpush1.msra.mxu0 0.0
  %2571 = vmatprep.subr.mxu0 0.0
  %2572 = vmatpush1.msra.mxu0 0.0
  %2573 = vmatprep.subr.mxu0 0.0
  %2574 = vmatpush1.msra.mxu0 0.0
  %2575 = vmatprep.subr.mxu0 0.0
  %2576 = vmatpush1.msra.mxu0 0.0
  %2577 = vmatprep.subr.mxu0 0.0
  %2578 = vmatpush1.msra.mxu0 %v2545
  %2579 = vmatprep.subr.mxu0 0.0
  %2580 = vmatpush2.msra.mxu0 0.0
  %2581 = vmatprep.subr.mxu0 0.0
  %2582 = vmatpush2.msra.mxu0 0.0
  %2583 = vmatprep.subr.mxu0 0.0
  %2584 = vmatpush2.msra.mxu0 0.0
  %2585 = vmatprep.subr.mxu0 0.0
  %2586 = vmatpush2.msra.mxu0 0.0
  %2587 = vmatprep.subr.mxu0 0.0
  %2588 = vmatpush2.msra.mxu0 0.0
  %2589 = vmatprep.subr.mxu0 0.0
  %2590 = vmatpush2.msra.mxu0 0.0
  %2591 = vmatprep.subr.mxu0 0.0
  %2592 = vmatpush2.msra.mxu0 0.0
  %2593 = vmatprep.subr.mxu0 0.0
  %2594 = vmatpush2.msra.mxu0 0.0
  %2595 = vmatprep.subr.mxu0 0.0
  %2596 = vmatpush2.msra.mxu0 0.0
  %2597 = vmatprep.subr.mxu0 0.0
  %2598 = vmatpush2.msra.mxu0 0.0
  %2599 = vmatprep.subr.mxu0 0.0
  %2600 = vmatpush2.msra.mxu0 0.0
  %2601 = vmatprep.subr.mxu0 0.0
  %2602 = vmatpush2.msra.mxu0 0.0
  %2603 = vmatprep.subr.mxu0 0.0
  %2604 = vmatpush2.msra.mxu0 0.0
  %2605 = vmatprep.subr.mxu0 0.0
  %2606 = vmatpush2.msra.mxu0 0.0
  %2607 = vmatprep.subr.mxu0 0.0
  %2608 = vmatpush2.msra.mxu0 0.0
  %2609 = vmatprep.subr.mxu0 0.0
  %2610 = vmatpush2.msra.mxu0 0.0
  %2611 = vmatprep.mubr.f32.mxu0 0.0
  %2612 = vmatmul.mubr.f32.gmra.mxu0 %v2533
  %v2613 = vpop.f32.mrf.mxu0
  %v2614 = vadd.f32 0.0, %v2613
  %v2615 = vpop.f32.mrf.mxu0
  %2616 = vmatprep.mubr.f32.mxu0 0.0
  %2617 = vmatmul.mubr.f32.gmra.mxu0 %v2536
  %v2618 = vpop.f32.mrf.mxu0
  %v2619 = vadd.f32 0.0, %v2618
  %v2620 = vpop.f32.mrf.mxu0
  %2621 = vmatprep.mubr.f32.mxu0 0.0
  %2622 = vmatmul.mubr.f32.gmra.mxu0 %v2539
  %v2623 = vpop.f32.mrf.mxu0
  %v2624 = vadd.f32 0.0, %v2623
  %v2625 = vpop.f32.mrf.mxu0
  %2626 = vmatprep.mubr.f32.mxu0 0.0
  %2627 = vmatmul.mubr.f32.gmra.mxu0 %v2542
  %v2628 = vpop.f32.mrf.mxu0
  %v2629 = vadd.f32 0.0, %v2628
  %v2630 = vpop.f32.mrf.mxu0
  %2631 = vdwg.mxu0
  %v2632 = vadd.f32 %v2523, %v2614
  %v2633 = vadd.f32 %v2524, %v2619
  %v2634 = vadd.f32 %v2525, %v2624
  %v2635 = vadd.f32 %v2526, %v2629
  %v2636 = vmax.f32 %v2632, 0.0
  %v2637 = vmax.f32 %v2633, 0.0
  %v2638 = vmax.f32 %v2634, 0.0
  %v2639 = vmax.f32 %v2635, 0.0
  %s2640 = scalar_lea.vmem %s4, 56
  %v2641 = vld [vmem:[%s2640] sm:$0x1f]
  %s2642 = scalar_lea.vmem %s5, 56
  %v2643 = vld [vmem:[%s2642] sm:$0x1f]
  %2645 = vset.pattern.permute.xlu0 0
  %2646 = vperm.xlu0 %2645, %v2643
  %v2647 = vpop.permute.xlu0 %2646
  %v2650 = vsel %vm1241, %v2641, 0
  %2652 = vmatprep.subr.mxu0 0.0
  %2653 = vmatpush1.msra.mxu0 0.0
  %2654 = vmatprep.subr.mxu0 0.0
  %2655 = vmatpush1.msra.mxu0 0.0
  %2656 = vmatprep.subr.mxu0 0.0
  %2657 = vmatpush1.msra.mxu0 0.0
  %2658 = vmatprep.subr.mxu0 0.0
  %2659 = vmatpush1.msra.mxu0 0.0
  %2660 = vmatprep.subr.mxu0 0.0
  %2661 = vmatpush1.msra.mxu0 0.0
  %2662 = vmatprep.subr.mxu0 0.0
  %2663 = vmatpush1.msra.mxu0 0.0
  %2664 = vmatprep.subr.mxu0 0.0
  %2665 = vmatpush1.msra.mxu0 0.0
  %2666 = vmatprep.subr.mxu0 0.0
  %2667 = vmatpush1.msra.mxu0 0.0
  %2668 = vmatprep.subr.mxu0 0.0
  %2669 = vmatpush1.msra.mxu0 0.0
  %2670 = vmatprep.subr.mxu0 0.0
  %2671 = vmatpush1.msra.mxu0 0.0
  %2672 = vmatprep.subr.mxu0 0.0
  %2673 = vmatpush1.msra.mxu0 0.0
  %2674 = vmatprep.subr.mxu0 0.0
  %2675 = vmatpush1.msra.mxu0 0.0
  %2676 = vmatprep.subr.mxu0 0.0
  %2677 = vmatpush1.msra.mxu0 %v2639
  %2678 = vmatprep.subr.mxu0 0.0
  %2679 = vmatpush1.msra.mxu0 %v2638
  %2680 = vmatprep.subr.mxu0 0.0
  %2681 = vmatpush1.msra.mxu0 %v2637
  %2682 = vmatprep.subr.mxu0 0.0
  %2683 = vmatpush1.msra.mxu0 %v2636
  %2684 = vmatprep.subr.mxu0 0.0
  %2685 = vmatpush2.msra.mxu0 0.0
  %2686 = vmatprep.subr.mxu0 0.0
  %2687 = vmatpush2.msra.mxu0 0.0
  %2688 = vmatprep.subr.mxu0 0.0
  %2689 = vmatpush2.msra.mxu0 0.0
  %2690 = vmatprep.subr.mxu0 0.0
  %2691 = vmatpush2.msra.mxu0 0.0
  %2692 = vmatprep.subr.mxu0 0.0
  %2693 = vmatpush2.msra.mxu0 0.0
  %2694 = vmatprep.subr.mxu0 0.0
  %2695 = vmatpush2.msra.mxu0 0.0
  %2696 = vmatprep.subr.mxu0 0.0
  %2697 = vmatpush2.msra.mxu0 0.0
  %2698 = vmatprep.subr.mxu0 0.0
  %2699 = vmatpush2.msra.mxu0 0.0
  %2700 = vmatprep.subr.mxu0 0.0
  %2701 = vmatpush2.msra.mxu0 0.0
  %2702 = vmatprep.subr.mxu0 0.0
  %2703 = vmatpush2.msra.mxu0 0.0
  %2704 = vmatprep.subr.mxu0 0.0
  %2705 = vmatpush2.msra.mxu0 0.0
  %2706 = vmatprep.subr.mxu0 0.0
  %2707 = vmatpush2.msra.mxu0 0.0
  %2708 = vmatprep.subr.mxu0 0.0
  %2709 = vmatpush2.msra.mxu0 0.0
  %2710 = vmatprep.subr.mxu0 0.0
  %2711 = vmatpush2.msra.mxu0 0.0
  %2712 = vmatprep.subr.mxu0 0.0
  %2713 = vmatpush2.msra.mxu0 0.0
  %2714 = vmatprep.subr.mxu0 0.0
  %2715 = vmatpush2.msra.mxu0 0.0
  %2716 = vmatprep.mubr.f32.mxu0 0.0
  %2717 = vmatmul.mubr.f32.gmra.mxu0 %v2650
  %v2718 = vpop.f32.mrf.mxu0
  %v2719 = vadd.f32 %v2647, %v2718
  %v2720 = vpop.f32.mrf.mxu0
  %2721 = vdwg.mxu0
  %s2722 = scalar_lea.vmem %s6, 56
  %2723 = vst.msk [vmem:[%s2722] sm:$0x1f] %vm1315, %v2719
  // Predicated region
  $region26: #{tpu_custom_call.1} parent=0 // pred_check
    _
  $region27: #{tpu_custom_call.1} parent=0 // pred_check_branch
    %2725 = sbr.rel (0) target = $region29
  $region28: #{tpu_custom_call.1} parent=0 // pred_region
    _
  $region29: #{tpu_custom_call.1} parent=0 // pred_fallthru
    _
  // Predicated region
  $region30: #{tpu_custom_call.1} parent=0 // pred_check
    _
  $region31: #{tpu_custom_call.1} parent=0 // pred_check_branch
    %2727 = sbr.rel (0) target = $region33
  $region32: #{tpu_custom_call.1} parent=0 // pred_region
    _
  $region33: #{tpu_custom_call.1} parent=0 // pred_fallthru
    _

</llo_original>
